<compile_context>
chip_gen: v7x
topology: tpu7x:2x2x1
jax: 0.10.0
libtpu: 0.0.40
codegen_flags: <defaults>
</compile_context>

<pallas_src>
import functools

import numpy as np
import jax
import jax.numpy as jnp
from jax import lax
from jax.experimental import pallas as pl
from jax.experimental.pallas import tpu as pltpu


# ----------------------------- kernel ---------------------------------------


def seq2seq_kernel(tok_ref,                                    # SMEM (T,) int32
                   emb_enc_ref, emb_dec_ref,                   # (In,H), (V,H)
                   wih_e_ref, whh_e_ref, bih_e_ref, bhh_e_ref,  # enc GRU (fused+padded)
                   wih_d_ref, whh_d_ref, bih_d_ref, bhh_d_ref,  # dec GRU (fused+padded)
                   wout_ref, bout_ref,                          # (G,V), (1,V)
                   logp_ref, ids_ref, hid_ref,                  # outs: (L,V),(L,1),(L,H)
                   *, sos_id):
    T = tok_ref.shape[0]               # encoder length (static, specialized)
    L, H = hid_ref.shape               # max_length, hidden_size
    G = bhh_e_ref.shape[1] // 3        # per-gate lane block (multiple of 128)

    # ---- encoder: embedding gather in-kernel (token ids from SMEM) --------
    rows = [emb_enc_ref[pl.ds(tok_ref[t], 1), :] for t in range(T)]
    enc_x = jnp.concatenate(rows, axis=0)                      # (T, H)

    # Batched input-gate projection for ALL encoder timesteps: one MXU op.
    gi_all = (jnp.dot(enc_x, wih_e_ref[...],
                      preferred_element_type=jnp.float32) + bih_e_ref[...])
    gir_all = gi_all[:, 0:G]
    giz_all = gi_all[:, G:2 * G]
    gin_all = gi_all[:, 2 * G:3 * G]

    whh_e = whh_e_ref[...]
    bhh_e = bhh_e_ref[...]

    # Hidden state stays vreg-resident and lane-padded to G; because the padded
    # weight rows/cols and bias lanes are zero, the pad lanes of h stay exactly
    # zero, so the padded math equals the unpadded math bit-for-bit.
    h = jnp.zeros((1, G), jnp.float32)
    for t in range(T):                 # fully unrolled serial recurrence
        gh = jnp.dot(h, whh_e, preferred_element_type=jnp.float32) + bhh_e
        r = jax.nn.sigmoid(gir_all[t:t + 1, :] + gh[:, 0:G])
        z = jax.nn.sigmoid(giz_all[t:t + 1, :] + gh[:, G:2 * G])
        n = jnp.tanh(gin_all[t:t + 1, :] + r * gh[:, 2 * G:3 * G])
        h = (1.0 - z) * n + z * h

    # ---- decoder -----------------------------------------------------------
    # x_dec = relu(embed(sos)) is constant across steps -> computed once,
    # input-gate projection hoisted off the recurrence.
    x_dec = jax.nn.relu(emb_dec_ref[sos_id:sos_id + 1, :])     # (1, H)
    gi_d = (jnp.dot(x_dec, wih_d_ref[...],
                    preferred_element_type=jnp.float32) + bih_d_ref[...])
    gir_d = gi_d[:, 0:G]
    giz_d = gi_d[:, G:2 * G]
    gin_d = gi_d[:, 2 * G:3 * G]

    whh_d = whh_d_ref[...]
    bhh_d = bhh_d_ref[...]

    hs = []                            # hiddens buffered in registers
    for _ in range(L):                 # fully unrolled; one matmul per step
        gh = jnp.dot(h, whh_d, preferred_element_type=jnp.float32) + bhh_d
        r = jax.nn.sigmoid(gir_d + gh[:, 0:G])
        z = jax.nn.sigmoid(giz_d + gh[:, G:2 * G])
        n = jnp.tanh(gin_d + r * gh[:, 2 * G:3 * G])
        h = (1.0 - z) * n + z * h
        hs.append(h)

    hs_pad = jnp.concatenate(hs, axis=0)                       # (L, G)
    hid_ref[...] = hs_pad[:, 0:H]                              # single slab write

    # ---- batched output projection / log-softmax / argmax (off the
    # recurrence: logits are never fed back) ---------------------------------
    logits = (jnp.dot(hs_pad, wout_ref[...],
                      preferred_element_type=jnp.float32) + bout_ref[...])
    m = jnp.max(logits, axis=-1, keepdims=True)
    s = logits - m
    lse = jnp.log(jnp.sum(jnp.exp(s), axis=-1, keepdims=True))
    logp = s - lse                                             # LogSoftmax(dim=2)
    logp_ref[...] = logp

    # argmax (first max index, like torch.max); single slab write
    mx = jnp.max(logp, axis=-1, keepdims=True)
    iota = lax.broadcasted_iota(jnp.int32, logp.shape, 1)
    cand = jnp.where(logp >= mx, iota, jnp.int32(2 ** 30))
    ids_ref[...] = jnp.min(cand, axis=-1, keepdims=True)


# ----------------------- weight preparation (once, at load) -----------------


def _gate_lane(h):                       # per-gate block width, 128-lane aligned
    return max(128, ((h + 127) // 128) * 128)


def _fuse_cols(w, lane):                 # (3,H,H) -> (H, 3*lane), [r|z|n] blocks
    H = w.shape[2]
    return jnp.concatenate(
        [jnp.pad(w[g], ((0, 0), (0, lane - H))) for g in range(3)], axis=1)


def _fuse_rows_cols(w, lane):            # hh path: rows also padded to `lane`
    H = w.shape[1]
    return jnp.pad(_fuse_cols(w, lane), ((0, lane - H), (0, 0)))


def _fuse_bias(b, lane):                 # (3,1,H) -> (1, 3*lane)
    H = b.shape[2]
    return jnp.concatenate(
        [jnp.pad(b[g], ((0, 0), (0, lane - H))) for g in range(3)], axis=1)


def prepare_weights(params):
    """One-time re-layout of model weights into the kernel's fused, lane-aligned
    form.  Call once at model-load time, not per forward."""
    H = params["hidden_size"]
    lane = _gate_lane(H)
    f32 = jnp.float32
    return dict(
        emb_enc=params["emb_enc"].astype(f32),
        emb_dec=params["emb_dec"].astype(f32),
        wih_e=_fuse_cols(params["wih_e"], lane).astype(f32),
        whh_e=_fuse_rows_cols(params["whh_e"], lane).astype(f32),
        bih_e=_fuse_bias(params["bih_e"], lane).astype(f32),
        bhh_e=_fuse_bias(params["bhh_e"], lane).astype(f32),
        wih_d=_fuse_cols(params["wih_d"], lane).astype(f32),
        whh_d=_fuse_rows_cols(params["whh_d"], lane).astype(f32),
        bih_d=_fuse_bias(params["bih_d"], lane).astype(f32),
        bhh_d=_fuse_bias(params["bhh_d"], lane).astype(f32),
        wout=jnp.pad(params["wout"], ((0, lane - H), (0, 0))).astype(f32),
        bout=params["bout"].astype(f32),
    )


# ----------------------------- jitted wrapper --------------------------------


@functools.partial(jax.jit, static_argnames=(
    "input_length", "hidden_size", "output_size", "max_length", "sos_id"))
def run_topic_seq2seq(tokens, weights, *, input_length, hidden_size,
                      output_size, max_length, sos_id):
    """tokens: (1, seq_len) int32; input_length: python int (<= seq_len)."""
    H, V, L = hidden_size, output_size, max_length
    tok = tokens[0, :input_length].astype(jnp.int32)            # (T,)

    vmem = pl.BlockSpec(memory_space=pltpu.MemorySpace.VMEM)
    smem = pl.BlockSpec(memory_space=pltpu.MemorySpace.SMEM)

    out_shapes = (
        jax.ShapeDtypeStruct((L, V), jnp.float32),   # log-probs
        jax.ShapeDtypeStruct((L, 1), jnp.int32),     # argmax ids
        jax.ShapeDtypeStruct((L, H), jnp.float32),   # hidden / step
    )

    kernel = functools.partial(seq2seq_kernel, sos_id=sos_id)

    logp, ids, hids = pl.pallas_call(
        kernel,
        out_shape=out_shapes,
        in_specs=[smem] + [vmem] * 12,
        out_specs=(vmem, vmem, vmem),
    )(tok,
      weights["emb_enc"], weights["emb_dec"],
      weights["wih_e"], weights["whh_e"], weights["bih_e"], weights["bhh_e"],
      weights["wih_d"], weights["whh_d"], weights["bih_d"], weights["bhh_d"],
      weights["wout"], weights["bout"])
    return logp, ids, hids


# pure-JAX reference (same math) for a correctness check ----------------------


def _ref_forward(tokens, input_length, params):
    H = params["hidden_size"]

    def cell(x, h, wih, whh, bih, bhh):
        r = jax.nn.sigmoid(x @ wih[0] + bih[0] + h @ whh[0] + bhh[0])
        z = jax.nn.sigmoid(x @ wih[1] + bih[1] + h @ whh[1] + bhh[1])
        n = jnp.tanh(x @ wih[2] + bih[2] + r * (h @ whh[2] + bhh[2]))
        return (1.0 - z) * n + z * h

    enc_x = params["emb_enc"][tokens[0]]
    h = jnp.zeros((1, H), jnp.float32)
    for t in range(input_length):
        h = cell(enc_x[t:t + 1], h, params["wih_e"], params["whh_e"],
                 params["bih_e"], params["bhh_e"])
    x_dec = jax.nn.relu(params["emb_dec"][params["sos_id"]])[None, :]
    logps = []
    for _ in range(params["max_length"]):
        h = cell(x_dec, h, params["wih_d"], params["whh_d"],
                 params["bih_d"], params["bhh_d"])
        logits = h @ params["wout"] + params["bout"]
        logps.append(jax.nn.log_softmax(logits, axis=-1))
    return jnp.concatenate(logps, axis=0)


# ----------------------------- main ------------------------------------------


if __name__ == "__main__":
    # module hyper-params (small, consistent with the forward pass)
    input_size, hidden_size, output_size = 20, 32, 16
    sos_id, eos_id, max_length = 0, 1, 6
    batch, seq_len, input_length = 1, 8, 8   # decoder semantics force batch=1

    key = jax.random.PRNGKey(0)
    ks = jax.random.split(key, 16)
    k = 1.0 / np.sqrt(hidden_size)

    def u(kk, shape):
        return jax.random.uniform(kk, shape, jnp.float32, -k, k)

    params = dict(
        hidden_size=hidden_size, output_size=output_size,
        sos_id=sos_id, eos_id=eos_id, max_length=max_length,
        emb_enc=jax.random.normal(ks[0], (input_size, hidden_size), jnp.float32),
        emb_dec=jax.random.normal(ks[1], (output_size, hidden_size), jnp.float32),
        # encoder GRU: stacked gate weights (3, H, H) in x@W form, biases (3,1,H)
        wih_e=u(ks[2], (3, hidden_size, hidden_size)),
        whh_e=u(ks[3], (3, hidden_size, hidden_size)),
        bih_e=u(ks[4], (3, 1, hidden_size)),
        bhh_e=u(ks[5], (3, 1, hidden_size)),
        # decoder GRU
        wih_d=u(ks[6], (3, hidden_size, hidden_size)),
        whh_d=u(ks[7], (3, hidden_size, hidden_size)),
        bih_d=u(ks[8], (3, 1, hidden_size)),
        bhh_d=u(ks[9], (3, 1, hidden_size)),
        # output Linear (x @ W + b)
        wout=u(ks[10], (hidden_size, output_size)),
        bout=u(ks[11], (1, output_size)),
    )

    tokens = jax.random.randint(ks[12], (batch, seq_len), 0, input_size,
                                dtype=jnp.int32)

    # one-time weight re-layout (model-load time), then a single jitted call
    weights = prepare_weights(params)
    logp, ids, hids = run_topic_seq2seq(
        tokens, weights, input_length=input_length, hidden_size=hidden_size,
        output_size=output_size, max_length=max_length, sos_id=sos_id)
    jax.block_until_ready((logp, ids, hids))

    # reproduce (sentence, hidden, decoder_output) with the eos early-stop
    ids_np = np.asarray(jax.device_get(ids))[:, 0]
    eos_hits = np.where(ids_np == eos_id)[0]
    n_steps = int(eos_hits[0]) + 1 if eos_hits.size > 0 else max_length
    sentence = [int(w) for w in ids_np[:n_steps]]
    hidden = hids[n_steps - 1].reshape(1, 1, hidden_size)          # (1,1,H)
    decoder_output = [logp[t].reshape(1, 1, output_size) for t in range(n_steps)]
    jax.block_until_ready((hidden, decoder_output))
    assert len(sentence) == len(decoder_output)

    # sanity check vs a pure-JAX reference of the same math
    ref_logp = _ref_forward(tokens, input_length, params)
    np.testing.assert_allclose(np.asarray(logp), np.asarray(ref_logp),
                               rtol=1e-4, atol=1e-4)

    print("KERNEL_OK")
</pallas_src>

<mosaic_0001>
module attributes {stable_mosaic.version = 11 : i64} {
  func.func @seq2seq_kernel(%arg0: memref<8xi32, #tpu.memory_space<smem>>, %arg1: memref<20x32xf32, #tpu.memory_space<vmem>>, %arg2: memref<16x32xf32, #tpu.memory_space<vmem>>, %arg3: memref<32x384xf32, #tpu.memory_space<vmem>>, %arg4: memref<128x384xf32, #tpu.memory_space<vmem>>, %arg5: memref<1x384xf32, #tpu.memory_space<vmem>>, %arg6: memref<1x384xf32, #tpu.memory_space<vmem>>, %arg7: memref<32x384xf32, #tpu.memory_space<vmem>>, %arg8: memref<128x384xf32, #tpu.memory_space<vmem>>, %arg9: memref<1x384xf32, #tpu.memory_space<vmem>>, %arg10: memref<1x384xf32, #tpu.memory_space<vmem>>, %arg11: memref<128x16xf32, #tpu.memory_space<vmem>>, %arg12: memref<1x16xf32, #tpu.memory_space<vmem>>, %arg13: memref<6x16xf32, #tpu.memory_space<vmem>>, %arg14: memref<6x1xi32, #tpu.memory_space<vmem>>, %arg15: memref<6x32xf32, #tpu.memory_space<vmem>>) attributes {dimension_semantics = [], scalar_prefetch = 0 : i64, scratch_operands = 0 : i64, tpu.core_type = #tpu.core_type<tc>} {
    %c0 = arith.constant 0 : index
    %0 = memref.load %arg0[%c0] : memref<8xi32, #tpu.memory_space<smem>>
    %1 = arith.index_cast %0 : i32 to index
    %c0_0 = arith.constant 0 : index
    %2 = vector.load %arg1[%1, %c0_0] : memref<20x32xf32, #tpu.memory_space<vmem>>, vector<1x32xf32>
    %c1 = arith.constant 1 : index
    %3 = memref.load %arg0[%c1] : memref<8xi32, #tpu.memory_space<smem>>
    %4 = arith.index_cast %3 : i32 to index
    %c0_1 = arith.constant 0 : index
    %5 = vector.load %arg1[%4, %c0_1] : memref<20x32xf32, #tpu.memory_space<vmem>>, vector<1x32xf32>
    %c2 = arith.constant 2 : index
    %6 = memref.load %arg0[%c2] : memref<8xi32, #tpu.memory_space<smem>>
    %7 = arith.index_cast %6 : i32 to index
    %c0_2 = arith.constant 0 : index
    %8 = vector.load %arg1[%7, %c0_2] : memref<20x32xf32, #tpu.memory_space<vmem>>, vector<1x32xf32>
    %c3 = arith.constant 3 : index
    %9 = memref.load %arg0[%c3] : memref<8xi32, #tpu.memory_space<smem>>
    %10 = arith.index_cast %9 : i32 to index
    %c0_3 = arith.constant 0 : index
    %11 = vector.load %arg1[%10, %c0_3] : memref<20x32xf32, #tpu.memory_space<vmem>>, vector<1x32xf32>
    %c4 = arith.constant 4 : index
    %12 = memref.load %arg0[%c4] : memref<8xi32, #tpu.memory_space<smem>>
    %13 = arith.index_cast %12 : i32 to index
    %c0_4 = arith.constant 0 : index
    %14 = vector.load %arg1[%13, %c0_4] : memref<20x32xf32, #tpu.memory_space<vmem>>, vector<1x32xf32>
    %c5 = arith.constant 5 : index
    %15 = memref.load %arg0[%c5] : memref<8xi32, #tpu.memory_space<smem>>
    %16 = arith.index_cast %15 : i32 to index
    %c0_5 = arith.constant 0 : index
    %17 = vector.load %arg1[%16, %c0_5] : memref<20x32xf32, #tpu.memory_space<vmem>>, vector<1x32xf32>
    %c6 = arith.constant 6 : index
    %18 = memref.load %arg0[%c6] : memref<8xi32, #tpu.memory_space<smem>>
    %19 = arith.index_cast %18 : i32 to index
    %c0_6 = arith.constant 0 : index
    %20 = vector.load %arg1[%19, %c0_6] : memref<20x32xf32, #tpu.memory_space<vmem>>, vector<1x32xf32>
    %c7 = arith.constant 7 : index
    %21 = memref.load %arg0[%c7] : memref<8xi32, #tpu.memory_space<smem>>
    %22 = arith.index_cast %21 : i32 to index
    %c0_7 = arith.constant 0 : index
    %23 = vector.load %arg1[%22, %c0_7] : memref<20x32xf32, #tpu.memory_space<vmem>>, vector<1x32xf32>
    %24 = tpu.concatenate %2, %5, %8, %11, %14, %17, %20, %23 in 0 : vector<1x32xf32>, vector<1x32xf32>, vector<1x32xf32>, vector<1x32xf32>, vector<1x32xf32>, vector<1x32xf32>, vector<1x32xf32>, vector<1x32xf32> -> vector<8x32xf32>
    %c0_8 = arith.constant 0 : index
    %c0_9 = arith.constant 0 : index
    %25 = vector.load %arg3[%c0_8, %c0_9] : memref<32x384xf32, #tpu.memory_space<vmem>>, vector<32x384xf32>
    %cst = arith.constant dense<0.000000e+00> : vector<8x384xf32>
    %26 = tpu.matmul %24, %25, %cst {dimension_numbers = #tpu.dot_dimension_numbers<[1], [0], [0], [1], [0, 0, 1, 1], [], []>} : vector<8x32xf32>, vector<32x384xf32>, vector<8x384xf32> -> vector<8x384xf32>
    %c0_10 = arith.constant 0 : index
    %c0_11 = arith.constant 0 : index
    %27 = vector.load %arg5[%c0_10, %c0_11] : memref<1x384xf32, #tpu.memory_space<vmem>>, vector<1x384xf32>
    %28 = vector.broadcast %27 : vector<1x384xf32> to vector<8x384xf32>
    %29 = arith.addf %26, %28 : vector<8x384xf32>
    %30 = vector.extract_strided_slice %29 {offsets = [0, 0], sizes = [8, 128], strides = [1, 1]} : vector<8x384xf32> to vector<8x128xf32>
    %31 = vector.extract_strided_slice %29 {offsets = [0, 128], sizes = [8, 128], strides = [1, 1]} : vector<8x384xf32> to vector<8x128xf32>
    %32 = vector.extract_strided_slice %29 {offsets = [0, 256], sizes = [8, 128], strides = [1, 1]} : vector<8x384xf32> to vector<8x128xf32>
    %c0_12 = arith.constant 0 : index
    %c0_13 = arith.constant 0 : index
    %33 = vector.load %arg4[%c0_12, %c0_13] : memref<128x384xf32, #tpu.memory_space<vmem>>, vector<128x384xf32>
    %c0_14 = arith.constant 0 : index
    %c0_15 = arith.constant 0 : index
    %34 = vector.load %arg6[%c0_14, %c0_15] : memref<1x384xf32, #tpu.memory_space<vmem>>, vector<1x384xf32>
    %cst_16 = arith.constant 0.000000e+00 : f32
    %35 = vector.broadcast %cst_16 : f32 to vector<1x128xf32>
    %cst_17 = arith.constant dense<0.000000e+00> : vector<1x384xf32>
    %36 = tpu.matmul %35, %33, %cst_17 {dimension_numbers = #tpu.dot_dimension_numbers<[1], [0], [0], [1], [0, 0, 1, 1], [], []>} : vector<1x128xf32>, vector<128x384xf32>, vector<1x384xf32> -> vector<1x384xf32>
    %37 = arith.addf %36, %34 : vector<1x384xf32>
    %38 = vector.extract_strided_slice %30 {offsets = [0, 0], sizes = [1, 128], strides = [1, 1]} : vector<8x128xf32> to vector<1x128xf32>
    %39 = vector.extract_strided_slice %37 {offsets = [0, 0], sizes = [1, 128], strides = [1, 1]} : vector<1x384xf32> to vector<1x128xf32>
    %40 = arith.addf %38, %39 : vector<1x128xf32>
    %41 = arith.negf %40 : vector<1x128xf32>
    %42 = math.exp %41 : vector<1x128xf32>
    %cst_18 = arith.constant 1.000000e+00 : f32
    %43 = vector.broadcast %cst_18 : f32 to vector<1x128xf32>
    %44 = arith.addf %43, %42 : vector<1x128xf32>
    %45 = arith.divf %43, %44 : vector<1x128xf32>
    %46 = vector.extract_strided_slice %31 {offsets = [0, 0], sizes = [1, 128], strides = [1, 1]} : vector<8x128xf32> to vector<1x128xf32>
    %47 = vector.extract_strided_slice %37 {offsets = [0, 128], sizes = [1, 128], strides = [1, 1]} : vector<1x384xf32> to vector<1x128xf32>
    %48 = arith.addf %46, %47 : vector<1x128xf32>
    %49 = arith.negf %48 : vector<1x128xf32>
    %50 = math.exp %49 : vector<1x128xf32>
    %cst_19 = arith.constant 1.000000e+00 : f32
    %51 = vector.broadcast %cst_19 : f32 to vector<1x128xf32>
    %52 = arith.addf %51, %50 : vector<1x128xf32>
    %53 = arith.divf %51, %52 : vector<1x128xf32>
    %54 = vector.extract_strided_slice %32 {offsets = [0, 0], sizes = [1, 128], strides = [1, 1]} : vector<8x128xf32> to vector<1x128xf32>
    %55 = vector.extract_strided_slice %37 {offsets = [0, 256], sizes = [1, 128], strides = [1, 1]} : vector<1x384xf32> to vector<1x128xf32>
    %56 = arith.mulf %45, %55 : vector<1x128xf32>
    %57 = arith.addf %54, %56 : vector<1x128xf32>
    %58 = math.tanh %57 : vector<1x128xf32>
    %cst_20 = arith.constant 1.000000e+00 : f32
    %59 = vector.broadcast %cst_20 : f32 to vector<1x128xf32>
    %60 = arith.subf %59, %53 : vector<1x128xf32>
    %61 = arith.mulf %60, %58 : vector<1x128xf32>
    %62 = arith.mulf %53, %35 : vector<1x128xf32>
    %63 = arith.addf %61, %62 : vector<1x128xf32>
    %cst_21 = arith.constant dense<0.000000e+00> : vector<1x384xf32>
    %64 = tpu.matmul %63, %33, %cst_21 {dimension_numbers = #tpu.dot_dimension_numbers<[1], [0], [0], [1], [0, 0, 1, 1], [], []>} : vector<1x128xf32>, vector<128x384xf32>, vector<1x384xf32> -> vector<1x384xf32>
    %65 = arith.addf %64, %34 : vector<1x384xf32>
    %66 = vector.extract_strided_slice %30 {offsets = [1, 0], sizes = [1, 128], strides = [1, 1]} : vector<8x128xf32> to vector<1x128xf32>
    %67 = vector.extract_strided_slice %65 {offsets = [0, 0], sizes = [1, 128], strides = [1, 1]} : vector<1x384xf32> to vector<1x128xf32>
    %68 = arith.addf %66, %67 : vector<1x128xf32>
    %69 = arith.negf %68 : vector<1x128xf32>
    %70 = math.exp %69 : vector<1x128xf32>
    %cst_22 = arith.constant 1.000000e+00 : f32
    %71 = vector.broadcast %cst_22 : f32 to vector<1x128xf32>
    %72 = arith.addf %71, %70 : vector<1x128xf32>
    %73 = arith.divf %71, %72 : vector<1x128xf32>
    %74 = vector.extract_strided_slice %31 {offsets = [1, 0], sizes = [1, 128], strides = [1, 1]} : vector<8x128xf32> to vector<1x128xf32>
    %75 = vector.extract_strided_slice %65 {offsets = [0, 128], sizes = [1, 128], strides = [1, 1]} : vector<1x384xf32> to vector<1x128xf32>
    %76 = arith.addf %74, %75 : vector<1x128xf32>
    %77 = arith.negf %76 : vector<1x128xf32>
    %78 = math.exp %77 : vector<1x128xf32>
    %cst_23 = arith.constant 1.000000e+00 : f32
    %79 = vector.broadcast %cst_23 : f32 to vector<1x128xf32>
    %80 = arith.addf %79, %78 : vector<1x128xf32>
    %81 = arith.divf %79, %80 : vector<1x128xf32>
    %82 = vector.extract_strided_slice %32 {offsets = [1, 0], sizes = [1, 128], strides = [1, 1]} : vector<8x128xf32> to vector<1x128xf32>
    %83 = vector.extract_strided_slice %65 {offsets = [0, 256], sizes = [1, 128], strides = [1, 1]} : vector<1x384xf32> to vector<1x128xf32>
    %84 = arith.mulf %73, %83 : vector<1x128xf32>
    %85 = arith.addf %82, %84 : vector<1x128xf32>
    %86 = math.tanh %85 : vector<1x128xf32>
    %cst_24 = arith.constant 1.000000e+00 : f32
    %87 = vector.broadcast %cst_24 : f32 to vector<1x128xf32>
    %88 = arith.subf %87, %81 : vector<1x128xf32>
    %89 = arith.mulf %88, %86 : vector<1x128xf32>
    %90 = arith.mulf %81, %63 : vector<1x128xf32>
    %91 = arith.addf %89, %90 : vector<1x128xf32>
    %cst_25 = arith.constant dense<0.000000e+00> : vector<1x384xf32>
    %92 = tpu.matmul %91, %33, %cst_25 {dimension_numbers = #tpu.dot_dimension_numbers<[1], [0], [0], [1], [0, 0, 1, 1], [], []>} : vector<1x128xf32>, vector<128x384xf32>, vector<1x384xf32> -> vector<1x384xf32>
    %93 = arith.addf %92, %34 : vector<1x384xf32>
    %94 = vector.extract_strided_slice %30 {offsets = [2, 0], sizes = [1, 128], strides = [1, 1]} : vector<8x128xf32> to vector<1x128xf32>
    %95 = vector.extract_strided_slice %93 {offsets = [0, 0], sizes = [1, 128], strides = [1, 1]} : vector<1x384xf32> to vector<1x128xf32>
    %96 = arith.addf %94, %95 : vector<1x128xf32>
    %97 = arith.negf %96 : vector<1x128xf32>
    %98 = math.exp %97 : vector<1x128xf32>
    %cst_26 = arith.constant 1.000000e+00 : f32
    %99 = vector.broadcast %cst_26 : f32 to vector<1x128xf32>
    %100 = arith.addf %99, %98 : vector<1x128xf32>
    %101 = arith.divf %99, %100 : vector<1x128xf32>
    %102 = vector.extract_strided_slice %31 {offsets = [2, 0], sizes = [1, 128], strides = [1, 1]} : vector<8x128xf32> to vector<1x128xf32>
    %103 = vector.extract_strided_slice %93 {offsets = [0, 128], sizes = [1, 128], strides = [1, 1]} : vector<1x384xf32> to vector<1x128xf32>
    %104 = arith.addf %102, %103 : vector<1x128xf32>
    %105 = arith.negf %104 : vector<1x128xf32>
    %106 = math.exp %105 : vector<1x128xf32>
    %cst_27 = arith.constant 1.000000e+00 : f32
    %107 = vector.broadcast %cst_27 : f32 to vector<1x128xf32>
    %108 = arith.addf %107, %106 : vector<1x128xf32>
    %109 = arith.divf %107, %108 : vector<1x128xf32>
    %110 = vector.extract_strided_slice %32 {offsets = [2, 0], sizes = [1, 128], strides = [1, 1]} : vector<8x128xf32> to vector<1x128xf32>
    %111 = vector.extract_strided_slice %93 {offsets = [0, 256], sizes = [1, 128], strides = [1, 1]} : vector<1x384xf32> to vector<1x128xf32>
    %112 = arith.mulf %101, %111 : vector<1x128xf32>
    %113 = arith.addf %110, %112 : vector<1x128xf32>
    %114 = math.tanh %113 : vector<1x128xf32>
    %cst_28 = arith.constant 1.000000e+00 : f32
    %115 = vector.broadcast %cst_28 : f32 to vector<1x128xf32>
    %116 = arith.subf %115, %109 : vector<1x128xf32>
    %117 = arith.mulf %116, %114 : vector<1x128xf32>
    %118 = arith.mulf %109, %91 : vector<1x128xf32>
    %119 = arith.addf %117, %118 : vector<1x128xf32>
    %cst_29 = arith.constant dense<0.000000e+00> : vector<1x384xf32>
    %120 = tpu.matmul %119, %33, %cst_29 {dimension_numbers = #tpu.dot_dimension_numbers<[1], [0], [0], [1], [0, 0, 1, 1], [], []>} : vector<1x128xf32>, vector<128x384xf32>, vector<1x384xf32> -> vector<1x384xf32>
    %121 = arith.addf %120, %34 : vector<1x384xf32>
    %122 = vector.extract_strided_slice %30 {offsets = [3, 0], sizes = [1, 128], strides = [1, 1]} : vector<8x128xf32> to vector<1x128xf32>
    %123 = vector.extract_strided_slice %121 {offsets = [0, 0], sizes = [1, 128], strides = [1, 1]} : vector<1x384xf32> to vector<1x128xf32>
    %124 = arith.addf %122, %123 : vector<1x128xf32>
    %125 = arith.negf %124 : vector<1x128xf32>
    %126 = math.exp %125 : vector<1x128xf32>
    %cst_30 = arith.constant 1.000000e+00 : f32
    %127 = vector.broadcast %cst_30 : f32 to vector<1x128xf32>
    %128 = arith.addf %127, %126 : vector<1x128xf32>
    %129 = arith.divf %127, %128 : vector<1x128xf32>
    %130 = vector.extract_strided_slice %31 {offsets = [3, 0], sizes = [1, 128], strides = [1, 1]} : vector<8x128xf32> to vector<1x128xf32>
    %131 = vector.extract_strided_slice %121 {offsets = [0, 128], sizes = [1, 128], strides = [1, 1]} : vector<1x384xf32> to vector<1x128xf32>
    %132 = arith.addf %130, %131 : vector<1x128xf32>
    %133 = arith.negf %132 : vector<1x128xf32>
    %134 = math.exp %133 : vector<1x128xf32>
    %cst_31 = arith.constant 1.000000e+00 : f32
    %135 = vector.broadcast %cst_31 : f32 to vector<1x128xf32>
    %136 = arith.addf %135, %134 : vector<1x128xf32>
    %137 = arith.divf %135, %136 : vector<1x128xf32>
    %138 = vector.extract_strided_slice %32 {offsets = [3, 0], sizes = [1, 128], strides = [1, 1]} : vector<8x128xf32> to vector<1x128xf32>
    %139 = vector.extract_strided_slice %121 {offsets = [0, 256], sizes = [1, 128], strides = [1, 1]} : vector<1x384xf32> to vector<1x128xf32>
    %140 = arith.mulf %129, %139 : vector<1x128xf32>
    %141 = arith.addf %138, %140 : vector<1x128xf32>
    %142 = math.tanh %141 : vector<1x128xf32>
    %cst_32 = arith.constant 1.000000e+00 : f32
    %143 = vector.broadcast %cst_32 : f32 to vector<1x128xf32>
    %144 = arith.subf %143, %137 : vector<1x128xf32>
    %145 = arith.mulf %144, %142 : vector<1x128xf32>
    %146 = arith.mulf %137, %119 : vector<1x128xf32>
    %147 = arith.addf %145, %146 : vector<1x128xf32>
    %cst_33 = arith.constant dense<0.000000e+00> : vector<1x384xf32>
    %148 = tpu.matmul %147, %33, %cst_33 {dimension_numbers = #tpu.dot_dimension_numbers<[1], [0], [0], [1], [0, 0, 1, 1], [], []>} : vector<1x128xf32>, vector<128x384xf32>, vector<1x384xf32> -> vector<1x384xf32>
    %149 = arith.addf %148, %34 : vector<1x384xf32>
    %150 = vector.extract_strided_slice %30 {offsets = [4, 0], sizes = [1, 128], strides = [1, 1]} : vector<8x128xf32> to vector<1x128xf32>
    %151 = vector.extract_strided_slice %149 {offsets = [0, 0], sizes = [1, 128], strides = [1, 1]} : vector<1x384xf32> to vector<1x128xf32>
    %152 = arith.addf %150, %151 : vector<1x128xf32>
    %153 = arith.negf %152 : vector<1x128xf32>
    %154 = math.exp %153 : vector<1x128xf32>
    %cst_34 = arith.constant 1.000000e+00 : f32
    %155 = vector.broadcast %cst_34 : f32 to vector<1x128xf32>
    %156 = arith.addf %155, %154 : vector<1x128xf32>
    %157 = arith.divf %155, %156 : vector<1x128xf32>
    %158 = vector.extract_strided_slice %31 {offsets = [4, 0], sizes = [1, 128], strides = [1, 1]} : vector<8x128xf32> to vector<1x128xf32>
    %159 = vector.extract_strided_slice %149 {offsets = [0, 128], sizes = [1, 128], strides = [1, 1]} : vector<1x384xf32> to vector<1x128xf32>
    %160 = arith.addf %158, %159 : vector<1x128xf32>
    %161 = arith.negf %160 : vector<1x128xf32>
    %162 = math.exp %161 : vector<1x128xf32>
    %cst_35 = arith.constant 1.000000e+00 : f32
    %163 = vector.broadcast %cst_35 : f32 to vector<1x128xf32>
    %164 = arith.addf %163, %162 : vector<1x128xf32>
    %165 = arith.divf %163, %164 : vector<1x128xf32>
    %166 = vector.extract_strided_slice %32 {offsets = [4, 0], sizes = [1, 128], strides = [1, 1]} : vector<8x128xf32> to vector<1x128xf32>
    %167 = vector.extract_strided_slice %149 {offsets = [0, 256], sizes = [1, 128], strides = [1, 1]} : vector<1x384xf32> to vector<1x128xf32>
    %168 = arith.mulf %157, %167 : vector<1x128xf32>
    %169 = arith.addf %166, %168 : vector<1x128xf32>
    %170 = math.tanh %169 : vector<1x128xf32>
    %cst_36 = arith.constant 1.000000e+00 : f32
    %171 = vector.broadcast %cst_36 : f32 to vector<1x128xf32>
    %172 = arith.subf %171, %165 : vector<1x128xf32>
    %173 = arith.mulf %172, %170 : vector<1x128xf32>
    %174 = arith.mulf %165, %147 : vector<1x128xf32>
    %175 = arith.addf %173, %174 : vector<1x128xf32>
    %cst_37 = arith.constant dense<0.000000e+00> : vector<1x384xf32>
    %176 = tpu.matmul %175, %33, %cst_37 {dimension_numbers = #tpu.dot_dimension_numbers<[1], [0], [0], [1], [0, 0, 1, 1], [], []>} : vector<1x128xf32>, vector<128x384xf32>, vector<1x384xf32> -> vector<1x384xf32>
    %177 = arith.addf %176, %34 : vector<1x384xf32>
    %178 = vector.extract_strided_slice %30 {offsets = [5, 0], sizes = [1, 128], strides = [1, 1]} : vector<8x128xf32> to vector<1x128xf32>
    %179 = vector.extract_strided_slice %177 {offsets = [0, 0], sizes = [1, 128], strides = [1, 1]} : vector<1x384xf32> to vector<1x128xf32>
    %180 = arith.addf %178, %179 : vector<1x128xf32>
    %181 = arith.negf %180 : vector<1x128xf32>
    %182 = math.exp %181 : vector<1x128xf32>
    %cst_38 = arith.constant 1.000000e+00 : f32
    %183 = vector.broadcast %cst_38 : f32 to vector<1x128xf32>
    %184 = arith.addf %183, %182 : vector<1x128xf32>
    %185 = arith.divf %183, %184 : vector<1x128xf32>
    %186 = vector.extract_strided_slice %31 {offsets = [5, 0], sizes = [1, 128], strides = [1, 1]} : vector<8x128xf32> to vector<1x128xf32>
    %187 = vector.extract_strided_slice %177 {offsets = [0, 128], sizes = [1, 128], strides = [1, 1]} : vector<1x384xf32> to vector<1x128xf32>
    %188 = arith.addf %186, %187 : vector<1x128xf32>
    %189 = arith.negf %188 : vector<1x128xf32>
    %190 = math.exp %189 : vector<1x128xf32>
    %cst_39 = arith.constant 1.000000e+00 : f32
    %191 = vector.broadcast %cst_39 : f32 to vector<1x128xf32>
    %192 = arith.addf %191, %190 : vector<1x128xf32>
    %193 = arith.divf %191, %192 : vector<1x128xf32>
    %194 = vector.extract_strided_slice %32 {offsets = [5, 0], sizes = [1, 128], strides = [1, 1]} : vector<8x128xf32> to vector<1x128xf32>
    %195 = vector.extract_strided_slice %177 {offsets = [0, 256], sizes = [1, 128], strides = [1, 1]} : vector<1x384xf32> to vector<1x128xf32>
    %196 = arith.mulf %185, %195 : vector<1x128xf32>
    %197 = arith.addf %194, %196 : vector<1x128xf32>
    %198 = math.tanh %197 : vector<1x128xf32>
    %cst_40 = arith.constant 1.000000e+00 : f32
    %199 = vector.broadcast %cst_40 : f32 to vector<1x128xf32>
    %200 = arith.subf %199, %193 : vector<1x128xf32>
    %201 = arith.mulf %200, %198 : vector<1x128xf32>
    %202 = arith.mulf %193, %175 : vector<1x128xf32>
    %203 = arith.addf %201, %202 : vector<1x128xf32>
    %cst_41 = arith.constant dense<0.000000e+00> : vector<1x384xf32>
    %204 = tpu.matmul %203, %33, %cst_41 {dimension_numbers = #tpu.dot_dimension_numbers<[1], [0], [0], [1], [0, 0, 1, 1], [], []>} : vector<1x128xf32>, vector<128x384xf32>, vector<1x384xf32> -> vector<1x384xf32>
    %205 = arith.addf %204, %34 : vector<1x384xf32>
    %206 = vector.extract_strided_slice %30 {offsets = [6, 0], sizes = [1, 128], strides = [1, 1]} : vector<8x128xf32> to vector<1x128xf32>
    %207 = vector.extract_strided_slice %205 {offsets = [0, 0], sizes = [1, 128], strides = [1, 1]} : vector<1x384xf32> to vector<1x128xf32>
    %208 = arith.addf %206, %207 : vector<1x128xf32>
    %209 = arith.negf %208 : vector<1x128xf32>
    %210 = math.exp %209 : vector<1x128xf32>
    %cst_42 = arith.constant 1.000000e+00 : f32
    %211 = vector.broadcast %cst_42 : f32 to vector<1x128xf32>
    %212 = arith.addf %211, %210 : vector<1x128xf32>
    %213 = arith.divf %211, %212 : vector<1x128xf32>
    %214 = vector.extract_strided_slice %31 {offsets = [6, 0], sizes = [1, 128], strides = [1, 1]} : vector<8x128xf32> to vector<1x128xf32>
    %215 = vector.extract_strided_slice %205 {offsets = [0, 128], sizes = [1, 128], strides = [1, 1]} : vector<1x384xf32> to vector<1x128xf32>
    %216 = arith.addf %214, %215 : vector<1x128xf32>
    %217 = arith.negf %216 : vector<1x128xf32>
    %218 = math.exp %217 : vector<1x128xf32>
    %cst_43 = arith.constant 1.000000e+00 : f32
    %219 = vector.broadcast %cst_43 : f32 to vector<1x128xf32>
    %220 = arith.addf %219, %218 : vector<1x128xf32>
    %221 = arith.divf %219, %220 : vector<1x128xf32>
    %222 = vector.extract_strided_slice %32 {offsets = [6, 0], sizes = [1, 128], strides = [1, 1]} : vector<8x128xf32> to vector<1x128xf32>
    %223 = vector.extract_strided_slice %205 {offsets = [0, 256], sizes = [1, 128], strides = [1, 1]} : vector<1x384xf32> to vector<1x128xf32>
    %224 = arith.mulf %213, %223 : vector<1x128xf32>
    %225 = arith.addf %222, %224 : vector<1x128xf32>
    %226 = math.tanh %225 : vector<1x128xf32>
    %cst_44 = arith.constant 1.000000e+00 : f32
    %227 = vector.broadcast %cst_44 : f32 to vector<1x128xf32>
    %228 = arith.subf %227, %221 : vector<1x128xf32>
    %229 = arith.mulf %228, %226 : vector<1x128xf32>
    %230 = arith.mulf %221, %203 : vector<1x128xf32>
    %231 = arith.addf %229, %230 : vector<1x128xf32>
    %cst_45 = arith.constant dense<0.000000e+00> : vector<1x384xf32>
    %232 = tpu.matmul %231, %33, %cst_45 {dimension_numbers = #tpu.dot_dimension_numbers<[1], [0], [0], [1], [0, 0, 1, 1], [], []>} : vector<1x128xf32>, vector<128x384xf32>, vector<1x384xf32> -> vector<1x384xf32>
    %233 = arith.addf %232, %34 : vector<1x384xf32>
    %234 = vector.extract_strided_slice %30 {offsets = [7, 0], sizes = [1, 128], strides = [1, 1]} : vector<8x128xf32> to vector<1x128xf32>
    %235 = vector.extract_strided_slice %233 {offsets = [0, 0], sizes = [1, 128], strides = [1, 1]} : vector<1x384xf32> to vector<1x128xf32>
    %236 = arith.addf %234, %235 : vector<1x128xf32>
    %237 = arith.negf %236 : vector<1x128xf32>
    %238 = math.exp %237 : vector<1x128xf32>
    %cst_46 = arith.constant 1.000000e+00 : f32
    %239 = vector.broadcast %cst_46 : f32 to vector<1x128xf32>
    %240 = arith.addf %239, %238 : vector<1x128xf32>
    %241 = arith.divf %239, %240 : vector<1x128xf32>
    %242 = vector.extract_strided_slice %31 {offsets = [7, 0], sizes = [1, 128], strides = [1, 1]} : vector<8x128xf32> to vector<1x128xf32>
    %243 = vector.extract_strided_slice %233 {offsets = [0, 128], sizes = [1, 128], strides = [1, 1]} : vector<1x384xf32> to vector<1x128xf32>
    %244 = arith.addf %242, %243 : vector<1x128xf32>
    %245 = arith.negf %244 : vector<1x128xf32>
    %246 = math.exp %245 : vector<1x128xf32>
    %cst_47 = arith.constant 1.000000e+00 : f32
    %247 = vector.broadcast %cst_47 : f32 to vector<1x128xf32>
    %248 = arith.addf %247, %246 : vector<1x128xf32>
    %249 = arith.divf %247, %248 : vector<1x128xf32>
    %250 = vector.extract_strided_slice %32 {offsets = [7, 0], sizes = [1, 128], strides = [1, 1]} : vector<8x128xf32> to vector<1x128xf32>
    %251 = vector.extract_strided_slice %233 {offsets = [0, 256], sizes = [1, 128], strides = [1, 1]} : vector<1x384xf32> to vector<1x128xf32>
    %252 = arith.mulf %241, %251 : vector<1x128xf32>
    %253 = arith.addf %250, %252 : vector<1x128xf32>
    %254 = math.tanh %253 : vector<1x128xf32>
    %cst_48 = arith.constant 1.000000e+00 : f32
    %255 = vector.broadcast %cst_48 : f32 to vector<1x128xf32>
    %256 = arith.subf %255, %249 : vector<1x128xf32>
    %257 = arith.mulf %256, %254 : vector<1x128xf32>
    %258 = arith.mulf %249, %231 : vector<1x128xf32>
    %259 = arith.addf %257, %258 : vector<1x128xf32>
    %c0_49 = arith.constant 0 : index
    %c0_50 = arith.constant 0 : index
    %260 = vector.load %arg2[%c0_49, %c0_50] : memref<16x32xf32, #tpu.memory_space<vmem>>, vector<1x32xf32>
    %cst_51 = arith.constant 0.000000e+00 : f32
    %261 = vector.broadcast %cst_51 : f32 to vector<1x32xf32>
    %262 = arith.maximumf %260, %261 : vector<1x32xf32>
    %c0_52 = arith.constant 0 : index
    %c0_53 = arith.constant 0 : index
    %263 = vector.load %arg7[%c0_52, %c0_53] : memref<32x384xf32, #tpu.memory_space<vmem>>, vector<32x384xf32>
    %cst_54 = arith.constant dense<0.000000e+00> : vector<1x384xf32>
    %264 = tpu.matmul %262, %263, %cst_54 {dimension_numbers = #tpu.dot_dimension_numbers<[1], [0], [0], [1], [0, 0, 1, 1], [], []>} : vector<1x32xf32>, vector<32x384xf32>, vector<1x384xf32> -> vector<1x384xf32>
    %c0_55 = arith.constant 0 : index
    %c0_56 = arith.constant 0 : index
    %265 = vector.load %arg9[%c0_55, %c0_56] : memref<1x384xf32, #tpu.memory_space<vmem>>, vector<1x384xf32>
    %266 = arith.addf %264, %265 : vector<1x384xf32>
    %267 = vector.extract_strided_slice %266 {offsets = [0, 0], sizes = [1, 128], strides = [1, 1]} : vector<1x384xf32> to vector<1x128xf32>
    %268 = vector.extract_strided_slice %266 {offsets = [0, 128], sizes = [1, 128], strides = [1, 1]} : vector<1x384xf32> to vector<1x128xf32>
    %269 = vector.extract_strided_slice %266 {offsets = [0, 256], sizes = [1, 128], strides = [1, 1]} : vector<1x384xf32> to vector<1x128xf32>
    %c0_57 = arith.constant 0 : index
    %c0_58 = arith.constant 0 : index
    %270 = vector.load %arg8[%c0_57, %c0_58] : memref<128x384xf32, #tpu.memory_space<vmem>>, vector<128x384xf32>
    %c0_59 = arith.constant 0 : index
    %c0_60 = arith.constant 0 : index
    %271 = vector.load %arg10[%c0_59, %c0_60] : memref<1x384xf32, #tpu.memory_space<vmem>>, vector<1x384xf32>
    %cst_61 = arith.constant dense<0.000000e+00> : vector<1x384xf32>
    %272 = tpu.matmul %259, %270, %cst_61 {dimension_numbers = #tpu.dot_dimension_numbers<[1], [0], [0], [1], [0, 0, 1, 1], [], []>} : vector<1x128xf32>, vector<128x384xf32>, vector<1x384xf32> -> vector<1x384xf32>
    %273 = arith.addf %272, %271 : vector<1x384xf32>
    %274 = vector.extract_strided_slice %273 {offsets = [0, 0], sizes = [1, 128], strides = [1, 1]} : vector<1x384xf32> to vector<1x128xf32>
    %275 = arith.addf %267, %274 : vector<1x128xf32>
    %276 = arith.negf %275 : vector<1x128xf32>
    %277 = math.exp %276 : vector<1x128xf32>
    %cst_62 = arith.constant 1.000000e+00 : f32
    %278 = vector.broadcast %cst_62 : f32 to vector<1x128xf32>
    %279 = arith.addf %278, %277 : vector<1x128xf32>
    %280 = arith.divf %278, %279 : vector<1x128xf32>
    %281 = vector.extract_strided_slice %273 {offsets = [0, 128], sizes = [1, 128], strides = [1, 1]} : vector<1x384xf32> to vector<1x128xf32>
    %282 = arith.addf %268, %281 : vector<1x128xf32>
    %283 = arith.negf %282 : vector<1x128xf32>
    %284 = math.exp %283 : vector<1x128xf32>
    %cst_63 = arith.constant 1.000000e+00 : f32
    %285 = vector.broadcast %cst_63 : f32 to vector<1x128xf32>
    %286 = arith.addf %285, %284 : vector<1x128xf32>
    %287 = arith.divf %285, %286 : vector<1x128xf32>
    %288 = vector.extract_strided_slice %273 {offsets = [0, 256], sizes = [1, 128], strides = [1, 1]} : vector<1x384xf32> to vector<1x128xf32>
    %289 = arith.mulf %280, %288 : vector<1x128xf32>
    %290 = arith.addf %269, %289 : vector<1x128xf32>
    %291 = math.tanh %290 : vector<1x128xf32>
    %cst_64 = arith.constant 1.000000e+00 : f32
    %292 = vector.broadcast %cst_64 : f32 to vector<1x128xf32>
    %293 = arith.subf %292, %287 : vector<1x128xf32>
    %294 = arith.mulf %293, %291 : vector<1x128xf32>
    %295 = arith.mulf %287, %259 : vector<1x128xf32>
    %296 = arith.addf %294, %295 : vector<1x128xf32>
    %cst_65 = arith.constant dense<0.000000e+00> : vector<1x384xf32>
    %297 = tpu.matmul %296, %270, %cst_65 {dimension_numbers = #tpu.dot_dimension_numbers<[1], [0], [0], [1], [0, 0, 1, 1], [], []>} : vector<1x128xf32>, vector<128x384xf32>, vector<1x384xf32> -> vector<1x384xf32>
    %298 = arith.addf %297, %271 : vector<1x384xf32>
    %299 = vector.extract_strided_slice %298 {offsets = [0, 0], sizes = [1, 128], strides = [1, 1]} : vector<1x384xf32> to vector<1x128xf32>
    %300 = arith.addf %267, %299 : vector<1x128xf32>
    %301 = arith.negf %300 : vector<1x128xf32>
    %302 = math.exp %301 : vector<1x128xf32>
    %cst_66 = arith.constant 1.000000e+00 : f32
    %303 = vector.broadcast %cst_66 : f32 to vector<1x128xf32>
    %304 = arith.addf %303, %302 : vector<1x128xf32>
    %305 = arith.divf %303, %304 : vector<1x128xf32>
    %306 = vector.extract_strided_slice %298 {offsets = [0, 128], sizes = [1, 128], strides = [1, 1]} : vector<1x384xf32> to vector<1x128xf32>
    %307 = arith.addf %268, %306 : vector<1x128xf32>
    %308 = arith.negf %307 : vector<1x128xf32>
    %309 = math.exp %308 : vector<1x128xf32>
    %cst_67 = arith.constant 1.000000e+00 : f32
    %310 = vector.broadcast %cst_67 : f32 to vector<1x128xf32>
    %311 = arith.addf %310, %309 : vector<1x128xf32>
    %312 = arith.divf %310, %311 : vector<1x128xf32>
    %313 = vector.extract_strided_slice %298 {offsets = [0, 256], sizes = [1, 128], strides = [1, 1]} : vector<1x384xf32> to vector<1x128xf32>
    %314 = arith.mulf %305, %313 : vector<1x128xf32>
    %315 = arith.addf %269, %314 : vector<1x128xf32>
    %316 = math.tanh %315 : vector<1x128xf32>
    %cst_68 = arith.constant 1.000000e+00 : f32
    %317 = vector.broadcast %cst_68 : f32 to vector<1x128xf32>
    %318 = arith.subf %317, %312 : vector<1x128xf32>
    %319 = arith.mulf %318, %316 : vector<1x128xf32>
    %320 = arith.mulf %312, %296 : vector<1x128xf32>
    %321 = arith.addf %319, %320 : vector<1x128xf32>
    %cst_69 = arith.constant dense<0.000000e+00> : vector<1x384xf32>
    %322 = tpu.matmul %321, %270, %cst_69 {dimension_numbers = #tpu.dot_dimension_numbers<[1], [0], [0], [1], [0, 0, 1, 1], [], []>} : vector<1x128xf32>, vector<128x384xf32>, vector<1x384xf32> -> vector<1x384xf32>
    %323 = arith.addf %322, %271 : vector<1x384xf32>
    %324 = vector.extract_strided_slice %323 {offsets = [0, 0], sizes = [1, 128], strides = [1, 1]} : vector<1x384xf32> to vector<1x128xf32>
    %325 = arith.addf %267, %324 : vector<1x128xf32>
    %326 = arith.negf %325 : vector<1x128xf32>
    %327 = math.exp %326 : vector<1x128xf32>
    %cst_70 = arith.constant 1.000000e+00 : f32
    %328 = vector.broadcast %cst_70 : f32 to vector<1x128xf32>
    %329 = arith.addf %328, %327 : vector<1x128xf32>
    %330 = arith.divf %328, %329 : vector<1x128xf32>
    %331 = vector.extract_strided_slice %323 {offsets = [0, 128], sizes = [1, 128], strides = [1, 1]} : vector<1x384xf32> to vector<1x128xf32>
    %332 = arith.addf %268, %331 : vector<1x128xf32>
    %333 = arith.negf %332 : vector<1x128xf32>
    %334 = math.exp %333 : vector<1x128xf32>
    %cst_71 = arith.constant 1.000000e+00 : f32
    %335 = vector.broadcast %cst_71 : f32 to vector<1x128xf32>
    %336 = arith.addf %335, %334 : vector<1x128xf32>
    %337 = arith.divf %335, %336 : vector<1x128xf32>
    %338 = vector.extract_strided_slice %323 {offsets = [0, 256], sizes = [1, 128], strides = [1, 1]} : vector<1x384xf32> to vector<1x128xf32>
    %339 = arith.mulf %330, %338 : vector<1x128xf32>
    %340 = arith.addf %269, %339 : vector<1x128xf32>
    %341 = math.tanh %340 : vector<1x128xf32>
    %cst_72 = arith.constant 1.000000e+00 : f32
    %342 = vector.broadcast %cst_72 : f32 to vector<1x128xf32>
    %343 = arith.subf %342, %337 : vector<1x128xf32>
    %344 = arith.mulf %343, %341 : vector<1x128xf32>
    %345 = arith.mulf %337, %321 : vector<1x128xf32>
    %346 = arith.addf %344, %345 : vector<1x128xf32>
    %cst_73 = arith.constant dense<0.000000e+00> : vector<1x384xf32>
    %347 = tpu.matmul %346, %270, %cst_73 {dimension_numbers = #tpu.dot_dimension_numbers<[1], [0], [0], [1], [0, 0, 1, 1], [], []>} : vector<1x128xf32>, vector<128x384xf32>, vector<1x384xf32> -> vector<1x384xf32>
    %348 = arith.addf %347, %271 : vector<1x384xf32>
    %349 = vector.extract_strided_slice %348 {offsets = [0, 0], sizes = [1, 128], strides = [1, 1]} : vector<1x384xf32> to vector<1x128xf32>
    %350 = arith.addf %267, %349 : vector<1x128xf32>
    %351 = arith.negf %350 : vector<1x128xf32>
    %352 = math.exp %351 : vector<1x128xf32>
    %cst_74 = arith.constant 1.000000e+00 : f32
    %353 = vector.broadcast %cst_74 : f32 to vector<1x128xf32>
    %354 = arith.addf %353, %352 : vector<1x128xf32>
    %355 = arith.divf %353, %354 : vector<1x128xf32>
    %356 = vector.extract_strided_slice %348 {offsets = [0, 128], sizes = [1, 128], strides = [1, 1]} : vector<1x384xf32> to vector<1x128xf32>
    %357 = arith.addf %268, %356 : vector<1x128xf32>
    %358 = arith.negf %357 : vector<1x128xf32>
    %359 = math.exp %358 : vector<1x128xf32>
    %cst_75 = arith.constant 1.000000e+00 : f32
    %360 = vector.broadcast %cst_75 : f32 to vector<1x128xf32>
    %361 = arith.addf %360, %359 : vector<1x128xf32>
    %362 = arith.divf %360, %361 : vector<1x128xf32>
    %363 = vector.extract_strided_slice %348 {offsets = [0, 256], sizes = [1, 128], strides = [1, 1]} : vector<1x384xf32> to vector<1x128xf32>
    %364 = arith.mulf %355, %363 : vector<1x128xf32>
    %365 = arith.addf %269, %364 : vector<1x128xf32>
    %366 = math.tanh %365 : vector<1x128xf32>
    %cst_76 = arith.constant 1.000000e+00 : f32
    %367 = vector.broadcast %cst_76 : f32 to vector<1x128xf32>
    %368 = arith.subf %367, %362 : vector<1x128xf32>
    %369 = arith.mulf %368, %366 : vector<1x128xf32>
    %370 = arith.mulf %362, %346 : vector<1x128xf32>
    %371 = arith.addf %369, %370 : vector<1x128xf32>
    %cst_77 = arith.constant dense<0.000000e+00> : vector<1x384xf32>
    %372 = tpu.matmul %371, %270, %cst_77 {dimension_numbers = #tpu.dot_dimension_numbers<[1], [0], [0], [1], [0, 0, 1, 1], [], []>} : vector<1x128xf32>, vector<128x384xf32>, vector<1x384xf32> -> vector<1x384xf32>
    %373 = arith.addf %372, %271 : vector<1x384xf32>
    %374 = vector.extract_strided_slice %373 {offsets = [0, 0], sizes = [1, 128], strides = [1, 1]} : vector<1x384xf32> to vector<1x128xf32>
    %375 = arith.addf %267, %374 : vector<1x128xf32>
    %376 = arith.negf %375 : vector<1x128xf32>
    %377 = math.exp %376 : vector<1x128xf32>
    %cst_78 = arith.constant 1.000000e+00 : f32
    %378 = vector.broadcast %cst_78 : f32 to vector<1x128xf32>
    %379 = arith.addf %378, %377 : vector<1x128xf32>
    %380 = arith.divf %378, %379 : vector<1x128xf32>
    %381 = vector.extract_strided_slice %373 {offsets = [0, 128], sizes = [1, 128], strides = [1, 1]} : vector<1x384xf32> to vector<1x128xf32>
    %382 = arith.addf %268, %381 : vector<1x128xf32>
    %383 = arith.negf %382 : vector<1x128xf32>
    %384 = math.exp %383 : vector<1x128xf32>
    %cst_79 = arith.constant 1.000000e+00 : f32
    %385 = vector.broadcast %cst_79 : f32 to vector<1x128xf32>
    %386 = arith.addf %385, %384 : vector<1x128xf32>
    %387 = arith.divf %385, %386 : vector<1x128xf32>
    %388 = vector.extract_strided_slice %373 {offsets = [0, 256], sizes = [1, 128], strides = [1, 1]} : vector<1x384xf32> to vector<1x128xf32>
    %389 = arith.mulf %380, %388 : vector<1x128xf32>
    %390 = arith.addf %269, %389 : vector<1x128xf32>
    %391 = math.tanh %390 : vector<1x128xf32>
    %cst_80 = arith.constant 1.000000e+00 : f32
    %392 = vector.broadcast %cst_80 : f32 to vector<1x128xf32>
    %393 = arith.subf %392, %387 : vector<1x128xf32>
    %394 = arith.mulf %393, %391 : vector<1x128xf32>
    %395 = arith.mulf %387, %371 : vector<1x128xf32>
    %396 = arith.addf %394, %395 : vector<1x128xf32>
    %cst_81 = arith.constant dense<0.000000e+00> : vector<1x384xf32>
    %397 = tpu.matmul %396, %270, %cst_81 {dimension_numbers = #tpu.dot_dimension_numbers<[1], [0], [0], [1], [0, 0, 1, 1], [], []>} : vector<1x128xf32>, vector<128x384xf32>, vector<1x384xf32> -> vector<1x384xf32>
    %398 = arith.addf %397, %271 : vector<1x384xf32>
    %399 = vector.extract_strided_slice %398 {offsets = [0, 0], sizes = [1, 128], strides = [1, 1]} : vector<1x384xf32> to vector<1x128xf32>
    %400 = arith.addf %267, %399 : vector<1x128xf32>
    %401 = arith.negf %400 : vector<1x128xf32>
    %402 = math.exp %401 : vector<1x128xf32>
    %cst_82 = arith.constant 1.000000e+00 : f32
    %403 = vector.broadcast %cst_82 : f32 to vector<1x128xf32>
    %404 = arith.addf %403, %402 : vector<1x128xf32>
    %405 = arith.divf %403, %404 : vector<1x128xf32>
    %406 = vector.extract_strided_slice %398 {offsets = [0, 128], sizes = [1, 128], strides = [1, 1]} : vector<1x384xf32> to vector<1x128xf32>
    %407 = arith.addf %268, %406 : vector<1x128xf32>
    %408 = arith.negf %407 : vector<1x128xf32>
    %409 = math.exp %408 : vector<1x128xf32>
    %cst_83 = arith.constant 1.000000e+00 : f32
    %410 = vector.broadcast %cst_83 : f32 to vector<1x128xf32>
    %411 = arith.addf %410, %409 : vector<1x128xf32>
    %412 = arith.divf %410, %411 : vector<1x128xf32>
    %413 = vector.extract_strided_slice %398 {offsets = [0, 256], sizes = [1, 128], strides = [1, 1]} : vector<1x384xf32> to vector<1x128xf32>
    %414 = arith.mulf %405, %413 : vector<1x128xf32>
    %415 = arith.addf %269, %414 : vector<1x128xf32>
    %416 = math.tanh %415 : vector<1x128xf32>
    %cst_84 = arith.constant 1.000000e+00 : f32
    %417 = vector.broadcast %cst_84 : f32 to vector<1x128xf32>
    %418 = arith.subf %417, %412 : vector<1x128xf32>
    %419 = arith.mulf %418, %416 : vector<1x128xf32>
    %420 = arith.mulf %412, %396 : vector<1x128xf32>
    %421 = arith.addf %419, %420 : vector<1x128xf32>
    %422 = tpu.concatenate %296, %321, %346, %371, %396, %421 in 0 : vector<1x128xf32>, vector<1x128xf32>, vector<1x128xf32>, vector<1x128xf32>, vector<1x128xf32>, vector<1x128xf32> -> vector<6x128xf32>
    %423 = vector.extract_strided_slice %422 {offsets = [0, 0], sizes = [6, 32], strides = [1, 1]} : vector<6x128xf32> to vector<6x32xf32>
    %c0_85 = arith.constant 0 : index
    %c0_86 = arith.constant 0 : index
    %424 = vector.load %arg15[%c0_85, %c0_86] : memref<6x32xf32, #tpu.memory_space<vmem>>, vector<6x32xf32>
    tpu.vector_store %arg15[%c0_85, %c0_86], %423 {strides = array<i32>} : memref<6x32xf32, #tpu.memory_space<vmem>>, vector<6x32xf32>,
    %c0_87 = arith.constant 0 : index
    %c0_88 = arith.constant 0 : index
    %425 = vector.load %arg11[%c0_87, %c0_88] : memref<128x16xf32, #tpu.memory_space<vmem>>, vector<128x16xf32>
    %cst_89 = arith.constant dense<0.000000e+00> : vector<6x16xf32>
    %426 = tpu.matmul %422, %425, %cst_89 {dimension_numbers = #tpu.dot_dimension_numbers<[1], [0], [0], [1], [0, 0, 1, 1], [], []>} : vector<6x128xf32>, vector<128x16xf32>, vector<6x16xf32> -> vector<6x16xf32>
    %c0_90 = arith.constant 0 : index
    %c0_91 = arith.constant 0 : index
    %427 = vector.load %arg12[%c0_90, %c0_91] : memref<1x16xf32, #tpu.memory_space<vmem>>, vector<1x16xf32>
    %428 = vector.broadcast %427 : vector<1x16xf32> to vector<6x16xf32>
    %429 = arith.addf %426, %428 : vector<6x16xf32>
    %cst_92 = arith.constant dense<0xFF800000> : vector<6xf32>
    %430 = vector.multi_reduction <maximumf>, %429, %cst_92 [1] : vector<6x16xf32> to vector<6xf32>
    %431 = vector.shape_cast %430 : vector<6xf32> to vector<6x1xf32>
    %432 = vector.broadcast %431 : vector<6x1xf32> to vector<6x16xf32>
    %433 = arith.subf %429, %432 : vector<6x16xf32>
    %434 = math.exp %433 : vector<6x16xf32>
    %cst_93 = arith.constant dense<0.000000e+00> : vector<6xf32>
    %435 = vector.multi_reduction <add>, %434, %cst_93 [1] : vector<6x16xf32> to vector<6xf32>
    %436 = vector.shape_cast %435 : vector<6xf32> to vector<6x1xf32>
    %437 = math.log %436 : vector<6x1xf32>
    %438 = vector.broadcast %437 : vector<6x1xf32> to vector<6x16xf32>
    %439 = arith.subf %433, %438 : vector<6x16xf32>
    %c0_94 = arith.constant 0 : index
    %c0_95 = arith.constant 0 : index
    %440 = vector.load %arg13[%c0_94, %c0_95] : memref<6x16xf32, #tpu.memory_space<vmem>>, vector<6x16xf32>
    tpu.vector_store %arg13[%c0_94, %c0_95], %439 {strides = array<i32>} : memref<6x16xf32, #tpu.memory_space<vmem>>, vector<6x16xf32>,
    %cst_96 = arith.constant dense<0xFF800000> : vector<6xf32>
    %441 = vector.multi_reduction <maximumf>, %439, %cst_96 [1] : vector<6x16xf32> to vector<6xf32>
    %442 = vector.shape_cast %441 : vector<6xf32> to vector<6x1xf32>
    %443 = tpu.iota {dimensions = array<i32: 1>} : vector<6x16xi32>
    %444 = vector.broadcast %442 : vector<6x1xf32> to vector<6x16xf32>
    %445 = arith.cmpf oge, %439, %444 : vector<6x16xf32>
    %c1073741824_i32 = arith.constant 1073741824 : i32
    %446 = vector.broadcast %c1073741824_i32 : i32 to vector<6x16xi32>
    %447 = arith.select %445, %443, %446 : vector<6x16xi1>, vector<6x16xi32>
    %cst_97 = arith.constant dense<2147483647> : vector<6xi32>
    %448 = vector.multi_reduction <minsi>, %447, %cst_97 [1] : vector<6x16xi32> to vector<6xi32>
    %449 = vector.shape_cast %448 : vector<6xi32> to vector<6x1xi32>
    %c0_98 = arith.constant 0 : index
    %c0_99 = arith.constant 0 : index
    %450 = vector.load %arg14[%c0_98, %c0_99] : memref<6x1xi32, #tpu.memory_space<vmem>>, vector<6x1xi32>
    tpu.vector_store %arg14[%c0_98, %c0_99], %449 {strides = array<i32>} : memref<6x1xi32, #tpu.memory_space<vmem>>, vector<6x1xi32>,
    return
  }
}

</mosaic_0001>

<llo_original>
// kernel: run_topic_seq2seq.1
$region0: #{run_topic_seq2seq.1}
  #allocation0 [shape = 'u32[]', space=smem, size = 0x4, offset = 0x4, fixed_abs, tag = 'smem constant byte address 0x4 - core index']
  #allocation1 [shape = 'u32[144,128]{1,0:T(1,128)}', space=vmem, size = 0x12000, scoped, tag = 'internal scratch']
  %s0 = inlined_call_operand.vmem [shape: s32[8], index: 0, kind: input, shape index: {}]
  %s1 = inlined_call_operand.vmem [shape: f32[20,32], index: 1, kind: input, shape index: {}]
  %s2 = inlined_call_operand.vmem [shape: f32[16,32], index: 2, kind: input, shape index: {}]
  %s3 = inlined_call_operand.vmem [shape: f32[32,384], index: 3, kind: input, shape index: {}]
  %s4 = inlined_call_operand.hbm [shape: f32[128,384], index: 4, kind: input, shape index: {}]
  %s5 = inlined_call_operand.vmem [shape: f32[1,384], index: 5, kind: input, shape index: {}]
  %s6 = inlined_call_operand.vmem [shape: f32[1,384], index: 6, kind: input, shape index: {}]
  %s7 = inlined_call_operand.hbm [shape: f32[32,384], index: 7, kind: input, shape index: {}]
  %s8 = inlined_call_operand.hbm [shape: f32[128,384], index: 8, kind: input, shape index: {}]
  %s9 = inlined_call_operand.vmem [shape: f32[1,384], index: 9, kind: input, shape index: {}]
  %s10 = inlined_call_operand.vmem [shape: f32[1,384], index: 10, kind: input, shape index: {}]
  %s11 = inlined_call_operand.vmem [shape: f32[128,16], index: 11, kind: input, shape index: {}]
  %s12 = inlined_call_operand.vmem [shape: f32[1,16], index: 12, kind: input, shape index: {}]
  %s13 = inlined_call_operand.hbm [shape: f32[6,16], index: 13, kind: output, shape index: {0}]
  %s14 = inlined_call_operand.vmem [shape: s32[6,1], index: 14, kind: output, shape index: {1}]
  %s15 = inlined_call_operand.hbm [shape: f32[6,32], index: 15, kind: output, shape index: {2}]
  %16 = xla_tuple %s13, %s14, %s15
  %s17 = sld [smem:[#allocation0]]
  $region94: #{run_topic_seq2seq.1} parent=0
    _
  %s19 = ssub.s32 1, %s17
  %s20 = scalar_select 0, %s19, %s17
  $region1: #{run_topic_seq2seq.1} parent=0
    #allocation2 [shape = 'u8[512]{0}', space=smem, size = 0x200, scoped, tag = 'input window, operand 0, single buffered']
    #allocation3 [shape = 's32[1]{0}', space=sflag, size = 0x4, scoped, tag = 'scoped memory for run_topic_seq2seq.1']
    #allocation4 [shape = 's32[1]{0}', space=sflag, size = 0x4, scoped, tag = 'scoped memory for run_topic_seq2seq.1']
    #allocation5 [shape = 's32[1]{0}', space=sflag, size = 0x4, scoped, tag = 'scoped memory for run_topic_seq2seq.1']
    #allocation6 [shape = 'u8[196608]{0}', space=vmem, size = 0x30000, scoped, tag = 'input window, operand 4, single buffered']
    #allocation7 [shape = 'u8[49152]{0}', space=vmem, size = 0xc000, scoped, tag = 'input window, operand 7, single buffered']
    #allocation8 [shape = 's32[1]{0}', space=sflag, size = 0x4, scoped, tag = 'scoped memory for run_topic_seq2seq.1']
    #allocation9 [shape = 'u8[196608]{0}', space=vmem, size = 0x30000, scoped, tag = 'input window, operand 8, single buffered']
    #allocation10 [shape = 'u8[4096]{0}', space=vmem, size = 0x1000, scoped, tag = 'output window, operand 0, single buffered']
    #allocation11 [shape = 'u8[4096]{0}', space=vmem, size = 0x1000, scoped, tag = 'output window, operand 2, single buffered']
    #allocation12 [shape = 's32[1]{0}', space=sflag, size = 0x4, scoped, tag = 'scoped memory for run_topic_seq2seq.1']
    %21 = vsyncpa [#allocation5], 0
    %22 = vsyncpa [#allocation3], 0
    %23 = vsyncpa [#allocation8], 0
    %24 = vsyncpa [#allocation4], 0
    %25 = vsyncpa [#allocation12], 0
    // Predicated region
    $region2: #{run_topic_seq2seq.1} parent=1 // pred_check
      _
    $region3: #{run_topic_seq2seq.1} parent=1 // pred_check_branch
      %27 = sbr.rel (0) target = $region5
    $region4: #{run_topic_seq2seq.1} parent=1 // pred_region
      %s29 = ssub.s32 16, 16
      %30 = vsyncadd [#allocation5], %s29
      %s32 = sshll.u32 %s0, 4
      %s33 = int_to_ptr.vmem [resolvable:$true] %s32
      %35 = dma.vmem_to_smem %s33, 16, [#allocation2], [#allocation5]
    $region5: #{run_topic_seq2seq.1} parent=1 // pred_fallthru
      _
    // Predicated region
    $region6: #{run_topic_seq2seq.1} parent=1 // pred_check
      _
    $region7: #{run_topic_seq2seq.1} parent=1 // pred_check_branch
      %37 = sbr.rel (0) target = $region9
    $region8: #{run_topic_seq2seq.1} parent=1 // pred_region
      _
    $region9: #{run_topic_seq2seq.1} parent=1 // pred_fallthru
      _
    // Predicated region
    $region10: #{run_topic_seq2seq.1} parent=1 // pred_check
      _
    $region11: #{run_topic_seq2seq.1} parent=1 // pred_check_branch
      %39 = sbr.rel (0) target = $region13
    $region12: #{run_topic_seq2seq.1} parent=1 // pred_region
      _
    $region13: #{run_topic_seq2seq.1} parent=1 // pred_fallthru
      _
    // Predicated region
    $region14: #{run_topic_seq2seq.1} parent=1 // pred_check
      _
    $region15: #{run_topic_seq2seq.1} parent=1 // pred_check_branch
      %41 = sbr.rel (0) target = $region17
    $region16: #{run_topic_seq2seq.1} parent=1 // pred_region
      _
    $region17: #{run_topic_seq2seq.1} parent=1 // pred_fallthru
      _
    // Predicated region
    $region18: #{run_topic_seq2seq.1} parent=1 // pred_check
      _
    $region19: #{run_topic_seq2seq.1} parent=1 // pred_check_branch
      %43 = sbr.rel (0) target = $region21
    $region20: #{run_topic_seq2seq.1} parent=1 // pred_region
      %s45 = ssub.s32 6144, 6144
      %46 = vsyncadd [#allocation3], %s45
      %s47 = sshll.u32 [#allocation6], 4
      %s48 = int_to_ptr.vmem [resolvable:$true] %s47
      %53 = dma.hbm_to_vmem [thread:$0]  %s4, 6144, %s48, [#allocation3], 384, 384, 24
    $region21: #{run_topic_seq2seq.1} parent=1 // pred_fallthru
      _
    // Predicated region
    $region22: #{run_topic_seq2seq.1} parent=1 // pred_check
      _
    $region23: #{run_topic_seq2seq.1} parent=1 // pred_check_branch
      %55 = sbr.rel (0) target = $region25
    $region24: #{run_topic_seq2seq.1} parent=1 // pred_region
      _
    $region25: #{run_topic_seq2seq.1} parent=1 // pred_fallthru
      _
    // Predicated region
    $region26: #{run_topic_seq2seq.1} parent=1 // pred_check
      _
    $region27: #{run_topic_seq2seq.1} parent=1 // pred_check_branch
      %57 = sbr.rel (0) target = $region29
    $region28: #{run_topic_seq2seq.1} parent=1 // pred_region
      _
    $region29: #{run_topic_seq2seq.1} parent=1 // pred_fallthru
      _
    // Predicated region
    $region30: #{run_topic_seq2seq.1} parent=1 // pred_check
      _
    $region31: #{run_topic_seq2seq.1} parent=1 // pred_check_branch
      %59 = sbr.rel (0) target = $region33
    $region32: #{run_topic_seq2seq.1} parent=1 // pred_region
      %s61 = ssub.s32 1536, 1536
      %62 = vsyncadd [#allocation8], %s61
      %s63 = sshll.u32 [#allocation7], 4
      %s64 = int_to_ptr.vmem [resolvable:$true] %s63
      %69 = dma.hbm_to_vmem [thread:$0]  %s7, 1536, %s64, [#allocation8], 384, 384, 24
    $region33: #{run_topic_seq2seq.1} parent=1 // pred_fallthru
      _
    // Predicated region
    $region34: #{run_topic_seq2seq.1} parent=1 // pred_check
      _
    $region35: #{run_topic_seq2seq.1} parent=1 // pred_check_branch
      %71 = sbr.rel (0) target = $region37
    $region36: #{run_topic_seq2seq.1} parent=1 // pred_region
      %s73 = ssub.s32 6144, 6144
      %74 = vsyncadd [#allocation8], %s73
      %s75 = sshll.u32 [#allocation9], 4
      %s76 = int_to_ptr.vmem [resolvable:$true] %s75
      %81 = dma.hbm_to_vmem [thread:$0]  %s8, 6144, %s76, [#allocation8], 384, 384, 24
    $region37: #{run_topic_seq2seq.1} parent=1 // pred_fallthru
      _
    // Predicated region
    $region38: #{run_topic_seq2seq.1} parent=1 // pred_check
      _
    $region39: #{run_topic_seq2seq.1} parent=1 // pred_check_branch
      %83 = sbr.rel (0) target = $region41
    $region40: #{run_topic_seq2seq.1} parent=1 // pred_region
      _
    $region41: #{run_topic_seq2seq.1} parent=1 // pred_fallthru
      _
    // Predicated region
    $region42: #{run_topic_seq2seq.1} parent=1 // pred_check
      _
    $region43: #{run_topic_seq2seq.1} parent=1 // pred_check_branch
      %85 = sbr.rel (0) target = $region45
    $region44: #{run_topic_seq2seq.1} parent=1 // pred_region
      _
    $region45: #{run_topic_seq2seq.1} parent=1 // pred_fallthru
      _
    // Predicated region
    $region46: #{run_topic_seq2seq.1} parent=1 // pred_check
      _
    $region47: #{run_topic_seq2seq.1} parent=1 // pred_check_branch
      %87 = sbr.rel (0) target = $region49
    $region48: #{run_topic_seq2seq.1} parent=1 // pred_region
      _
    $region49: #{run_topic_seq2seq.1} parent=1 // pred_fallthru
      _
    // Predicated region
    $region50: #{run_topic_seq2seq.1} parent=1 // pred_check
      _
    $region51: #{run_topic_seq2seq.1} parent=1 // pred_check_branch
      %89 = sbr.rel (0) target = $region53
    $region52: #{run_topic_seq2seq.1} parent=1 // pred_region
      _
    $region53: #{run_topic_seq2seq.1} parent=1 // pred_fallthru
      _
    // Predicated region
    $region54: #{run_topic_seq2seq.1} parent=1 // pred_check
      _
    $region55: #{run_topic_seq2seq.1} parent=1 // pred_check_branch
      %91 = sbr.rel (0) target = $region57
    $region56: #{run_topic_seq2seq.1} parent=1 // pred_region
      %92 = dma.done [#allocation5], 16
    $region57: #{run_topic_seq2seq.1} parent=1 // pred_fallthru
      _
    // Predicated region
    $region58: #{run_topic_seq2seq.1} parent=1 // pred_check
      _
    $region59: #{run_topic_seq2seq.1} parent=1 // pred_check_branch
      %94 = sbr.rel (0) target = $region61
    $region60: #{run_topic_seq2seq.1} parent=1 // pred_region
      %95 = dma.done [#allocation3], 6144
    $region61: #{run_topic_seq2seq.1} parent=1 // pred_fallthru
      _
    // Predicated region
    $region62: #{run_topic_seq2seq.1} parent=1 // pred_check
      _
    $region63: #{run_topic_seq2seq.1} parent=1 // pred_check_branch
      %97 = sbr.rel (0) target = $region65
    $region64: #{run_topic_seq2seq.1} parent=1 // pred_region
      %98 = dma.done [#allocation8], 1536
    $region65: #{run_topic_seq2seq.1} parent=1 // pred_fallthru
      _
    // Predicated region
    $region66: #{run_topic_seq2seq.1} parent=1 // pred_check
      _
    $region67: #{run_topic_seq2seq.1} parent=1 // pred_check_branch
      %100 = sbr.rel (0) target = $region69
    $region68: #{run_topic_seq2seq.1} parent=1 // pred_region
      %101 = dma.done [#allocation8], 6144
    $region69: #{run_topic_seq2seq.1} parent=1 // pred_fallthru
      _
    %102 = sfence
    %s103 = sld [smem:[#allocation2]]
    %s104 = scalar_lea.vmem %s1, %s103
    %v105 = vld [vmem:[%s104] sm:$0x1]
    %s106 = sld [smem:[#allocation2 + $0x1]]
    %s107 = scalar_lea.vmem %s1, %s106
    %v108 = vld [vmem:[%s107] sm:$0x1]
    %s109 = sld [smem:[#allocation2 + $0x2]]
    %s110 = scalar_lea.vmem %s1, %s109
    %v111 = vld [vmem:[%s110] sm:$0x1]
    %s112 = sld [smem:[#allocation2 + $0x3]]
    %s113 = scalar_lea.vmem %s1, %s112
    %v114 = vld [vmem:[%s113] sm:$0x1]
    %s115 = sld [smem:[#allocation2 + $0x4]]
    %s116 = scalar_lea.vmem %s1, %s115
    %v117 = vld [vmem:[%s116] sm:$0x1]
    %s118 = sld [smem:[#allocation2 + $0x5]]
    %s119 = scalar_lea.vmem %s1, %s118
    %v120 = vld [vmem:[%s119] sm:$0x1]
    %s121 = sld [smem:[#allocation2 + $0x6]]
    %s122 = scalar_lea.vmem %s1, %s121
    %v123 = vld [vmem:[%s122] sm:$0x1]
    %s124 = sld [smem:[#allocation2 + $0x7]]
    %s125 = scalar_lea.vmem %s1, %s124
    %v126 = vld [vmem:[%s125] sm:$0x1]
    %v128 = vrot.slane %v108, 7
    %v131 = vrot.slane %v111, 6
    %v134 = vrot.slane %v114, 5
    %v137 = vrot.slane %v117, 4
    %v140 = vrot.slane %v120, 3
    %v143 = vrot.slane %v123, 2
    %v146 = vrot.slane %v126, 1
    %vm148 = vcmask 1040384
    %v149 = vsel %vm148, %v105, %v128
    %vm150 = vcmask 1041408
    %v151 = vsel %vm150, %v149, %v131
    %vm152 = vcmask 1042432
    %v153 = vsel %vm152, %v151, %v134
    %vm154 = vcmask 1043456
    %v155 = vsel %vm154, %v153, %v137
    %vm156 = vcmask 1044480
    %v157 = vsel %vm156, %v155, %v140
    %vm158 = vcmask 1045504
    %v159 = vsel %vm158, %v157, %v143
    %vm160 = vcmask 1046528
    %v161 = vsel %vm160, %v159, %v146
    %v162 = vld [vmem:[%s3] sm:$0xff]
    %v163 = vld [vmem:[%s3 + $0x8] sm:$0xff]
    %v164 = vld [vmem:[%s3 + $0x10] sm:$0xff]
    %v165 = vld [vmem:[%s3 + $0x18] sm:$0xff]
    %v166 = vld [vmem:[%s3 + $0x20] sm:$0xff]
    %v167 = vld [vmem:[%s3 + $0x28] sm:$0xff]
    %v168 = vld [vmem:[%s3 + $0x30] sm:$0xff]
    %v169 = vld [vmem:[%s3 + $0x38] sm:$0xff]
    %v170 = vld [vmem:[%s3 + $0x40] sm:$0xff]
    %v171 = vld [vmem:[%s3 + $0x48] sm:$0xff]
    %v172 = vld [vmem:[%s3 + $0x50] sm:$0xff]
    %v173 = vld [vmem:[%s3 + $0x58] sm:$0xff]
    %v174 = vld [vmem:[%s5] sm:$0x7]
    %v176 = vlaneseq
    %v177 = vshrl.u32 %v176, 7
    %v178 = vsub.s32 0, %v177
    %v179 = vrot.slane %v174, %v178
    %v180 = vlaneseq
    %v181 = vshrl.u32 %v180, 7
    %v182 = vsub.s32 1, %v181
    %v183 = vrot.slane %v174, %v182
    %v184 = vlaneseq
    %v185 = vshrl.u32 %v184, 7
    %v186 = vsub.s32 2, %v185
    %v187 = vrot.slane %v174, %v186
    %vm191 = vcmask 261120
    %v193 = vsel %vm191, %v161, 0
    %195 = vmatprep.subr.mxu0 %v163
    %196 = vmatpush1.msra.mxu0 %v162
    %197 = vmatprep.subr.mxu0 %v166
    %198 = vmatpush1.msra.mxu0 %v165
    %199 = vmatprep.subr.mxu0 %v169
    %200 = vmatpush1.msra.mxu0 %v168
    %201 = vmatprep.subr.mxu0 %v172
    %202 = vmatpush1.msra.mxu0 %v171
    %203 = vmatprep.subr.mxu0 0.0
    %204 = vmatpush1.msra.mxu0 0.0
    %205 = vmatprep.subr.mxu0 0.0
    %206 = vmatpush1.msra.mxu0 0.0
    %207 = vmatprep.subr.mxu0 0.0
    %208 = vmatpush1.msra.mxu0 0.0
    %209 = vmatprep.subr.mxu0 0.0
    %210 = vmatpush1.msra.mxu0 0.0
    %211 = vmatprep.subr.mxu0 0.0
    %212 = vmatpush1.msra.mxu0 0.0
    %213 = vmatprep.subr.mxu0 0.0
    %214 = vmatpush1.msra.mxu0 0.0
    %215 = vmatprep.subr.mxu0 0.0
    %216 = vmatpush1.msra.mxu0 0.0
    %217 = vmatprep.subr.mxu0 0.0
    %218 = vmatpush1.msra.mxu0 0.0
    %219 = vmatprep.subr.mxu0 0.0
    %220 = vmatpush1.msra.mxu0 0.0
    %221 = vmatprep.subr.mxu0 0.0
    %222 = vmatpush1.msra.mxu0 0.0
    %223 = vmatprep.subr.mxu0 0.0
    %224 = vmatpush1.msra.mxu0 0.0
    %225 = vmatprep.subr.mxu0 0.0
    %226 = vmatpush1.msra.mxu0 0.0
    %227 = vmatprep.subr.mxu0 0.0
    %228 = vmatpush1.msra.mxu0 0.0
    %229 = vmatprep.subr.mxu0 0.0
    %230 = vmatpush1.msra.mxu0 0.0
    %231 = vmatprep.subr.mxu0 0.0
    %232 = vmatpush1.msra.mxu0 0.0
    %233 = vmatprep.subr.mxu0 0.0
    %234 = vmatpush1.msra.mxu0 0.0
    %235 = vmatprep.subr.mxu0 0.0
    %236 = vmatpush1.msra.mxu0 0.0
    %237 = vmatprep.subr.mxu0 0.0
    %238 = vmatpush1.msra.mxu0 0.0
    %239 = vmatprep.subr.mxu0 0.0
    %240 = vmatpush1.msra.mxu0 0.0
    %241 = vmatprep.subr.mxu0 0.0
    %242 = vmatpush1.msra.mxu0 0.0
    %243 = vmatprep.subr.mxu0 0.0
    %244 = vmatpush1.msra.mxu0 0.0
    %245 = vmatprep.subr.mxu0 0.0
    %246 = vmatpush1.msra.mxu0 0.0
    %247 = vmatprep.subr.mxu0 0.0
    %248 = vmatpush1.msra.mxu0 0.0
    %249 = vmatprep.subr.mxu0 0.0
    %250 = vmatpush1.msra.mxu0 0.0
    %251 = vmatprep.subr.mxu0 0.0
    %252 = vmatpush1.msra.mxu0 0.0
    %253 = vmatprep.subr.mxu0 0.0
    %254 = vmatpush1.msra.mxu0 0.0
    %255 = vmatprep.subr.mxu0 0.0
    %256 = vmatpush1.msra.mxu0 0.0
    %257 = vmatprep.subr.mxu0 0.0
    %258 = vmatpush1.msra.mxu0 0.0
    %259 = vmatprep.mubr.f32.mxu0 0.0
    %260 = vmatmul.mubr.f32.gmra.mrb[0].mxu0 %v193
    %v261 = vpop.f32.mrb[0].mxu0
    %v262 = vadd.f32 %v179, %v261
    %v263 = vpop.f32.mrb[0].mxu0
    %v264 = vadd.f32 %v183, %v263
    %265 = vdwg.mxu0
    %266 = vmatprep.subr.mxu0 0.0
    %267 = vmatpush1.msra.mxu0 %v164
    %268 = vmatprep.subr.mxu0 0.0
    %269 = vmatpush1.msra.mxu0 %v167
    %270 = vmatprep.subr.mxu0 0.0
    %271 = vmatpush1.msra.mxu0 %v170
    %272 = vmatprep.subr.mxu0 0.0
    %273 = vmatpush1.msra.mxu0 %v173
    %274 = vmatprep.subr.mxu0 0.0
    %275 = vmatpush1.msra.mxu0 0.0
    %276 = vmatprep.subr.mxu0 0.0
    %277 = vmatpush1.msra.mxu0 0.0
    %278 = vmatprep.subr.mxu0 0.0
    %279 = vmatpush1.msra.mxu0 0.0
    %280 = vmatprep.subr.mxu0 0.0
    %281 = vmatpush1.msra.mxu0 0.0
    %282 = vmatprep.subr.mxu0 0.0
    %283 = vmatpush1.msra.mxu0 0.0
    %284 = vmatprep.subr.mxu0 0.0
    %285 = vmatpush1.msra.mxu0 0.0
    %286 = vmatprep.subr.mxu0 0.0
    %287 = vmatpush1.msra.mxu0 0.0
    %288 = vmatprep.subr.mxu0 0.0
    %289 = vmatpush1.msra.mxu0 0.0
    %290 = vmatprep.subr.mxu0 0.0
    %291 = vmatpush1.msra.mxu0 0.0
    %292 = vmatprep.subr.mxu0 0.0
    %293 = vmatpush1.msra.mxu0 0.0
    %294 = vmatprep.subr.mxu0 0.0
    %295 = vmatpush1.msra.mxu0 0.0
    %296 = vmatprep.subr.mxu0 0.0
    %297 = vmatpush1.msra.mxu0 0.0
    %298 = vmatprep.subr.mxu0 0.0
    %299 = vmatpush1.msra.mxu0 0.0
    %300 = vmatprep.subr.mxu0 0.0
    %301 = vmatpush1.msra.mxu0 0.0
    %302 = vmatprep.subr.mxu0 0.0
    %303 = vmatpush1.msra.mxu0 0.0
    %304 = vmatprep.subr.mxu0 0.0
    %305 = vmatpush1.msra.mxu0 0.0
    %306 = vmatprep.subr.mxu0 0.0
    %307 = vmatpush1.msra.mxu0 0.0
    %308 = vmatprep.subr.mxu0 0.0
    %309 = vmatpush1.msra.mxu0 0.0
    %310 = vmatprep.subr.mxu0 0.0
    %311 = vmatpush1.msra.mxu0 0.0
    %312 = vmatprep.subr.mxu0 0.0
    %313 = vmatpush1.msra.mxu0 0.0
    %314 = vmatprep.subr.mxu0 0.0
    %315 = vmatpush1.msra.mxu0 0.0
    %316 = vmatprep.subr.mxu0 0.0
    %317 = vmatpush1.msra.mxu0 0.0
    %318 = vmatprep.subr.mxu0 0.0
    %319 = vmatpush1.msra.mxu0 0.0
    %320 = vmatprep.subr.mxu0 0.0
    %321 = vmatpush1.msra.mxu0 0.0
    %322 = vmatprep.subr.mxu0 0.0
    %323 = vmatpush1.msra.mxu0 0.0
    %324 = vmatprep.subr.mxu0 0.0
    %325 = vmatpush1.msra.mxu0 0.0
    %326 = vmatprep.subr.mxu0 0.0
    %327 = vmatpush1.msra.mxu0 0.0
    %328 = vmatprep.subr.mxu0 0.0
    %329 = vmatpush1.msra.mxu0 0.0
    %330 = vmatprep.mubr.f32.mxu0 0.0
    %331 = vmatmul.mubr.f32.gmra.mrb[0].mxu0 %v193
    %v332 = vpop.f32.mrb[0].mxu0
    %v333 = vadd.f32 %v187, %v332
    %v334 = vpop.f32.mrb[0].mxu0
    %335 = vdwg.mxu0
    %v336 = vld [vmem:[#allocation6] sm:$0xff]
    %v337 = vld [vmem:[#allocation6 + $0x8] sm:$0xff]
    %v338 = vld [vmem:[#allocation6 + $0x10] sm:$0xff]
    %v339 = vld [vmem:[#allocation6 + $0x18] sm:$0xff]
    %v340 = vld [vmem:[#allocation6 + $0x20] sm:$0xff]
    %v341 = vld [vmem:[#allocation6 + $0x28] sm:$0xff]
    %v342 = vld [vmem:[#allocation6 + $0x30] sm:$0xff]
    %v343 = vld [vmem:[#allocation6 + $0x38] sm:$0xff]
    %v344 = vld [vmem:[#allocation6 + $0x40] sm:$0xff]
    %v345 = vld [vmem:[#allocation6 + $0x48] sm:$0xff]
    %v346 = vld [vmem:[#allocation6 + $0x50] sm:$0xff]
    %v347 = vld [vmem:[#allocation6 + $0x58] sm:$0xff]
    %v348 = vld [vmem:[#allocation6 + $0x60] sm:$0xff]
    %v349 = vld [vmem:[#allocation6 + $0x68] sm:$0xff]
    %v350 = vld [vmem:[#allocation6 + $0x70] sm:$0xff]
    %v351 = vld [vmem:[#allocation6 + $0x78] sm:$0xff]
    %v352 = vld [vmem:[#allocation6 + $0x80] sm:$0xff]
    %v353 = vld [vmem:[#allocation6 + $0x88] sm:$0xff]
    %v354 = vld [vmem:[#allocation6 + $0x90] sm:$0xff]
    %v355 = vld [vmem:[#allocation6 + $0x98] sm:$0xff]
    %v356 = vld [vmem:[#allocation6 + $0xa0] sm:$0xff]
    %v357 = vld [vmem:[#allocation6 + $0xa8] sm:$0xff]
    %v358 = vld [vmem:[#allocation6 + $0xb0] sm:$0xff]
    %v359 = vld [vmem:[#allocation6 + $0xb8] sm:$0xff]
    %v360 = vld [vmem:[#allocation6 + $0xc0] sm:$0xff]
    %v361 = vld [vmem:[#allocation6 + $0xc8] sm:$0xff]
    %v362 = vld [vmem:[#allocation6 + $0xd0] sm:$0xff]
    %v363 = vld [vmem:[#allocation6 + $0xd8] sm:$0xff]
    %v364 = vld [vmem:[#allocation6 + $0xe0] sm:$0xff]
    %v365 = vld [vmem:[#allocation6 + $0xe8] sm:$0xff]
    %v366 = vld [vmem:[#allocation6 + $0xf0] sm:$0xff]
    %v367 = vld [vmem:[#allocation6 + $0xf8] sm:$0xff]
    %v368 = vld [vmem:[#allocation6 + $0x100] sm:$0xff]
    %v369 = vld [vmem:[#allocation6 + $0x108] sm:$0xff]
    %v370 = vld [vmem:[#allocation6 + $0x110] sm:$0xff]
    %v371 = vld [vmem:[#allocation6 + $0x118] sm:$0xff]
    %v372 = vld [vmem:[#allocation6 + $0x120] sm:$0xff]
    %v373 = vld [vmem:[#allocation6 + $0x128] sm:$0xff]
    %v374 = vld [vmem:[#allocation6 + $0x130] sm:$0xff]
    %v375 = vld [vmem:[#allocation6 + $0x138] sm:$0xff]
    %v376 = vld [vmem:[#allocation6 + $0x140] sm:$0xff]
    %v377 = vld [vmem:[#allocation6 + $0x148] sm:$0xff]
    %v378 = vld [vmem:[#allocation6 + $0x150] sm:$0xff]
    %v379 = vld [vmem:[#allocation6 + $0x158] sm:$0xff]
    %v380 = vld [vmem:[#allocation6 + $0x160] sm:$0xff]
    %v381 = vld [vmem:[#allocation6 + $0x168] sm:$0xff]
    %v382 = vld [vmem:[#allocation6 + $0x170] sm:$0xff]
    %v383 = vld [vmem:[#allocation6 + $0x178] sm:$0xff]
    %v384 = vld [vmem:[%s6] sm:$0x7]
    %v386 = vlaneseq
    %v387 = vshrl.u32 %v386, 7
    %v388 = vsub.s32 0, %v387
    %v389 = vrot.slane %v384, %v388
    %v390 = vlaneseq
    %v391 = vshrl.u32 %v390, 7
    %v392 = vsub.s32 1, %v391
    %v393 = vrot.slane %v384, %v392
    %v394 = vlaneseq
    %v395 = vshrl.u32 %v394, 7
    %v396 = vsub.s32 2, %v395
    %v397 = vrot.slane %v384, %v396
    %401 = vmatprep.subr.mxu0 %v337
    %402 = vmatpush1.msra.mxu0 %v336
    %403 = vmatprep.subr.mxu0 %v340
    %404 = vmatpush1.msra.mxu0 %v339
    %405 = vmatprep.subr.mxu0 %v343
    %406 = vmatpush1.msra.mxu0 %v342
    %407 = vmatprep.subr.mxu0 %v346
    %408 = vmatpush1.msra.mxu0 %v345
    %409 = vmatprep.subr.mxu0 %v349
    %410 = vmatpush1.msra.mxu0 %v348
    %411 = vmatprep.subr.mxu0 %v352
    %412 = vmatpush1.msra.mxu0 %v351
    %413 = vmatprep.subr.mxu0 %v355
    %414 = vmatpush1.msra.mxu0 %v354
    %415 = vmatprep.subr.mxu0 %v358
    %416 = vmatpush1.msra.mxu0 %v357
    %417 = vmatprep.subr.mxu0 %v361
    %418 = vmatpush1.msra.mxu0 %v360
    %419 = vmatprep.subr.mxu0 %v364
    %420 = vmatpush1.msra.mxu0 %v363
    %421 = vmatprep.subr.mxu0 %v367
    %422 = vmatpush1.msra.mxu0 %v366
    %423 = vmatprep.subr.mxu0 %v370
    %424 = vmatpush1.msra.mxu0 %v369
    %425 = vmatprep.subr.mxu0 %v373
    %426 = vmatpush1.msra.mxu0 %v372
    %427 = vmatprep.subr.mxu0 %v376
    %428 = vmatpush1.msra.mxu0 %v375
    %429 = vmatprep.subr.mxu0 %v379
    %430 = vmatpush1.msra.mxu0 %v378
    %431 = vmatprep.subr.mxu0 %v382
    %432 = vmatpush1.msra.mxu0 %v381
    %433 = vmatprep.subr.mxu0 0.0
    %434 = vmatpush1.msra.mxu0 0.0
    %435 = vmatprep.subr.mxu0 0.0
    %436 = vmatpush1.msra.mxu0 0.0
    %437 = vmatprep.subr.mxu0 0.0
    %438 = vmatpush1.msra.mxu0 0.0
    %439 = vmatprep.subr.mxu0 0.0
    %440 = vmatpush1.msra.mxu0 0.0
    %441 = vmatprep.subr.mxu0 0.0
    %442 = vmatpush1.msra.mxu0 0.0
    %443 = vmatprep.subr.mxu0 0.0
    %444 = vmatpush1.msra.mxu0 0.0
    %445 = vmatprep.subr.mxu0 0.0
    %446 = vmatpush1.msra.mxu0 0.0
    %447 = vmatprep.subr.mxu0 0.0
    %448 = vmatpush1.msra.mxu0 0.0
    %449 = vmatprep.subr.mxu0 0.0
    %450 = vmatpush1.msra.mxu0 0.0
    %451 = vmatprep.subr.mxu0 0.0
    %452 = vmatpush1.msra.mxu0 0.0
    %453 = vmatprep.subr.mxu0 0.0
    %454 = vmatpush1.msra.mxu0 0.0
    %455 = vmatprep.subr.mxu0 0.0
    %456 = vmatpush1.msra.mxu0 0.0
    %457 = vmatprep.subr.mxu0 0.0
    %458 = vmatpush1.msra.mxu0 0.0
    %459 = vmatprep.subr.mxu0 0.0
    %460 = vmatpush1.msra.mxu0 0.0
    %461 = vmatprep.subr.mxu0 0.0
    %462 = vmatpush1.msra.mxu0 0.0
    %463 = vmatprep.subr.mxu0 0.0
    %464 = vmatpush1.msra.mxu0 0.0
    %465 = vmatprep.mubr.f32.mxu0 0.0
    %466 = vmatmul.mubr.f32.gmra.mrb[0].mxu0 0.0
    %v467 = vpop.f32.mrb[0].mxu0
    %v468 = vadd.f32 %v389, %v467
    %v469 = vpop.f32.mrb[0].mxu0
    %v470 = vadd.f32 %v393, %v469
    %471 = vdwg.mxu0
    %472 = vmatprep.subr.mxu0 0.0
    %473 = vmatpush1.msra.mxu0 %v338
    %474 = vmatprep.subr.mxu0 0.0
    %475 = vmatpush1.msra.mxu0 %v341
    %476 = vmatprep.subr.mxu0 0.0
    %477 = vmatpush1.msra.mxu0 %v344
    %478 = vmatprep.subr.mxu0 0.0
    %479 = vmatpush1.msra.mxu0 %v347
    %480 = vmatprep.subr.mxu0 0.0
    %481 = vmatpush1.msra.mxu0 %v350
    %482 = vmatprep.subr.mxu0 0.0
    %483 = vmatpush1.msra.mxu0 %v353
    %484 = vmatprep.subr.mxu0 0.0
    %485 = vmatpush1.msra.mxu0 %v356
    %486 = vmatprep.subr.mxu0 0.0
    %487 = vmatpush1.msra.mxu0 %v359
    %488 = vmatprep.subr.mxu0 0.0
    %489 = vmatpush1.msra.mxu0 %v362
    %490 = vmatprep.subr.mxu0 0.0
    %491 = vmatpush1.msra.mxu0 %v365
    %492 = vmatprep.subr.mxu0 0.0
    %493 = vmatpush1.msra.mxu0 %v368
    %494 = vmatprep.subr.mxu0 0.0
    %495 = vmatpush1.msra.mxu0 %v371
    %496 = vmatprep.subr.mxu0 0.0
    %497 = vmatpush1.msra.mxu0 %v374
    %498 = vmatprep.subr.mxu0 0.0
    %499 = vmatpush1.msra.mxu0 %v377
    %500 = vmatprep.subr.mxu0 0.0
    %501 = vmatpush1.msra.mxu0 %v380
    %502 = vmatprep.subr.mxu0 0.0
    %503 = vmatpush1.msra.mxu0 %v383
    %504 = vmatprep.subr.mxu0 0.0
    %505 = vmatpush1.msra.mxu0 0.0
    %506 = vmatprep.subr.mxu0 0.0
    %507 = vmatpush1.msra.mxu0 0.0
    %508 = vmatprep.subr.mxu0 0.0
    %509 = vmatpush1.msra.mxu0 0.0
    %510 = vmatprep.subr.mxu0 0.0
    %511 = vmatpush1.msra.mxu0 0.0
    %512 = vmatprep.subr.mxu0 0.0
    %513 = vmatpush1.msra.mxu0 0.0
    %514 = vmatprep.subr.mxu0 0.0
    %515 = vmatpush1.msra.mxu0 0.0
    %516 = vmatprep.subr.mxu0 0.0
    %517 = vmatpush1.msra.mxu0 0.0
    %518 = vmatprep.subr.mxu0 0.0
    %519 = vmatpush1.msra.mxu0 0.0
    %520 = vmatprep.subr.mxu0 0.0
    %521 = vmatpush1.msra.mxu0 0.0
    %522 = vmatprep.subr.mxu0 0.0
    %523 = vmatpush1.msra.mxu0 0.0
    %524 = vmatprep.subr.mxu0 0.0
    %525 = vmatpush1.msra.mxu0 0.0
    %526 = vmatprep.subr.mxu0 0.0
    %527 = vmatpush1.msra.mxu0 0.0
    %528 = vmatprep.subr.mxu0 0.0
    %529 = vmatpush1.msra.mxu0 0.0
    %530 = vmatprep.subr.mxu0 0.0
    %531 = vmatpush1.msra.mxu0 0.0
    %532 = vmatprep.subr.mxu0 0.0
    %533 = vmatpush1.msra.mxu0 0.0
    %534 = vmatprep.subr.mxu0 0.0
    %535 = vmatpush1.msra.mxu0 0.0
    %536 = vmatprep.mubr.f32.mxu0 0.0
    %537 = vmatmul.mubr.f32.gmra.mrb[0].mxu0 0.0
    %v538 = vpop.f32.mrb[0].mxu0
    %v539 = vadd.f32 %v397, %v538
    %v540 = vpop.f32.mrb[0].mxu0
    %541 = vdwg.mxu0
    %v542 = vadd.f32 %v262, %v468
    %v543 = vxor.u32 %v542, 2147483648
    %v544 = vmul.f32 %v543, 1.442695
    %v545 = vpow.pop %v544
    %v546 = vadd.f32 %v545, 1.0
    %v547 = vrcp.pop %v546
    %v548 = vmul.f32 1.0, %v547
    %v549 = vadd.f32 %v264, %v470
    %v550 = vxor.u32 %v549, 2147483648
    %v551 = vmul.f32 %v550, 1.442695
    %v552 = vpow.pop %v551
    %v553 = vadd.f32 %v552, 1.0
    %v554 = vrcp.pop %v553
    %v555 = vmul.f32 1.0, %v554
    %v556 = vmul.f32 %v548, %v539
    %v557 = vadd.f32 %v333, %v556
    %v558 = vtanh.pop %v557
    %v559 = vsub.f32 1.0, %v555
    %v560 = vmul.f32 %v559, %v558
    %v561 = vmul.f32 %v555, 0.0
    %v562 = vadd.f32 %v560, %v561
    %563 = vmatprep.subr.mxu0 %v337
    %564 = vmatpush1.msra.mxu0 %v336
    %565 = vmatprep.subr.mxu0 %v340
    %566 = vmatpush1.msra.mxu0 %v339
    %567 = vmatprep.subr.mxu0 %v343
    %568 = vmatpush1.msra.mxu0 %v342
    %569 = vmatprep.subr.mxu0 %v346
    %570 = vmatpush1.msra.mxu0 %v345
    %571 = vmatprep.subr.mxu0 %v349
    %572 = vmatpush1.msra.mxu0 %v348
    %573 = vmatprep.subr.mxu0 %v352
    %574 = vmatpush1.msra.mxu0 %v351
    %575 = vmatprep.subr.mxu0 %v355
    %576 = vmatpush1.msra.mxu0 %v354
    %577 = vmatprep.subr.mxu0 %v358
    %578 = vmatpush1.msra.mxu0 %v357
    %579 = vmatprep.subr.mxu0 %v361
    %580 = vmatpush1.msra.mxu0 %v360
    %581 = vmatprep.subr.mxu0 %v364
    %582 = vmatpush1.msra.mxu0 %v363
    %583 = vmatprep.subr.mxu0 %v367
    %584 = vmatpush1.msra.mxu0 %v366
    %585 = vmatprep.subr.mxu0 %v370
    %586 = vmatpush1.msra.mxu0 %v369
    %587 = vmatprep.subr.mxu0 %v373
    %588 = vmatpush1.msra.mxu0 %v372
    %589 = vmatprep.subr.mxu0 %v376
    %590 = vmatpush1.msra.mxu0 %v375
    %591 = vmatprep.subr.mxu0 %v379
    %592 = vmatpush1.msra.mxu0 %v378
    %593 = vmatprep.subr.mxu0 %v382
    %594 = vmatpush1.msra.mxu0 %v381
    %595 = vmatprep.subr.mxu0 0.0
    %596 = vmatpush1.msra.mxu0 0.0
    %597 = vmatprep.subr.mxu0 0.0
    %598 = vmatpush1.msra.mxu0 0.0
    %599 = vmatprep.subr.mxu0 0.0
    %600 = vmatpush1.msra.mxu0 0.0
    %601 = vmatprep.subr.mxu0 0.0
    %602 = vmatpush1.msra.mxu0 0.0
    %603 = vmatprep.subr.mxu0 0.0
    %604 = vmatpush1.msra.mxu0 0.0
    %605 = vmatprep.subr.mxu0 0.0
    %606 = vmatpush1.msra.mxu0 0.0
    %607 = vmatprep.subr.mxu0 0.0
    %608 = vmatpush1.msra.mxu0 0.0
    %609 = vmatprep.subr.mxu0 0.0
    %610 = vmatpush1.msra.mxu0 0.0
    %611 = vmatprep.subr.mxu0 0.0
    %612 = vmatpush1.msra.mxu0 0.0
    %613 = vmatprep.subr.mxu0 0.0
    %614 = vmatpush1.msra.mxu0 0.0
    %615 = vmatprep.subr.mxu0 0.0
    %616 = vmatpush1.msra.mxu0 0.0
    %617 = vmatprep.subr.mxu0 0.0
    %618 = vmatpush1.msra.mxu0 0.0
    %619 = vmatprep.subr.mxu0 0.0
    %620 = vmatpush1.msra.mxu0 0.0
    %621 = vmatprep.subr.mxu0 0.0
    %622 = vmatpush1.msra.mxu0 0.0
    %623 = vmatprep.subr.mxu0 0.0
    %624 = vmatpush1.msra.mxu0 0.0
    %625 = vmatprep.subr.mxu0 0.0
    %626 = vmatpush1.msra.mxu0 0.0
    %627 = vmatprep.mubr.f32.mxu0 0.0
    %628 = vmatmul.mubr.f32.gmra.mrb[0].mxu0 %v562
    %v629 = vpop.f32.mrb[0].mxu0
    %v630 = vadd.f32 %v389, %v629
    %v631 = vpop.f32.mrb[0].mxu0
    %v632 = vadd.f32 %v393, %v631
    %633 = vdwg.mxu0
    %634 = vmatprep.subr.mxu0 0.0
    %635 = vmatpush1.msra.mxu0 %v338
    %636 = vmatprep.subr.mxu0 0.0
    %637 = vmatpush1.msra.mxu0 %v341
    %638 = vmatprep.subr.mxu0 0.0
    %639 = vmatpush1.msra.mxu0 %v344
    %640 = vmatprep.subr.mxu0 0.0
    %641 = vmatpush1.msra.mxu0 %v347
    %642 = vmatprep.subr.mxu0 0.0
    %643 = vmatpush1.msra.mxu0 %v350
    %644 = vmatprep.subr.mxu0 0.0
    %645 = vmatpush1.msra.mxu0 %v353
    %646 = vmatprep.subr.mxu0 0.0
    %647 = vmatpush1.msra.mxu0 %v356
    %648 = vmatprep.subr.mxu0 0.0
    %649 = vmatpush1.msra.mxu0 %v359
    %650 = vmatprep.subr.mxu0 0.0
    %651 = vmatpush1.msra.mxu0 %v362
    %652 = vmatprep.subr.mxu0 0.0
    %653 = vmatpush1.msra.mxu0 %v365
    %654 = vmatprep.subr.mxu0 0.0
    %655 = vmatpush1.msra.mxu0 %v368
    %656 = vmatprep.subr.mxu0 0.0
    %657 = vmatpush1.msra.mxu0 %v371
    %658 = vmatprep.subr.mxu0 0.0
    %659 = vmatpush1.msra.mxu0 %v374
    %660 = vmatprep.subr.mxu0 0.0
    %661 = vmatpush1.msra.mxu0 %v377
    %662 = vmatprep.subr.mxu0 0.0
    %663 = vmatpush1.msra.mxu0 %v380
    %664 = vmatprep.subr.mxu0 0.0
    %665 = vmatpush1.msra.mxu0 %v383
    %666 = vmatprep.subr.mxu0 0.0
    %667 = vmatpush1.msra.mxu0 0.0
    %668 = vmatprep.subr.mxu0 0.0
    %669 = vmatpush1.msra.mxu0 0.0
    %670 = vmatprep.subr.mxu0 0.0
    %671 = vmatpush1.msra.mxu0 0.0
    %672 = vmatprep.subr.mxu0 0.0
    %673 = vmatpush1.msra.mxu0 0.0
    %674 = vmatprep.subr.mxu0 0.0
    %675 = vmatpush1.msra.mxu0 0.0
    %676 = vmatprep.subr.mxu0 0.0
    %677 = vmatpush1.msra.mxu0 0.0
    %678 = vmatprep.subr.mxu0 0.0
    %679 = vmatpush1.msra.mxu0 0.0
    %680 = vmatprep.subr.mxu0 0.0
    %681 = vmatpush1.msra.mxu0 0.0
    %682 = vmatprep.subr.mxu0 0.0
    %683 = vmatpush1.msra.mxu0 0.0
    %684 = vmatprep.subr.mxu0 0.0
    %685 = vmatpush1.msra.mxu0 0.0
    %686 = vmatprep.subr.mxu0 0.0
    %687 = vmatpush1.msra.mxu0 0.0
    %688 = vmatprep.subr.mxu0 0.0
    %689 = vmatpush1.msra.mxu0 0.0
    %690 = vmatprep.subr.mxu0 0.0
    %691 = vmatpush1.msra.mxu0 0.0
    %692 = vmatprep.subr.mxu0 0.0
    %693 = vmatpush1.msra.mxu0 0.0
    %694 = vmatprep.subr.mxu0 0.0
    %695 = vmatpush1.msra.mxu0 0.0
    %696 = vmatprep.subr.mxu0 0.0
    %697 = vmatpush1.msra.mxu0 0.0
    %698 = vmatprep.mubr.f32.mxu0 0.0
    %699 = vmatmul.mubr.f32.gmra.mrb[0].mxu0 %v562
    %v700 = vpop.f32.mrb[0].mxu0
    %v701 = vadd.f32 %v397, %v700
    %v702 = vpop.f32.mrb[0].mxu0
    %703 = vdwg.mxu0
    %v705 = vrot.slane %v630, 7
    %v707 = vadd.f32 %v262, %v705
    %v708 = vxor.u32 %v707, 2147483648
    %v709 = vmul.f32 %v708, 1.442695
    %v710 = vpow.pop %v709
    %v711 = vadd.f32 %v710, 1.0
    %v712 = vrcp.pop %v711
    %v713 = vmul.f32 1.0, %v712
    %v715 = vrot.slane %v632, 7
    %v717 = vadd.f32 %v264, %v715
    %v718 = vxor.u32 %v717, 2147483648
    %v719 = vmul.f32 %v718, 1.442695
    %v720 = vpow.pop %v719
    %v721 = vadd.f32 %v720, 1.0
    %v722 = vrcp.pop %v721
    %v723 = vmul.f32 1.0, %v722
    %v725 = vrot.slane %v701, 7
    %v727 = vmul.f32 %v713, %v725
    %v728 = vadd.f32 %v333, %v727
    %v729 = vtanh.pop %v728
    %v730 = vsub.f32 1.0, %v723
    %v731 = vmul.f32 %v730, %v729
    %v733 = vrot.slane %v562, 7
    %v735 = vmul.f32 %v723, %v733
    %v736 = vadd.f32 %v731, %v735
    %v738 = vrot.slane %v736, 1
    %740 = vmatprep.subr.mxu0 %v337
    %741 = vmatpush1.msra.mxu0 %v336
    %742 = vmatprep.subr.mxu0 %v340
    %743 = vmatpush1.msra.mxu0 %v339
    %744 = vmatprep.subr.mxu0 %v343
    %745 = vmatpush1.msra.mxu0 %v342
    %746 = vmatprep.subr.mxu0 %v346
    %747 = vmatpush1.msra.mxu0 %v345
    %748 = vmatprep.subr.mxu0 %v349
    %749 = vmatpush1.msra.mxu0 %v348
    %750 = vmatprep.subr.mxu0 %v352
    %751 = vmatpush1.msra.mxu0 %v351
    %752 = vmatprep.subr.mxu0 %v355
    %753 = vmatpush1.msra.mxu0 %v354
    %754 = vmatprep.subr.mxu0 %v358
    %755 = vmatpush1.msra.mxu0 %v357
    %756 = vmatprep.subr.mxu0 %v361
    %757 = vmatpush1.msra.mxu0 %v360
    %758 = vmatprep.subr.mxu0 %v364
    %759 = vmatpush1.msra.mxu0 %v363
    %760 = vmatprep.subr.mxu0 %v367
    %761 = vmatpush1.msra.mxu0 %v366
    %762 = vmatprep.subr.mxu0 %v370
    %763 = vmatpush1.msra.mxu0 %v369
    %764 = vmatprep.subr.mxu0 %v373
    %765 = vmatpush1.msra.mxu0 %v372
    %766 = vmatprep.subr.mxu0 %v376
    %767 = vmatpush1.msra.mxu0 %v375
    %768 = vmatprep.subr.mxu0 %v379
    %769 = vmatpush1.msra.mxu0 %v378
    %770 = vmatprep.subr.mxu0 %v382
    %771 = vmatpush1.msra.mxu0 %v381
    %772 = vmatprep.subr.mxu0 0.0
    %773 = vmatpush1.msra.mxu0 0.0
    %774 = vmatprep.subr.mxu0 0.0
    %775 = vmatpush1.msra.mxu0 0.0
    %776 = vmatprep.subr.mxu0 0.0
    %777 = vmatpush1.msra.mxu0 0.0
    %778 = vmatprep.subr.mxu0 0.0
    %779 = vmatpush1.msra.mxu0 0.0
    %780 = vmatprep.subr.mxu0 0.0
    %781 = vmatpush1.msra.mxu0 0.0
    %782 = vmatprep.subr.mxu0 0.0
    %783 = vmatpush1.msra.mxu0 0.0
    %784 = vmatprep.subr.mxu0 0.0
    %785 = vmatpush1.msra.mxu0 0.0
    %786 = vmatprep.subr.mxu0 0.0
    %787 = vmatpush1.msra.mxu0 0.0
    %788 = vmatprep.subr.mxu0 0.0
    %789 = vmatpush1.msra.mxu0 0.0
    %790 = vmatprep.subr.mxu0 0.0
    %791 = vmatpush1.msra.mxu0 0.0
    %792 = vmatprep.subr.mxu0 0.0
    %793 = vmatpush1.msra.mxu0 0.0
    %794 = vmatprep.subr.mxu0 0.0
    %795 = vmatpush1.msra.mxu0 0.0
    %796 = vmatprep.subr.mxu0 0.0
    %797 = vmatpush1.msra.mxu0 0.0
    %798 = vmatprep.subr.mxu0 0.0
    %799 = vmatpush1.msra.mxu0 0.0
    %800 = vmatprep.subr.mxu0 0.0
    %801 = vmatpush1.msra.mxu0 0.0
    %802 = vmatprep.subr.mxu0 0.0
    %803 = vmatpush1.msra.mxu0 0.0
    %804 = vmatprep.mubr.f32.mxu0 0.0
    %805 = vmatmul.mubr.f32.gmra.mrb[0].mxu0 %v738
    %v806 = vpop.f32.mrb[0].mxu0
    %v807 = vadd.f32 %v389, %v806
    %v808 = vpop.f32.mrb[0].mxu0
    %v809 = vadd.f32 %v393, %v808
    %810 = vdwg.mxu0
    %811 = vmatprep.subr.mxu0 0.0
    %812 = vmatpush1.msra.mxu0 %v338
    %813 = vmatprep.subr.mxu0 0.0
    %814 = vmatpush1.msra.mxu0 %v341
    %815 = vmatprep.subr.mxu0 0.0
    %816 = vmatpush1.msra.mxu0 %v344
    %817 = vmatprep.subr.mxu0 0.0
    %818 = vmatpush1.msra.mxu0 %v347
    %819 = vmatprep.subr.mxu0 0.0
    %820 = vmatpush1.msra.mxu0 %v350
    %821 = vmatprep.subr.mxu0 0.0
    %822 = vmatpush1.msra.mxu0 %v353
    %823 = vmatprep.subr.mxu0 0.0
    %824 = vmatpush1.msra.mxu0 %v356
    %825 = vmatprep.subr.mxu0 0.0
    %826 = vmatpush1.msra.mxu0 %v359
    %827 = vmatprep.subr.mxu0 0.0
    %828 = vmatpush1.msra.mxu0 %v362
    %829 = vmatprep.subr.mxu0 0.0
    %830 = vmatpush1.msra.mxu0 %v365
    %831 = vmatprep.subr.mxu0 0.0
    %832 = vmatpush1.msra.mxu0 %v368
    %833 = vmatprep.subr.mxu0 0.0
    %834 = vmatpush1.msra.mxu0 %v371
    %835 = vmatprep.subr.mxu0 0.0
    %836 = vmatpush1.msra.mxu0 %v374
    %837 = vmatprep.subr.mxu0 0.0
    %838 = vmatpush1.msra.mxu0 %v377
    %839 = vmatprep.subr.mxu0 0.0
    %840 = vmatpush1.msra.mxu0 %v380
    %841 = vmatprep.subr.mxu0 0.0
    %842 = vmatpush1.msra.mxu0 %v383
    %843 = vmatprep.subr.mxu0 0.0
    %844 = vmatpush1.msra.mxu0 0.0
    %845 = vmatprep.subr.mxu0 0.0
    %846 = vmatpush1.msra.mxu0 0.0
    %847 = vmatprep.subr.mxu0 0.0
    %848 = vmatpush1.msra.mxu0 0.0
    %849 = vmatprep.subr.mxu0 0.0
    %850 = vmatpush1.msra.mxu0 0.0
    %851 = vmatprep.subr.mxu0 0.0
    %852 = vmatpush1.msra.mxu0 0.0
    %853 = vmatprep.subr.mxu0 0.0
    %854 = vmatpush1.msra.mxu0 0.0
    %855 = vmatprep.subr.mxu0 0.0
    %856 = vmatpush1.msra.mxu0 0.0
    %857 = vmatprep.subr.mxu0 0.0
    %858 = vmatpush1.msra.mxu0 0.0
    %859 = vmatprep.subr.mxu0 0.0
    %860 = vmatpush1.msra.mxu0 0.0
    %861 = vmatprep.subr.mxu0 0.0
    %862 = vmatpush1.msra.mxu0 0.0
    %863 = vmatprep.subr.mxu0 0.0
    %864 = vmatpush1.msra.mxu0 0.0
    %865 = vmatprep.subr.mxu0 0.0
    %866 = vmatpush1.msra.mxu0 0.0
    %867 = vmatprep.subr.mxu0 0.0
    %868 = vmatpush1.msra.mxu0 0.0
    %869 = vmatprep.subr.mxu0 0.0
    %870 = vmatpush1.msra.mxu0 0.0
    %871 = vmatprep.subr.mxu0 0.0
    %872 = vmatpush1.msra.mxu0 0.0
    %873 = vmatprep.subr.mxu0 0.0
    %874 = vmatpush1.msra.mxu0 0.0
    %875 = vmatprep.mubr.f32.mxu0 0.0
    %876 = vmatmul.mubr.f32.gmra.mrb[0].mxu0 %v738
    %v877 = vpop.f32.mrb[0].mxu0
    %v878 = vadd.f32 %v397, %v877
    %v879 = vpop.f32.mrb[0].mxu0
    %880 = vdwg.mxu0
    %v882 = vrot.slane %v807, 6
    %v884 = vadd.f32 %v262, %v882
    %v885 = vxor.u32 %v884, 2147483648
    %v886 = vmul.f32 %v885, 1.442695
    %v887 = vpow.pop %v886
    %v888 = vadd.f32 %v887, 1.0
    %v889 = vrcp.pop %v888
    %v890 = vmul.f32 1.0, %v889
    %v892 = vrot.slane %v809, 6
    %v894 = vadd.f32 %v264, %v892
    %v895 = vxor.u32 %v894, 2147483648
    %v896 = vmul.f32 %v895, 1.442695
    %v897 = vpow.pop %v896
    %v898 = vadd.f32 %v897, 1.0
    %v899 = vrcp.pop %v898
    %v900 = vmul.f32 1.0, %v899
    %v902 = vrot.slane %v878, 6
    %v904 = vmul.f32 %v890, %v902
    %v905 = vadd.f32 %v333, %v904
    %v906 = vtanh.pop %v905
    %v907 = vsub.f32 1.0, %v900
    %v908 = vmul.f32 %v907, %v906
    %v909 = vrot.slane %v736, 7
    %v911 = vmul.f32 %v900, %v909
    %v912 = vadd.f32 %v908, %v911
    %v914 = vrot.slane %v912, 2
    %916 = vmatprep.subr.mxu0 %v337
    %917 = vmatpush1.msra.mxu0 %v336
    %918 = vmatprep.subr.mxu0 %v340
    %919 = vmatpush1.msra.mxu0 %v339
    %920 = vmatprep.subr.mxu0 %v343
    %921 = vmatpush1.msra.mxu0 %v342
    %922 = vmatprep.subr.mxu0 %v346
    %923 = vmatpush1.msra.mxu0 %v345
    %924 = vmatprep.subr.mxu0 %v349
    %925 = vmatpush1.msra.mxu0 %v348
    %926 = vmatprep.subr.mxu0 %v352
    %927 = vmatpush1.msra.mxu0 %v351
    %928 = vmatprep.subr.mxu0 %v355
    %929 = vmatpush1.msra.mxu0 %v354
    %930 = vmatprep.subr.mxu0 %v358
    %931 = vmatpush1.msra.mxu0 %v357
    %932 = vmatprep.subr.mxu0 %v361
    %933 = vmatpush1.msra.mxu0 %v360
    %934 = vmatprep.subr.mxu0 %v364
    %935 = vmatpush1.msra.mxu0 %v363
    %936 = vmatprep.subr.mxu0 %v367
    %937 = vmatpush1.msra.mxu0 %v366
    %938 = vmatprep.subr.mxu0 %v370
    %939 = vmatpush1.msra.mxu0 %v369
    %940 = vmatprep.subr.mxu0 %v373
    %941 = vmatpush1.msra.mxu0 %v372
    %942 = vmatprep.subr.mxu0 %v376
    %943 = vmatpush1.msra.mxu0 %v375
    %944 = vmatprep.subr.mxu0 %v379
    %945 = vmatpush1.msra.mxu0 %v378
    %946 = vmatprep.subr.mxu0 %v382
    %947 = vmatpush1.msra.mxu0 %v381
    %948 = vmatprep.subr.mxu0 0.0
    %949 = vmatpush1.msra.mxu0 0.0
    %950 = vmatprep.subr.mxu0 0.0
    %951 = vmatpush1.msra.mxu0 0.0
    %952 = vmatprep.subr.mxu0 0.0
    %953 = vmatpush1.msra.mxu0 0.0
    %954 = vmatprep.subr.mxu0 0.0
    %955 = vmatpush1.msra.mxu0 0.0
    %956 = vmatprep.subr.mxu0 0.0
    %957 = vmatpush1.msra.mxu0 0.0
    %958 = vmatprep.subr.mxu0 0.0
    %959 = vmatpush1.msra.mxu0 0.0
    %960 = vmatprep.subr.mxu0 0.0
    %961 = vmatpush1.msra.mxu0 0.0
    %962 = vmatprep.subr.mxu0 0.0
    %963 = vmatpush1.msra.mxu0 0.0
    %964 = vmatprep.subr.mxu0 0.0
    %965 = vmatpush1.msra.mxu0 0.0
    %966 = vmatprep.subr.mxu0 0.0
    %967 = vmatpush1.msra.mxu0 0.0
    %968 = vmatprep.subr.mxu0 0.0
    %969 = vmatpush1.msra.mxu0 0.0
    %970 = vmatprep.subr.mxu0 0.0
    %971 = vmatpush1.msra.mxu0 0.0
    %972 = vmatprep.subr.mxu0 0.0
    %973 = vmatpush1.msra.mxu0 0.0
    %974 = vmatprep.subr.mxu0 0.0
    %975 = vmatpush1.msra.mxu0 0.0
    %976 = vmatprep.subr.mxu0 0.0
    %977 = vmatpush1.msra.mxu0 0.0
    %978 = vmatprep.subr.mxu0 0.0
    %979 = vmatpush1.msra.mxu0 0.0
    %980 = vmatprep.mubr.f32.mxu0 0.0
    %981 = vmatmul.mubr.f32.gmra.mrb[0].mxu0 %v914
    %v982 = vpop.f32.mrb[0].mxu0
    %v983 = vadd.f32 %v389, %v982
    %v984 = vpop.f32.mrb[0].mxu0
    %v985 = vadd.f32 %v393, %v984
    %986 = vdwg.mxu0
    %987 = vmatprep.subr.mxu0 0.0
    %988 = vmatpush1.msra.mxu0 %v338
    %989 = vmatprep.subr.mxu0 0.0
    %990 = vmatpush1.msra.mxu0 %v341
    %991 = vmatprep.subr.mxu0 0.0
    %992 = vmatpush1.msra.mxu0 %v344
    %993 = vmatprep.subr.mxu0 0.0
    %994 = vmatpush1.msra.mxu0 %v347
    %995 = vmatprep.subr.mxu0 0.0
    %996 = vmatpush1.msra.mxu0 %v350
    %997 = vmatprep.subr.mxu0 0.0
    %998 = vmatpush1.msra.mxu0 %v353
    %999 = vmatprep.subr.mxu0 0.0
    %1000 = vmatpush1.msra.mxu0 %v356
    %1001 = vmatprep.subr.mxu0 0.0
    %1002 = vmatpush1.msra.mxu0 %v359
    %1003 = vmatprep.subr.mxu0 0.0
    %1004 = vmatpush1.msra.mxu0 %v362
    %1005 = vmatprep.subr.mxu0 0.0
    %1006 = vmatpush1.msra.mxu0 %v365
    %1007 = vmatprep.subr.mxu0 0.0
    %1008 = vmatpush1.msra.mxu0 %v368
    %1009 = vmatprep.subr.mxu0 0.0
    %1010 = vmatpush1.msra.mxu0 %v371
    %1011 = vmatprep.subr.mxu0 0.0
    %1012 = vmatpush1.msra.mxu0 %v374
    %1013 = vmatprep.subr.mxu0 0.0
    %1014 = vmatpush1.msra.mxu0 %v377
    %1015 = vmatprep.subr.mxu0 0.0
    %1016 = vmatpush1.msra.mxu0 %v380
    %1017 = vmatprep.subr.mxu0 0.0
    %1018 = vmatpush1.msra.mxu0 %v383
    %1019 = vmatprep.subr.mxu0 0.0
    %1020 = vmatpush1.msra.mxu0 0.0
    %1021 = vmatprep.subr.mxu0 0.0
    %1022 = vmatpush1.msra.mxu0 0.0
    %1023 = vmatprep.subr.mxu0 0.0
    %1024 = vmatpush1.msra.mxu0 0.0
    %1025 = vmatprep.subr.mxu0 0.0
    %1026 = vmatpush1.msra.mxu0 0.0
    %1027 = vmatprep.subr.mxu0 0.0
    %1028 = vmatpush1.msra.mxu0 0.0
    %1029 = vmatprep.subr.mxu0 0.0
    %1030 = vmatpush1.msra.mxu0 0.0
    %1031 = vmatprep.subr.mxu0 0.0
    %1032 = vmatpush1.msra.mxu0 0.0
    %1033 = vmatprep.subr.mxu0 0.0
    %1034 = vmatpush1.msra.mxu0 0.0
    %1035 = vmatprep.subr.mxu0 0.0
    %1036 = vmatpush1.msra.mxu0 0.0
    %1037 = vmatprep.subr.mxu0 0.0
    %1038 = vmatpush1.msra.mxu0 0.0
    %1039 = vmatprep.subr.mxu0 0.0
    %1040 = vmatpush1.msra.mxu0 0.0
    %1041 = vmatprep.subr.mxu0 0.0
    %1042 = vmatpush1.msra.mxu0 0.0
    %1043 = vmatprep.subr.mxu0 0.0
    %1044 = vmatpush1.msra.mxu0 0.0
    %1045 = vmatprep.subr.mxu0 0.0
    %1046 = vmatpush1.msra.mxu0 0.0
    %1047 = vmatprep.subr.mxu0 0.0
    %1048 = vmatpush1.msra.mxu0 0.0
    %1049 = vmatprep.subr.mxu0 0.0
    %1050 = vmatpush1.msra.mxu0 0.0
    %1051 = vmatprep.mubr.f32.mxu0 0.0
    %1052 = vmatmul.mubr.f32.gmra.mrb[0].mxu0 %v914
    %v1053 = vpop.f32.mrb[0].mxu0
    %v1054 = vadd.f32 %v397, %v1053
    %v1055 = vpop.f32.mrb[0].mxu0
    %1056 = vdwg.mxu0
    %v1058 = vrot.slane %v983, 5
    %v1060 = vadd.f32 %v262, %v1058
    %v1061 = vxor.u32 %v1060, 2147483648
    %v1062 = vmul.f32 %v1061, 1.442695
    %v1063 = vpow.pop %v1062
    %v1064 = vadd.f32 %v1063, 1.0
    %v1065 = vrcp.pop %v1064
    %v1066 = vmul.f32 1.0, %v1065
    %v1068 = vrot.slane %v985, 5
    %v1070 = vadd.f32 %v264, %v1068
    %v1071 = vxor.u32 %v1070, 2147483648
    %v1072 = vmul.f32 %v1071, 1.442695
    %v1073 = vpow.pop %v1072
    %v1074 = vadd.f32 %v1073, 1.0
    %v1075 = vrcp.pop %v1074
    %v1076 = vmul.f32 1.0, %v1075
    %v1078 = vrot.slane %v1054, 5
    %v1080 = vmul.f32 %v1066, %v1078
    %v1081 = vadd.f32 %v333, %v1080
    %v1082 = vtanh.pop %v1081
    %v1083 = vsub.f32 1.0, %v1076
    %v1084 = vmul.f32 %v1083, %v1082
    %v1085 = vrot.slane %v912, 7
    %v1087 = vmul.f32 %v1076, %v1085
    %v1088 = vadd.f32 %v1084, %v1087
    %v1090 = vrot.slane %v1088, 3
    %1092 = vmatprep.subr.mxu0 %v337
    %1093 = vmatpush1.msra.mxu0 %v336
    %1094 = vmatprep.subr.mxu0 %v340
    %1095 = vmatpush1.msra.mxu0 %v339
    %1096 = vmatprep.subr.mxu0 %v343
    %1097 = vmatpush1.msra.mxu0 %v342
    %1098 = vmatprep.subr.mxu0 %v346
    %1099 = vmatpush1.msra.mxu0 %v345
    %1100 = vmatprep.subr.mxu0 %v349
    %1101 = vmatpush1.msra.mxu0 %v348
    %1102 = vmatprep.subr.mxu0 %v352
    %1103 = vmatpush1.msra.mxu0 %v351
    %1104 = vmatprep.subr.mxu0 %v355
    %1105 = vmatpush1.msra.mxu0 %v354
    %1106 = vmatprep.subr.mxu0 %v358
    %1107 = vmatpush1.msra.mxu0 %v357
    %1108 = vmatprep.subr.mxu0 %v361
    %1109 = vmatpush1.msra.mxu0 %v360
    %1110 = vmatprep.subr.mxu0 %v364
    %1111 = vmatpush1.msra.mxu0 %v363
    %1112 = vmatprep.subr.mxu0 %v367
    %1113 = vmatpush1.msra.mxu0 %v366
    %1114 = vmatprep.subr.mxu0 %v370
    %1115 = vmatpush1.msra.mxu0 %v369
    %1116 = vmatprep.subr.mxu0 %v373
    %1117 = vmatpush1.msra.mxu0 %v372
    %1118 = vmatprep.subr.mxu0 %v376
    %1119 = vmatpush1.msra.mxu0 %v375
    %1120 = vmatprep.subr.mxu0 %v379
    %1121 = vmatpush1.msra.mxu0 %v378
    %1122 = vmatprep.subr.mxu0 %v382
    %1123 = vmatpush1.msra.mxu0 %v381
    %1124 = vmatprep.subr.mxu0 0.0
    %1125 = vmatpush1.msra.mxu0 0.0
    %1126 = vmatprep.subr.mxu0 0.0
    %1127 = vmatpush1.msra.mxu0 0.0
    %1128 = vmatprep.subr.mxu0 0.0
    %1129 = vmatpush1.msra.mxu0 0.0
    %1130 = vmatprep.subr.mxu0 0.0
    %1131 = vmatpush1.msra.mxu0 0.0
    %1132 = vmatprep.subr.mxu0 0.0
    %1133 = vmatpush1.msra.mxu0 0.0
    %1134 = vmatprep.subr.mxu0 0.0
    %1135 = vmatpush1.msra.mxu0 0.0
    %1136 = vmatprep.subr.mxu0 0.0
    %1137 = vmatpush1.msra.mxu0 0.0
    %1138 = vmatprep.subr.mxu0 0.0
    %1139 = vmatpush1.msra.mxu0 0.0
    %1140 = vmatprep.subr.mxu0 0.0
    %1141 = vmatpush1.msra.mxu0 0.0
    %1142 = vmatprep.subr.mxu0 0.0
    %1143 = vmatpush1.msra.mxu0 0.0
    %1144 = vmatprep.subr.mxu0 0.0
    %1145 = vmatpush1.msra.mxu0 0.0
    %1146 = vmatprep.subr.mxu0 0.0
    %1147 = vmatpush1.msra.mxu0 0.0
    %1148 = vmatprep.subr.mxu0 0.0
    %1149 = vmatpush1.msra.mxu0 0.0
    %1150 = vmatprep.subr.mxu0 0.0
    %1151 = vmatpush1.msra.mxu0 0.0
    %1152 = vmatprep.subr.mxu0 0.0
    %1153 = vmatpush1.msra.mxu0 0.0
    %1154 = vmatprep.subr.mxu0 0.0
    %1155 = vmatpush1.msra.mxu0 0.0
    %1156 = vmatprep.mubr.f32.mxu0 0.0
    %1157 = vmatmul.mubr.f32.gmra.mrb[0].mxu0 %v1090
    %v1158 = vpop.f32.mrb[0].mxu0
    %v1159 = vadd.f32 %v389, %v1158
    %v1160 = vpop.f32.mrb[0].mxu0
    %v1161 = vadd.f32 %v393, %v1160
    %1162 = vdwg.mxu0
    %1163 = vmatprep.subr.mxu0 0.0
    %1164 = vmatpush1.msra.mxu0 %v338
    %1165 = vmatprep.subr.mxu0 0.0
    %1166 = vmatpush1.msra.mxu0 %v341
    %1167 = vmatprep.subr.mxu0 0.0
    %1168 = vmatpush1.msra.mxu0 %v344
    %1169 = vmatprep.subr.mxu0 0.0
    %1170 = vmatpush1.msra.mxu0 %v347
    %1171 = vmatprep.subr.mxu0 0.0
    %1172 = vmatpush1.msra.mxu0 %v350
    %1173 = vmatprep.subr.mxu0 0.0
    %1174 = vmatpush1.msra.mxu0 %v353
    %1175 = vmatprep.subr.mxu0 0.0
    %1176 = vmatpush1.msra.mxu0 %v356
    %1177 = vmatprep.subr.mxu0 0.0
    %1178 = vmatpush1.msra.mxu0 %v359
    %1179 = vmatprep.subr.mxu0 0.0
    %1180 = vmatpush1.msra.mxu0 %v362
    %1181 = vmatprep.subr.mxu0 0.0
    %1182 = vmatpush1.msra.mxu0 %v365
    %1183 = vmatprep.subr.mxu0 0.0
    %1184 = vmatpush1.msra.mxu0 %v368
    %1185 = vmatprep.subr.mxu0 0.0
    %1186 = vmatpush1.msra.mxu0 %v371
    %1187 = vmatprep.subr.mxu0 0.0
    %1188 = vmatpush1.msra.mxu0 %v374
    %1189 = vmatprep.subr.mxu0 0.0
    %1190 = vmatpush1.msra.mxu0 %v377
    %1191 = vmatprep.subr.mxu0 0.0
    %1192 = vmatpush1.msra.mxu0 %v380
    %1193 = vmatprep.subr.mxu0 0.0
    %1194 = vmatpush1.msra.mxu0 %v383
    %1195 = vmatprep.subr.mxu0 0.0
    %1196 = vmatpush1.msra.mxu0 0.0
    %1197 = vmatprep.subr.mxu0 0.0
    %1198 = vmatpush1.msra.mxu0 0.0
    %1199 = vmatprep.subr.mxu0 0.0
    %1200 = vmatpush1.msra.mxu0 0.0
    %1201 = vmatprep.subr.mxu0 0.0
    %1202 = vmatpush1.msra.mxu0 0.0
    %1203 = vmatprep.subr.mxu0 0.0
    %1204 = vmatpush1.msra.mxu0 0.0
    %1205 = vmatprep.subr.mxu0 0.0
    %1206 = vmatpush1.msra.mxu0 0.0
    %1207 = vmatprep.subr.mxu0 0.0
    %1208 = vmatpush1.msra.mxu0 0.0
    %1209 = vmatprep.subr.mxu0 0.0
    %1210 = vmatpush1.msra.mxu0 0.0
    %1211 = vmatprep.subr.mxu0 0.0
    %1212 = vmatpush1.msra.mxu0 0.0
    %1213 = vmatprep.subr.mxu0 0.0
    %1214 = vmatpush1.msra.mxu0 0.0
    %1215 = vmatprep.subr.mxu0 0.0
    %1216 = vmatpush1.msra.mxu0 0.0
    %1217 = vmatprep.subr.mxu0 0.0
    %1218 = vmatpush1.msra.mxu0 0.0
    %1219 = vmatprep.subr.mxu0 0.0
    %1220 = vmatpush1.msra.mxu0 0.0
    %1221 = vmatprep.subr.mxu0 0.0
    %1222 = vmatpush1.msra.mxu0 0.0
    %1223 = vmatprep.subr.mxu0 0.0
    %1224 = vmatpush1.msra.mxu0 0.0
    %1225 = vmatprep.subr.mxu0 0.0
    %1226 = vmatpush1.msra.mxu0 0.0
    %1227 = vmatprep.mubr.f32.mxu0 0.0
    %1228 = vmatmul.mubr.f32.gmra.mrb[0].mxu0 %v1090
    %v1229 = vpop.f32.mrb[0].mxu0
    %v1230 = vadd.f32 %v397, %v1229
    %v1231 = vpop.f32.mrb[0].mxu0
    %1232 = vdwg.mxu0
    %v1234 = vrot.slane %v1159, 4
    %v1236 = vadd.f32 %v262, %v1234
    %v1237 = vxor.u32 %v1236, 2147483648
    %v1238 = vmul.f32 %v1237, 1.442695
    %v1239 = vpow.pop %v1238
    %v1240 = vadd.f32 %v1239, 1.0
    %v1241 = vrcp.pop %v1240
    %v1242 = vmul.f32 1.0, %v1241
    %v1244 = vrot.slane %v1161, 4
    %v1246 = vadd.f32 %v264, %v1244
    %v1247 = vxor.u32 %v1246, 2147483648
    %v1248 = vmul.f32 %v1247, 1.442695
    %v1249 = vpow.pop %v1248
    %v1250 = vadd.f32 %v1249, 1.0
    %v1251 = vrcp.pop %v1250
    %v1252 = vmul.f32 1.0, %v1251
    %v1254 = vrot.slane %v1230, 4
    %v1256 = vmul.f32 %v1242, %v1254
    %v1257 = vadd.f32 %v333, %v1256
    %v1258 = vtanh.pop %v1257
    %v1259 = vsub.f32 1.0, %v1252
    %v1260 = vmul.f32 %v1259, %v1258
    %v1261 = vrot.slane %v1088, 7
    %v1263 = vmul.f32 %v1252, %v1261
    %v1264 = vadd.f32 %v1260, %v1263
    %v1266 = vrot.slane %v1264, 4
    %1268 = vmatprep.subr.mxu0 %v337
    %1269 = vmatpush1.msra.mxu0 %v336
    %1270 = vmatprep.subr.mxu0 %v340
    %1271 = vmatpush1.msra.mxu0 %v339
    %1272 = vmatprep.subr.mxu0 %v343
    %1273 = vmatpush1.msra.mxu0 %v342
    %1274 = vmatprep.subr.mxu0 %v346
    %1275 = vmatpush1.msra.mxu0 %v345
    %1276 = vmatprep.subr.mxu0 %v349
    %1277 = vmatpush1.msra.mxu0 %v348
    %1278 = vmatprep.subr.mxu0 %v352
    %1279 = vmatpush1.msra.mxu0 %v351
    %1280 = vmatprep.subr.mxu0 %v355
    %1281 = vmatpush1.msra.mxu0 %v354
    %1282 = vmatprep.subr.mxu0 %v358
    %1283 = vmatpush1.msra.mxu0 %v357
    %1284 = vmatprep.subr.mxu0 %v361
    %1285 = vmatpush1.msra.mxu0 %v360
    %1286 = vmatprep.subr.mxu0 %v364
    %1287 = vmatpush1.msra.mxu0 %v363
    %1288 = vmatprep.subr.mxu0 %v367
    %1289 = vmatpush1.msra.mxu0 %v366
    %1290 = vmatprep.subr.mxu0 %v370
    %1291 = vmatpush1.msra.mxu0 %v369
    %1292 = vmatprep.subr.mxu0 %v373
    %1293 = vmatpush1.msra.mxu0 %v372
    %1294 = vmatprep.subr.mxu0 %v376
    %1295 = vmatpush1.msra.mxu0 %v375
    %1296 = vmatprep.subr.mxu0 %v379
    %1297 = vmatpush1.msra.mxu0 %v378
    %1298 = vmatprep.subr.mxu0 %v382
    %1299 = vmatpush1.msra.mxu0 %v381
    %1300 = vmatprep.subr.mxu0 0.0
    %1301 = vmatpush1.msra.mxu0 0.0
    %1302 = vmatprep.subr.mxu0 0.0
    %1303 = vmatpush1.msra.mxu0 0.0
    %1304 = vmatprep.subr.mxu0 0.0
    %1305 = vmatpush1.msra.mxu0 0.0
    %1306 = vmatprep.subr.mxu0 0.0
    %1307 = vmatpush1.msra.mxu0 0.0
    %1308 = vmatprep.subr.mxu0 0.0
    %1309 = vmatpush1.msra.mxu0 0.0
    %1310 = vmatprep.subr.mxu0 0.0
    %1311 = vmatpush1.msra.mxu0 0.0
    %1312 = vmatprep.subr.mxu0 0.0
    %1313 = vmatpush1.msra.mxu0 0.0
    %1314 = vmatprep.subr.mxu0 0.0
    %1315 = vmatpush1.msra.mxu0 0.0
    %1316 = vmatprep.subr.mxu0 0.0
    %1317 = vmatpush1.msra.mxu0 0.0
    %1318 = vmatprep.subr.mxu0 0.0
    %1319 = vmatpush1.msra.mxu0 0.0
    %1320 = vmatprep.subr.mxu0 0.0
    %1321 = vmatpush1.msra.mxu0 0.0
    %1322 = vmatprep.subr.mxu0 0.0
    %1323 = vmatpush1.msra.mxu0 0.0
    %1324 = vmatprep.subr.mxu0 0.0
    %1325 = vmatpush1.msra.mxu0 0.0
    %1326 = vmatprep.subr.mxu0 0.0
    %1327 = vmatpush1.msra.mxu0 0.0
    %1328 = vmatprep.subr.mxu0 0.0
    %1329 = vmatpush1.msra.mxu0 0.0
    %1330 = vmatprep.subr.mxu0 0.0
    %1331 = vmatpush1.msra.mxu0 0.0
    %1332 = vmatprep.mubr.f32.mxu0 0.0
    %1333 = vmatmul.mubr.f32.gmra.mrb[0].mxu0 %v1266
    %v1334 = vpop.f32.mrb[0].mxu0
    %v1335 = vadd.f32 %v389, %v1334
    %v1336 = vpop.f32.mrb[0].mxu0
    %v1337 = vadd.f32 %v393, %v1336
    %1338 = vdwg.mxu0
    %1339 = vmatprep.subr.mxu0 0.0
    %1340 = vmatpush1.msra.mxu0 %v338
    %1341 = vmatprep.subr.mxu0 0.0
    %1342 = vmatpush1.msra.mxu0 %v341
    %1343 = vmatprep.subr.mxu0 0.0
    %1344 = vmatpush1.msra.mxu0 %v344
    %1345 = vmatprep.subr.mxu0 0.0
    %1346 = vmatpush1.msra.mxu0 %v347
    %1347 = vmatprep.subr.mxu0 0.0
    %1348 = vmatpush1.msra.mxu0 %v350
    %1349 = vmatprep.subr.mxu0 0.0
    %1350 = vmatpush1.msra.mxu0 %v353
    %1351 = vmatprep.subr.mxu0 0.0
    %1352 = vmatpush1.msra.mxu0 %v356
    %1353 = vmatprep.subr.mxu0 0.0
    %1354 = vmatpush1.msra.mxu0 %v359
    %1355 = vmatprep.subr.mxu0 0.0
    %1356 = vmatpush1.msra.mxu0 %v362
    %1357 = vmatprep.subr.mxu0 0.0
    %1358 = vmatpush1.msra.mxu0 %v365
    %1359 = vmatprep.subr.mxu0 0.0
    %1360 = vmatpush1.msra.mxu0 %v368
    %1361 = vmatprep.subr.mxu0 0.0
    %1362 = vmatpush1.msra.mxu0 %v371
    %1363 = vmatprep.subr.mxu0 0.0
    %1364 = vmatpush1.msra.mxu0 %v374
    %1365 = vmatprep.subr.mxu0 0.0
    %1366 = vmatpush1.msra.mxu0 %v377
    %1367 = vmatprep.subr.mxu0 0.0
    %1368 = vmatpush1.msra.mxu0 %v380
    %1369 = vmatprep.subr.mxu0 0.0
    %1370 = vmatpush1.msra.mxu0 %v383
    %1371 = vmatprep.subr.mxu0 0.0
    %1372 = vmatpush1.msra.mxu0 0.0
    %1373 = vmatprep.subr.mxu0 0.0
    %1374 = vmatpush1.msra.mxu0 0.0
    %1375 = vmatprep.subr.mxu0 0.0
    %1376 = vmatpush1.msra.mxu0 0.0
    %1377 = vmatprep.subr.mxu0 0.0
    %1378 = vmatpush1.msra.mxu0 0.0
    %1379 = vmatprep.subr.mxu0 0.0
    %1380 = vmatpush1.msra.mxu0 0.0
    %1381 = vmatprep.subr.mxu0 0.0
    %1382 = vmatpush1.msra.mxu0 0.0
    %1383 = vmatprep.subr.mxu0 0.0
    %1384 = vmatpush1.msra.mxu0 0.0
    %1385 = vmatprep.subr.mxu0 0.0
    %1386 = vmatpush1.msra.mxu0 0.0
    %1387 = vmatprep.subr.mxu0 0.0
    %1388 = vmatpush1.msra.mxu0 0.0
    %1389 = vmatprep.subr.mxu0 0.0
    %1390 = vmatpush1.msra.mxu0 0.0
    %1391 = vmatprep.subr.mxu0 0.0
    %1392 = vmatpush1.msra.mxu0 0.0
    %1393 = vmatprep.subr.mxu0 0.0
    %1394 = vmatpush1.msra.mxu0 0.0
    %1395 = vmatprep.subr.mxu0 0.0
    %1396 = vmatpush1.msra.mxu0 0.0
    %1397 = vmatprep.subr.mxu0 0.0
    %1398 = vmatpush1.msra.mxu0 0.0
    %1399 = vmatprep.subr.mxu0 0.0
    %1400 = vmatpush1.msra.mxu0 0.0
    %1401 = vmatprep.subr.mxu0 0.0
    %1402 = vmatpush1.msra.mxu0 0.0
    %1403 = vmatprep.mubr.f32.mxu0 0.0
    %1404 = vmatmul.mubr.f32.gmra.mrb[0].mxu0 %v1266
    %v1405 = vpop.f32.mrb[0].mxu0
    %v1406 = vadd.f32 %v397, %v1405
    %v1407 = vpop.f32.mrb[0].mxu0
    %1408 = vdwg.mxu0
    %v1410 = vrot.slane %v1335, 3
    %v1412 = vadd.f32 %v262, %v1410
    %v1413 = vxor.u32 %v1412, 2147483648
    %v1414 = vmul.f32 %v1413, 1.442695
    %v1415 = vpow.pop %v1414
    %v1416 = vadd.f32 %v1415, 1.0
    %v1417 = vrcp.pop %v1416
    %v1418 = vmul.f32 1.0, %v1417
    %v1420 = vrot.slane %v1337, 3
    %v1422 = vadd.f32 %v264, %v1420
    %v1423 = vxor.u32 %v1422, 2147483648
    %v1424 = vmul.f32 %v1423, 1.442695
    %v1425 = vpow.pop %v1424
    %v1426 = vadd.f32 %v1425, 1.0
    %v1427 = vrcp.pop %v1426
    %v1428 = vmul.f32 1.0, %v1427
    %v1430 = vrot.slane %v1406, 3
    %v1432 = vmul.f32 %v1418, %v1430
    %v1433 = vadd.f32 %v333, %v1432
    %v1434 = vtanh.pop %v1433
    %v1435 = vsub.f32 1.0, %v1428
    %v1436 = vmul.f32 %v1435, %v1434
    %v1437 = vrot.slane %v1264, 7
    %v1439 = vmul.f32 %v1428, %v1437
    %v1440 = vadd.f32 %v1436, %v1439
    %v1442 = vrot.slane %v1440, 5
    %1444 = vmatprep.subr.mxu0 %v337
    %1445 = vmatpush1.msra.mxu0 %v336
    %1446 = vmatprep.subr.mxu0 %v340
    %1447 = vmatpush1.msra.mxu0 %v339
    %1448 = vmatprep.subr.mxu0 %v343
    %1449 = vmatpush1.msra.mxu0 %v342
    %1450 = vmatprep.subr.mxu0 %v346
    %1451 = vmatpush1.msra.mxu0 %v345
    %1452 = vmatprep.subr.mxu0 %v349
    %1453 = vmatpush1.msra.mxu0 %v348
    %1454 = vmatprep.subr.mxu0 %v352
    %1455 = vmatpush1.msra.mxu0 %v351
    %1456 = vmatprep.subr.mxu0 %v355
    %1457 = vmatpush1.msra.mxu0 %v354
    %1458 = vmatprep.subr.mxu0 %v358
    %1459 = vmatpush1.msra.mxu0 %v357
    %1460 = vmatprep.subr.mxu0 %v361
    %1461 = vmatpush1.msra.mxu0 %v360
    %1462 = vmatprep.subr.mxu0 %v364
    %1463 = vmatpush1.msra.mxu0 %v363
    %1464 = vmatprep.subr.mxu0 %v367
    %1465 = vmatpush1.msra.mxu0 %v366
    %1466 = vmatprep.subr.mxu0 %v370
    %1467 = vmatpush1.msra.mxu0 %v369
    %1468 = vmatprep.subr.mxu0 %v373
    %1469 = vmatpush1.msra.mxu0 %v372
    %1470 = vmatprep.subr.mxu0 %v376
    %1471 = vmatpush1.msra.mxu0 %v375
    %1472 = vmatprep.subr.mxu0 %v379
    %1473 = vmatpush1.msra.mxu0 %v378
    %1474 = vmatprep.subr.mxu0 %v382
    %1475 = vmatpush1.msra.mxu0 %v381
    %1476 = vmatprep.subr.mxu0 0.0
    %1477 = vmatpush1.msra.mxu0 0.0
    %1478 = vmatprep.subr.mxu0 0.0
    %1479 = vmatpush1.msra.mxu0 0.0
    %1480 = vmatprep.subr.mxu0 0.0
    %1481 = vmatpush1.msra.mxu0 0.0
    %1482 = vmatprep.subr.mxu0 0.0
    %1483 = vmatpush1.msra.mxu0 0.0
    %1484 = vmatprep.subr.mxu0 0.0
    %1485 = vmatpush1.msra.mxu0 0.0
    %1486 = vmatprep.subr.mxu0 0.0
    %1487 = vmatpush1.msra.mxu0 0.0
    %1488 = vmatprep.subr.mxu0 0.0
    %1489 = vmatpush1.msra.mxu0 0.0
    %1490 = vmatprep.subr.mxu0 0.0
    %1491 = vmatpush1.msra.mxu0 0.0
    %1492 = vmatprep.subr.mxu0 0.0
    %1493 = vmatpush1.msra.mxu0 0.0
    %1494 = vmatprep.subr.mxu0 0.0
    %1495 = vmatpush1.msra.mxu0 0.0
    %1496 = vmatprep.subr.mxu0 0.0
    %1497 = vmatpush1.msra.mxu0 0.0
    %1498 = vmatprep.subr.mxu0 0.0
    %1499 = vmatpush1.msra.mxu0 0.0
    %1500 = vmatprep.subr.mxu0 0.0
    %1501 = vmatpush1.msra.mxu0 0.0
    %1502 = vmatprep.subr.mxu0 0.0
    %1503 = vmatpush1.msra.mxu0 0.0
    %1504 = vmatprep.subr.mxu0 0.0
    %1505 = vmatpush1.msra.mxu0 0.0
    %1506 = vmatprep.subr.mxu0 0.0
    %1507 = vmatpush1.msra.mxu0 0.0
    %1508 = vmatprep.mubr.f32.mxu0 0.0
    %1509 = vmatmul.mubr.f32.gmra.mrb[0].mxu0 %v1442
    %v1510 = vpop.f32.mrb[0].mxu0
    %v1511 = vadd.f32 %v389, %v1510
    %v1512 = vpop.f32.mrb[0].mxu0
    %v1513 = vadd.f32 %v393, %v1512
    %1514 = vdwg.mxu0
    %1515 = vmatprep.subr.mxu0 0.0
    %1516 = vmatpush1.msra.mxu0 %v338
    %1517 = vmatprep.subr.mxu0 0.0
    %1518 = vmatpush1.msra.mxu0 %v341
    %1519 = vmatprep.subr.mxu0 0.0
    %1520 = vmatpush1.msra.mxu0 %v344
    %1521 = vmatprep.subr.mxu0 0.0
    %1522 = vmatpush1.msra.mxu0 %v347
    %1523 = vmatprep.subr.mxu0 0.0
    %1524 = vmatpush1.msra.mxu0 %v350
    %1525 = vmatprep.subr.mxu0 0.0
    %1526 = vmatpush1.msra.mxu0 %v353
    %1527 = vmatprep.subr.mxu0 0.0
    %1528 = vmatpush1.msra.mxu0 %v356
    %1529 = vmatprep.subr.mxu0 0.0
    %1530 = vmatpush1.msra.mxu0 %v359
    %1531 = vmatprep.subr.mxu0 0.0
    %1532 = vmatpush1.msra.mxu0 %v362
    %1533 = vmatprep.subr.mxu0 0.0
    %1534 = vmatpush1.msra.mxu0 %v365
    %1535 = vmatprep.subr.mxu0 0.0
    %1536 = vmatpush1.msra.mxu0 %v368
    %1537 = vmatprep.subr.mxu0 0.0
    %1538 = vmatpush1.msra.mxu0 %v371
    %1539 = vmatprep.subr.mxu0 0.0
    %1540 = vmatpush1.msra.mxu0 %v374
    %1541 = vmatprep.subr.mxu0 0.0
    %1542 = vmatpush1.msra.mxu0 %v377
    %1543 = vmatprep.subr.mxu0 0.0
    %1544 = vmatpush1.msra.mxu0 %v380
    %1545 = vmatprep.subr.mxu0 0.0
    %1546 = vmatpush1.msra.mxu0 %v383
    %1547 = vmatprep.subr.mxu0 0.0
    %1548 = vmatpush1.msra.mxu0 0.0
    %1549 = vmatprep.subr.mxu0 0.0
    %1550 = vmatpush1.msra.mxu0 0.0
    %1551 = vmatprep.subr.mxu0 0.0
    %1552 = vmatpush1.msra.mxu0 0.0
    %1553 = vmatprep.subr.mxu0 0.0
    %1554 = vmatpush1.msra.mxu0 0.0
    %1555 = vmatprep.subr.mxu0 0.0
    %1556 = vmatpush1.msra.mxu0 0.0
    %1557 = vmatprep.subr.mxu0 0.0
    %1558 = vmatpush1.msra.mxu0 0.0
    %1559 = vmatprep.subr.mxu0 0.0
    %1560 = vmatpush1.msra.mxu0 0.0
    %1561 = vmatprep.subr.mxu0 0.0
    %1562 = vmatpush1.msra.mxu0 0.0
    %1563 = vmatprep.subr.mxu0 0.0
    %1564 = vmatpush1.msra.mxu0 0.0
    %1565 = vmatprep.subr.mxu0 0.0
    %1566 = vmatpush1.msra.mxu0 0.0
    %1567 = vmatprep.subr.mxu0 0.0
    %1568 = vmatpush1.msra.mxu0 0.0
    %1569 = vmatprep.subr.mxu0 0.0
    %1570 = vmatpush1.msra.mxu0 0.0
    %1571 = vmatprep.subr.mxu0 0.0
    %1572 = vmatpush1.msra.mxu0 0.0
    %1573 = vmatprep.subr.mxu0 0.0
    %1574 = vmatpush1.msra.mxu0 0.0
    %1575 = vmatprep.subr.mxu0 0.0
    %1576 = vmatpush1.msra.mxu0 0.0
    %1577 = vmatprep.subr.mxu0 0.0
    %1578 = vmatpush1.msra.mxu0 0.0
    %1579 = vmatprep.mubr.f32.mxu0 0.0
    %1580 = vmatmul.mubr.f32.gmra.mrb[0].mxu0 %v1442
    %v1581 = vpop.f32.mrb[0].mxu0
    %v1582 = vadd.f32 %v397, %v1581
    %v1583 = vpop.f32.mrb[0].mxu0
    %1584 = vdwg.mxu0
    %v1586 = vrot.slane %v1511, 2
    %v1588 = vadd.f32 %v262, %v1586
    %v1589 = vxor.u32 %v1588, 2147483648
    %v1590 = vmul.f32 %v1589, 1.442695
    %v1591 = vpow.pop %v1590
    %v1592 = vadd.f32 %v1591, 1.0
    %v1593 = vrcp.pop %v1592
    %v1594 = vmul.f32 1.0, %v1593
    %v1596 = vrot.slane %v1513, 2
    %v1598 = vadd.f32 %v264, %v1596
    %v1599 = vxor.u32 %v1598, 2147483648
    %v1600 = vmul.f32 %v1599, 1.442695
    %v1601 = vpow.pop %v1600
    %v1602 = vadd.f32 %v1601, 1.0
    %v1603 = vrcp.pop %v1602
    %v1604 = vmul.f32 1.0, %v1603
    %v1606 = vrot.slane %v1582, 2
    %v1608 = vmul.f32 %v1594, %v1606
    %v1609 = vadd.f32 %v333, %v1608
    %v1610 = vtanh.pop %v1609
    %v1611 = vsub.f32 1.0, %v1604
    %v1612 = vmul.f32 %v1611, %v1610
    %v1613 = vrot.slane %v1440, 7
    %v1615 = vmul.f32 %v1604, %v1613
    %v1616 = vadd.f32 %v1612, %v1615
    %v1618 = vrot.slane %v1616, 6
    %1620 = vmatprep.subr.mxu0 %v337
    %1621 = vmatpush1.msra.mxu0 %v336
    %1622 = vmatprep.subr.mxu0 %v340
    %1623 = vmatpush1.msra.mxu0 %v339
    %1624 = vmatprep.subr.mxu0 %v343
    %1625 = vmatpush1.msra.mxu0 %v342
    %1626 = vmatprep.subr.mxu0 %v346
    %1627 = vmatpush1.msra.mxu0 %v345
    %1628 = vmatprep.subr.mxu0 %v349
    %1629 = vmatpush1.msra.mxu0 %v348
    %1630 = vmatprep.subr.mxu0 %v352
    %1631 = vmatpush1.msra.mxu0 %v351
    %1632 = vmatprep.subr.mxu0 %v355
    %1633 = vmatpush1.msra.mxu0 %v354
    %1634 = vmatprep.subr.mxu0 %v358
    %1635 = vmatpush1.msra.mxu0 %v357
    %1636 = vmatprep.subr.mxu0 %v361
    %1637 = vmatpush1.msra.mxu0 %v360
    %1638 = vmatprep.subr.mxu0 %v364
    %1639 = vmatpush1.msra.mxu0 %v363
    %1640 = vmatprep.subr.mxu0 %v367
    %1641 = vmatpush1.msra.mxu0 %v366
    %1642 = vmatprep.subr.mxu0 %v370
    %1643 = vmatpush1.msra.mxu0 %v369
    %1644 = vmatprep.subr.mxu0 %v373
    %1645 = vmatpush1.msra.mxu0 %v372
    %1646 = vmatprep.subr.mxu0 %v376
    %1647 = vmatpush1.msra.mxu0 %v375
    %1648 = vmatprep.subr.mxu0 %v379
    %1649 = vmatpush1.msra.mxu0 %v378
    %1650 = vmatprep.subr.mxu0 %v382
    %1651 = vmatpush1.msra.mxu0 %v381
    %1652 = vmatprep.subr.mxu0 0.0
    %1653 = vmatpush1.msra.mxu0 0.0
    %1654 = vmatprep.subr.mxu0 0.0
    %1655 = vmatpush1.msra.mxu0 0.0
    %1656 = vmatprep.subr.mxu0 0.0
    %1657 = vmatpush1.msra.mxu0 0.0
    %1658 = vmatprep.subr.mxu0 0.0
    %1659 = vmatpush1.msra.mxu0 0.0
    %1660 = vmatprep.subr.mxu0 0.0
    %1661 = vmatpush1.msra.mxu0 0.0
    %1662 = vmatprep.subr.mxu0 0.0
    %1663 = vmatpush1.msra.mxu0 0.0
    %1664 = vmatprep.subr.mxu0 0.0
    %1665 = vmatpush1.msra.mxu0 0.0
    %1666 = vmatprep.subr.mxu0 0.0
    %1667 = vmatpush1.msra.mxu0 0.0
    %1668 = vmatprep.subr.mxu0 0.0
    %1669 = vmatpush1.msra.mxu0 0.0
    %1670 = vmatprep.subr.mxu0 0.0
    %1671 = vmatpush1.msra.mxu0 0.0
    %1672 = vmatprep.subr.mxu0 0.0
    %1673 = vmatpush1.msra.mxu0 0.0
    %1674 = vmatprep.subr.mxu0 0.0
    %1675 = vmatpush1.msra.mxu0 0.0
    %1676 = vmatprep.subr.mxu0 0.0
    %1677 = vmatpush1.msra.mxu0 0.0
    %1678 = vmatprep.subr.mxu0 0.0
    %1679 = vmatpush1.msra.mxu0 0.0
    %1680 = vmatprep.subr.mxu0 0.0
    %1681 = vmatpush1.msra.mxu0 0.0
    %1682 = vmatprep.subr.mxu0 0.0
    %1683 = vmatpush1.msra.mxu0 0.0
    %1684 = vmatprep.mubr.f32.mxu0 0.0
    %1685 = vmatmul.mubr.f32.gmra.mrb[0].mxu0 %v1618
    %v1686 = vpop.f32.mrb[0].mxu0
    %v1687 = vadd.f32 %v389, %v1686
    %v1688 = vpop.f32.mrb[0].mxu0
    %v1689 = vadd.f32 %v393, %v1688
    %1690 = vdwg.mxu0
    %1691 = vmatprep.subr.mxu0 0.0
    %1692 = vmatpush1.msra.mxu0 %v338
    %1693 = vmatprep.subr.mxu0 0.0
    %1694 = vmatpush1.msra.mxu0 %v341
    %1695 = vmatprep.subr.mxu0 0.0
    %1696 = vmatpush1.msra.mxu0 %v344
    %1697 = vmatprep.subr.mxu0 0.0
    %1698 = vmatpush1.msra.mxu0 %v347
    %1699 = vmatprep.subr.mxu0 0.0
    %1700 = vmatpush1.msra.mxu0 %v350
    %1701 = vmatprep.subr.mxu0 0.0
    %1702 = vmatpush1.msra.mxu0 %v353
    %1703 = vmatprep.subr.mxu0 0.0
    %1704 = vmatpush1.msra.mxu0 %v356
    %1705 = vmatprep.subr.mxu0 0.0
    %1706 = vmatpush1.msra.mxu0 %v359
    %1707 = vmatprep.subr.mxu0 0.0
    %1708 = vmatpush1.msra.mxu0 %v362
    %1709 = vmatprep.subr.mxu0 0.0
    %1710 = vmatpush1.msra.mxu0 %v365
    %1711 = vmatprep.subr.mxu0 0.0
    %1712 = vmatpush1.msra.mxu0 %v368
    %1713 = vmatprep.subr.mxu0 0.0
    %1714 = vmatpush1.msra.mxu0 %v371
    %1715 = vmatprep.subr.mxu0 0.0
    %1716 = vmatpush1.msra.mxu0 %v374
    %1717 = vmatprep.subr.mxu0 0.0
    %1718 = vmatpush1.msra.mxu0 %v377
    %1719 = vmatprep.subr.mxu0 0.0
    %1720 = vmatpush1.msra.mxu0 %v380
    %1721 = vmatprep.subr.mxu0 0.0
    %1722 = vmatpush1.msra.mxu0 %v383
    %1723 = vmatprep.subr.mxu0 0.0
    %1724 = vmatpush1.msra.mxu0 0.0
    %1725 = vmatprep.subr.mxu0 0.0
    %1726 = vmatpush1.msra.mxu0 0.0
    %1727 = vmatprep.subr.mxu0 0.0
    %1728 = vmatpush1.msra.mxu0 0.0
    %1729 = vmatprep.subr.mxu0 0.0
    %1730 = vmatpush1.msra.mxu0 0.0
    %1731 = vmatprep.subr.mxu0 0.0
    %1732 = vmatpush1.msra.mxu0 0.0
    %1733 = vmatprep.subr.mxu0 0.0
    %1734 = vmatpush1.msra.mxu0 0.0
    %1735 = vmatprep.subr.mxu0 0.0
    %1736 = vmatpush1.msra.mxu0 0.0
    %1737 = vmatprep.subr.mxu0 0.0
    %1738 = vmatpush1.msra.mxu0 0.0
    %1739 = vmatprep.subr.mxu0 0.0
    %1740 = vmatpush1.msra.mxu0 0.0
    %1741 = vmatprep.subr.mxu0 0.0
    %1742 = vmatpush1.msra.mxu0 0.0
    %1743 = vmatprep.subr.mxu0 0.0
    %1744 = vmatpush1.msra.mxu0 0.0
    %1745 = vmatprep.subr.mxu0 0.0
    %1746 = vmatpush1.msra.mxu0 0.0
    %1747 = vmatprep.subr.mxu0 0.0
    %1748 = vmatpush1.msra.mxu0 0.0
    %1749 = vmatprep.subr.mxu0 0.0
    %1750 = vmatpush1.msra.mxu0 0.0
    %1751 = vmatprep.subr.mxu0 0.0
    %1752 = vmatpush1.msra.mxu0 0.0
    %1753 = vmatprep.subr.mxu0 0.0
    %1754 = vmatpush1.msra.mxu0 0.0
    %1755 = vmatprep.mubr.f32.mxu0 0.0
    %1756 = vmatmul.mubr.f32.gmra.mrb[0].mxu0 %v1618
    %v1757 = vpop.f32.mrb[0].mxu0
    %v1758 = vadd.f32 %v397, %v1757
    %v1759 = vpop.f32.mrb[0].mxu0
    %1760 = vdwg.mxu0
    %v1762 = vrot.slane %v1687, 1
    %v1764 = vadd.f32 %v262, %v1762
    %v1765 = vxor.u32 %v1764, 2147483648
    %v1766 = vmul.f32 %v1765, 1.442695
    %v1767 = vpow.pop %v1766
    %v1768 = vadd.f32 %v1767, 1.0
    %v1769 = vrcp.pop %v1768
    %v1770 = vmul.f32 1.0, %v1769
    %v1772 = vrot.slane %v1689, 1
    %v1774 = vadd.f32 %v264, %v1772
    %v1775 = vxor.u32 %v1774, 2147483648
    %v1776 = vmul.f32 %v1775, 1.442695
    %v1777 = vpow.pop %v1776
    %v1778 = vadd.f32 %v1777, 1.0
    %v1779 = vrcp.pop %v1778
    %v1780 = vmul.f32 1.0, %v1779
    %v1782 = vrot.slane %v1758, 1
    %v1784 = vmul.f32 %v1770, %v1782
    %v1785 = vadd.f32 %v333, %v1784
    %v1786 = vtanh.pop %v1785
    %v1787 = vsub.f32 1.0, %v1780
    %v1788 = vmul.f32 %v1787, %v1786
    %v1789 = vrot.slane %v1616, 7
    %v1791 = vmul.f32 %v1780, %v1789
    %v1792 = vadd.f32 %v1788, %v1791
    %v1793 = vld [vmem:[%s2] sm:$0x1]
    %v1794 = vmax.f32 %v1793, 0.0
    %v1795 = vld [vmem:[#allocation7] sm:$0xff]
    %v1796 = vld [vmem:[#allocation7 + $0x8] sm:$0xff]
    %v1797 = vld [vmem:[#allocation7 + $0x10] sm:$0xff]
    %v1798 = vld [vmem:[#allocation7 + $0x18] sm:$0xff]
    %v1799 = vld [vmem:[#allocation7 + $0x20] sm:$0xff]
    %v1800 = vld [vmem:[#allocation7 + $0x28] sm:$0xff]
    %v1801 = vld [vmem:[#allocation7 + $0x30] sm:$0xff]
    %v1802 = vld [vmem:[#allocation7 + $0x38] sm:$0xff]
    %v1803 = vld [vmem:[#allocation7 + $0x40] sm:$0xff]
    %v1804 = vld [vmem:[#allocation7 + $0x48] sm:$0xff]
    %v1805 = vld [vmem:[#allocation7 + $0x50] sm:$0xff]
    %v1806 = vld [vmem:[#allocation7 + $0x58] sm:$0xff]
    %v1807 = vld [vmem:[%s9] sm:$0x7]
    %v1809 = vlaneseq
    %v1810 = vshrl.u32 %v1809, 7
    %v1811 = vsub.s32 0, %v1810
    %v1812 = vrot.slane %v1807, %v1811
    %v1813 = vlaneseq
    %v1814 = vshrl.u32 %v1813, 7
    %v1815 = vsub.s32 1, %v1814
    %v1816 = vrot.slane %v1807, %v1815
    %v1817 = vlaneseq
    %v1818 = vshrl.u32 %v1817, 7
    %v1819 = vsub.s32 2, %v1818
    %v1820 = vrot.slane %v1807, %v1819
    %v1825 = vsel %vm191, %v1794, 0
    %1827 = vmatprep.subr.mxu0 %v1796
    %1828 = vmatpush1.msra.mxu0 %v1795
    %1829 = vmatprep.subr.mxu0 %v1799
    %1830 = vmatpush1.msra.mxu0 %v1798
    %1831 = vmatprep.subr.mxu0 %v1802
    %1832 = vmatpush1.msra.mxu0 %v1801
    %1833 = vmatprep.subr.mxu0 %v1805
    %1834 = vmatpush1.msra.mxu0 %v1804
    %1835 = vmatprep.subr.mxu0 0.0
    %1836 = vmatpush1.msra.mxu0 0.0
    %1837 = vmatprep.subr.mxu0 0.0
    %1838 = vmatpush1.msra.mxu0 0.0
    %1839 = vmatprep.subr.mxu0 0.0
    %1840 = vmatpush1.msra.mxu0 0.0
    %1841 = vmatprep.subr.mxu0 0.0
    %1842 = vmatpush1.msra.mxu0 0.0
    %1843 = vmatprep.subr.mxu0 0.0
    %1844 = vmatpush1.msra.mxu0 0.0
    %1845 = vmatprep.subr.mxu0 0.0
    %1846 = vmatpush1.msra.mxu0 0.0
    %1847 = vmatprep.subr.mxu0 0.0
    %1848 = vmatpush1.msra.mxu0 0.0
    %1849 = vmatprep.subr.mxu0 0.0
    %1850 = vmatpush1.msra.mxu0 0.0
    %1851 = vmatprep.subr.mxu0 0.0
    %1852 = vmatpush1.msra.mxu0 0.0
    %1853 = vmatprep.subr.mxu0 0.0
    %1854 = vmatpush1.msra.mxu0 0.0
    %1855 = vmatprep.subr.mxu0 0.0
    %1856 = vmatpush1.msra.mxu0 0.0
    %1857 = vmatprep.subr.mxu0 0.0
    %1858 = vmatpush1.msra.mxu0 0.0
    %1859 = vmatprep.subr.mxu0 0.0
    %1860 = vmatpush1.msra.mxu0 0.0
    %1861 = vmatprep.subr.mxu0 0.0
    %1862 = vmatpush1.msra.mxu0 0.0
    %1863 = vmatprep.subr.mxu0 0.0
    %1864 = vmatpush1.msra.mxu0 0.0
    %1865 = vmatprep.subr.mxu0 0.0
    %1866 = vmatpush1.msra.mxu0 0.0
    %1867 = vmatprep.subr.mxu0 0.0
    %1868 = vmatpush1.msra.mxu0 0.0
    %1869 = vmatprep.subr.mxu0 0.0
    %1870 = vmatpush1.msra.mxu0 0.0
    %1871 = vmatprep.subr.mxu0 0.0
    %1872 = vmatpush1.msra.mxu0 0.0
    %1873 = vmatprep.subr.mxu0 0.0
    %1874 = vmatpush1.msra.mxu0 0.0
    %1875 = vmatprep.subr.mxu0 0.0
    %1876 = vmatpush1.msra.mxu0 0.0
    %1877 = vmatprep.subr.mxu0 0.0
    %1878 = vmatpush1.msra.mxu0 0.0
    %1879 = vmatprep.subr.mxu0 0.0
    %1880 = vmatpush1.msra.mxu0 0.0
    %1881 = vmatprep.subr.mxu0 0.0
    %1882 = vmatpush1.msra.mxu0 0.0
    %1883 = vmatprep.subr.mxu0 0.0
    %1884 = vmatpush1.msra.mxu0 0.0
    %1885 = vmatprep.subr.mxu0 0.0
    %1886 = vmatpush1.msra.mxu0 0.0
    %1887 = vmatprep.subr.mxu0 0.0
    %1888 = vmatpush1.msra.mxu0 0.0
    %1889 = vmatprep.subr.mxu0 0.0
    %1890 = vmatpush1.msra.mxu0 0.0
    %1891 = vmatprep.mubr.f32.mxu0 0.0
    %1892 = vmatmul.mubr.f32.gmra.mrb[0].mxu0 %v1825
    %v1893 = vpop.f32.mrb[0].mxu0
    %v1894 = vadd.f32 %v1812, %v1893
    %v1895 = vpop.f32.mrb[0].mxu0
    %v1896 = vadd.f32 %v1816, %v1895
    %1897 = vdwg.mxu0
    %1898 = vmatprep.subr.mxu0 0.0
    %1899 = vmatpush1.msra.mxu0 %v1797
    %1900 = vmatprep.subr.mxu0 0.0
    %1901 = vmatpush1.msra.mxu0 %v1800
    %1902 = vmatprep.subr.mxu0 0.0
    %1903 = vmatpush1.msra.mxu0 %v1803
    %1904 = vmatprep.subr.mxu0 0.0
    %1905 = vmatpush1.msra.mxu0 %v1806
    %1906 = vmatprep.subr.mxu0 0.0
    %1907 = vmatpush1.msra.mxu0 0.0
    %1908 = vmatprep.subr.mxu0 0.0
    %1909 = vmatpush1.msra.mxu0 0.0
    %1910 = vmatprep.subr.mxu0 0.0
    %1911 = vmatpush1.msra.mxu0 0.0
    %1912 = vmatprep.subr.mxu0 0.0
    %1913 = vmatpush1.msra.mxu0 0.0
    %1914 = vmatprep.subr.mxu0 0.0
    %1915 = vmatpush1.msra.mxu0 0.0
    %1916 = vmatprep.subr.mxu0 0.0
    %1917 = vmatpush1.msra.mxu0 0.0
    %1918 = vmatprep.subr.mxu0 0.0
    %1919 = vmatpush1.msra.mxu0 0.0
    %1920 = vmatprep.subr.mxu0 0.0
    %1921 = vmatpush1.msra.mxu0 0.0
    %1922 = vmatprep.subr.mxu0 0.0
    %1923 = vmatpush1.msra.mxu0 0.0
    %1924 = vmatprep.subr.mxu0 0.0
    %1925 = vmatpush1.msra.mxu0 0.0
    %1926 = vmatprep.subr.mxu0 0.0
    %1927 = vmatpush1.msra.mxu0 0.0
    %1928 = vmatprep.subr.mxu0 0.0
    %1929 = vmatpush1.msra.mxu0 0.0
    %1930 = vmatprep.subr.mxu0 0.0
    %1931 = vmatpush1.msra.mxu0 0.0
    %1932 = vmatprep.subr.mxu0 0.0
    %1933 = vmatpush1.msra.mxu0 0.0
    %1934 = vmatprep.subr.mxu0 0.0
    %1935 = vmatpush1.msra.mxu0 0.0
    %1936 = vmatprep.subr.mxu0 0.0
    %1937 = vmatpush1.msra.mxu0 0.0
    %1938 = vmatprep.subr.mxu0 0.0
    %1939 = vmatpush1.msra.mxu0 0.0
    %1940 = vmatprep.subr.mxu0 0.0
    %1941 = vmatpush1.msra.mxu0 0.0
    %1942 = vmatprep.subr.mxu0 0.0
    %1943 = vmatpush1.msra.mxu0 0.0
    %1944 = vmatprep.subr.mxu0 0.0
    %1945 = vmatpush1.msra.mxu0 0.0
    %1946 = vmatprep.subr.mxu0 0.0
    %1947 = vmatpush1.msra.mxu0 0.0
    %1948 = vmatprep.subr.mxu0 0.0
    %1949 = vmatpush1.msra.mxu0 0.0
    %1950 = vmatprep.subr.mxu0 0.0
    %1951 = vmatpush1.msra.mxu0 0.0
    %1952 = vmatprep.subr.mxu0 0.0
    %1953 = vmatpush1.msra.mxu0 0.0
    %1954 = vmatprep.subr.mxu0 0.0
    %1955 = vmatpush1.msra.mxu0 0.0
    %1956 = vmatprep.subr.mxu0 0.0
    %1957 = vmatpush1.msra.mxu0 0.0
    %1958 = vmatprep.subr.mxu0 0.0
    %1959 = vmatpush1.msra.mxu0 0.0
    %1960 = vmatprep.subr.mxu0 0.0
    %1961 = vmatpush1.msra.mxu0 0.0
    %1962 = vmatprep.mubr.f32.mxu0 0.0
    %1963 = vmatmul.mubr.f32.gmra.mrb[0].mxu0 %v1825
    %v1964 = vpop.f32.mrb[0].mxu0
    %v1965 = vadd.f32 %v1820, %v1964
    %v1966 = vpop.f32.mrb[0].mxu0
    %1967 = vdwg.mxu0
    %v1968 = vld [vmem:[#allocation9] sm:$0xff]
    %v1969 = vld [vmem:[#allocation9 + $0x8] sm:$0xff]
    %v1970 = vld [vmem:[#allocation9 + $0x10] sm:$0xff]
    %v1971 = vld [vmem:[#allocation9 + $0x18] sm:$0xff]
    %v1972 = vld [vmem:[#allocation9 + $0x20] sm:$0xff]
    %v1973 = vld [vmem:[#allocation9 + $0x28] sm:$0xff]
    %v1974 = vld [vmem:[#allocation9 + $0x30] sm:$0xff]
    %v1975 = vld [vmem:[#allocation9 + $0x38] sm:$0xff]
    %v1976 = vld [vmem:[#allocation9 + $0x40] sm:$0xff]
    %v1977 = vld [vmem:[#allocation9 + $0x48] sm:$0xff]
    %v1978 = vld [vmem:[#allocation9 + $0x50] sm:$0xff]
    %v1979 = vld [vmem:[#allocation9 + $0x58] sm:$0xff]
    %v1980 = vld [vmem:[#allocation9 + $0x60] sm:$0xff]
    %v1981 = vld [vmem:[#allocation9 + $0x68] sm:$0xff]
    %v1982 = vld [vmem:[#allocation9 + $0x70] sm:$0xff]
    %v1983 = vld [vmem:[#allocation9 + $0x78] sm:$0xff]
    %v1984 = vld [vmem:[#allocation9 + $0x80] sm:$0xff]
    %v1985 = vld [vmem:[#allocation9 + $0x88] sm:$0xff]
    %v1986 = vld [vmem:[#allocation9 + $0x90] sm:$0xff]
    %v1987 = vld [vmem:[#allocation9 + $0x98] sm:$0xff]
    %v1988 = vld [vmem:[#allocation9 + $0xa0] sm:$0xff]
    %v1989 = vld [vmem:[#allocation9 + $0xa8] sm:$0xff]
    %v1990 = vld [vmem:[#allocation9 + $0xb0] sm:$0xff]
    %v1991 = vld [vmem:[#allocation9 + $0xb8] sm:$0xff]
    %v1992 = vld [vmem:[#allocation9 + $0xc0] sm:$0xff]
    %v1993 = vld [vmem:[#allocation9 + $0xc8] sm:$0xff]
    %v1994 = vld [vmem:[#allocation9 + $0xd0] sm:$0xff]
    %v1995 = vld [vmem:[#allocation9 + $0xd8] sm:$0xff]
    %v1996 = vld [vmem:[#allocation9 + $0xe0] sm:$0xff]
    %v1997 = vld [vmem:[#allocation9 + $0xe8] sm:$0xff]
    %v1998 = vld [vmem:[#allocation9 + $0xf0] sm:$0xff]
    %v1999 = vld [vmem:[#allocation9 + $0xf8] sm:$0xff]
    %v2000 = vld [vmem:[#allocation9 + $0x100] sm:$0xff]
    %v2001 = vld [vmem:[#allocation9 + $0x108] sm:$0xff]
    %v2002 = vld [vmem:[#allocation9 + $0x110] sm:$0xff]
    %v2003 = vld [vmem:[#allocation9 + $0x118] sm:$0xff]
    %v2004 = vld [vmem:[#allocation9 + $0x120] sm:$0xff]
    %v2005 = vld [vmem:[#allocation9 + $0x128] sm:$0xff]
    %v2006 = vld [vmem:[#allocation9 + $0x130] sm:$0xff]
    %v2007 = vld [vmem:[#allocation9 + $0x138] sm:$0xff]
    %v2008 = vld [vmem:[#allocation9 + $0x140] sm:$0xff]
    %v2009 = vld [vmem:[#allocation9 + $0x148] sm:$0xff]
    %v2010 = vld [vmem:[#allocation9 + $0x150] sm:$0xff]
    %v2011 = vld [vmem:[#allocation9 + $0x158] sm:$0xff]
    %v2012 = vld [vmem:[#allocation9 + $0x160] sm:$0xff]
    %v2013 = vld [vmem:[#allocation9 + $0x168] sm:$0xff]
    %v2014 = vld [vmem:[#allocation9 + $0x170] sm:$0xff]
    %v2015 = vld [vmem:[#allocation9 + $0x178] sm:$0xff]
    %v2016 = vld [vmem:[%s10] sm:$0x7]
    %v2018 = vrot.slane %v1792, 7
    %v2021 = vlaneseq
    %v2022 = vshrl.u32 %v2021, 7
    %v2023 = vsub.s32 0, %v2022
    %v2024 = vrot.slane %v2016, %v2023
    %v2025 = vlaneseq
    %v2026 = vshrl.u32 %v2025, 7
    %v2027 = vsub.s32 1, %v2026
    %v2028 = vrot.slane %v2016, %v2027
    %v2029 = vlaneseq
    %v2030 = vshrl.u32 %v2029, 7
    %v2031 = vsub.s32 2, %v2030
    %v2032 = vrot.slane %v2016, %v2031
    %2036 = vmatprep.subr.mxu0 %v1969
    %2037 = vmatpush1.msra.mxu0 %v1968
    %2038 = vmatprep.subr.mxu0 %v1972
    %2039 = vmatpush1.msra.mxu0 %v1971
    %2040 = vmatprep.subr.mxu0 %v1975
    %2041 = vmatpush1.msra.mxu0 %v1974
    %2042 = vmatprep.subr.mxu0 %v1978
    %2043 = vmatpush1.msra.mxu0 %v1977
    %2044 = vmatprep.subr.mxu0 %v1981
    %2045 = vmatpush1.msra.mxu0 %v1980
    %2046 = vmatprep.subr.mxu0 %v1984
    %2047 = vmatpush1.msra.mxu0 %v1983
    %2048 = vmatprep.subr.mxu0 %v1987
    %2049 = vmatpush1.msra.mxu0 %v1986
    %2050 = vmatprep.subr.mxu0 %v1990
    %2051 = vmatpush1.msra.mxu0 %v1989
    %2052 = vmatprep.subr.mxu0 %v1993
    %2053 = vmatpush1.msra.mxu0 %v1992
    %2054 = vmatprep.subr.mxu0 %v1996
    %2055 = vmatpush1.msra.mxu0 %v1995
    %2056 = vmatprep.subr.mxu0 %v1999
    %2057 = vmatpush1.msra.mxu0 %v1998
    %2058 = vmatprep.subr.mxu0 %v2002
    %2059 = vmatpush1.msra.mxu0 %v2001
    %2060 = vmatprep.subr.mxu0 %v2005
    %2061 = vmatpush1.msra.mxu0 %v2004
    %2062 = vmatprep.subr.mxu0 %v2008
    %2063 = vmatpush1.msra.mxu0 %v2007
    %2064 = vmatprep.subr.mxu0 %v2011
    %2065 = vmatpush1.msra.mxu0 %v2010
    %2066 = vmatprep.subr.mxu0 %v2014
    %2067 = vmatpush1.msra.mxu0 %v2013
    %2068 = vmatprep.subr.mxu0 0.0
    %2069 = vmatpush1.msra.mxu0 0.0
    %2070 = vmatprep.subr.mxu0 0.0
    %2071 = vmatpush1.msra.mxu0 0.0
    %2072 = vmatprep.subr.mxu0 0.0
    %2073 = vmatpush1.msra.mxu0 0.0
    %2074 = vmatprep.subr.mxu0 0.0
    %2075 = vmatpush1.msra.mxu0 0.0
    %2076 = vmatprep.subr.mxu0 0.0
    %2077 = vmatpush1.msra.mxu0 0.0
    %2078 = vmatprep.subr.mxu0 0.0
    %2079 = vmatpush1.msra.mxu0 0.0
    %2080 = vmatprep.subr.mxu0 0.0
    %2081 = vmatpush1.msra.mxu0 0.0
    %2082 = vmatprep.subr.mxu0 0.0
    %2083 = vmatpush1.msra.mxu0 0.0
    %2084 = vmatprep.subr.mxu0 0.0
    %2085 = vmatpush1.msra.mxu0 0.0
    %2086 = vmatprep.subr.mxu0 0.0
    %2087 = vmatpush1.msra.mxu0 0.0
    %2088 = vmatprep.subr.mxu0 0.0
    %2089 = vmatpush1.msra.mxu0 0.0
    %2090 = vmatprep.subr.mxu0 0.0
    %2091 = vmatpush1.msra.mxu0 0.0
    %2092 = vmatprep.subr.mxu0 0.0
    %2093 = vmatpush1.msra.mxu0 0.0
    %2094 = vmatprep.subr.mxu0 0.0
    %2095 = vmatpush1.msra.mxu0 0.0
    %2096 = vmatprep.subr.mxu0 0.0
    %2097 = vmatpush1.msra.mxu0 0.0
    %2098 = vmatprep.subr.mxu0 0.0
    %2099 = vmatpush1.msra.mxu0 0.0
    %2100 = vmatprep.mubr.f32.mxu0 0.0
    %2101 = vmatmul.mubr.f32.gmra.mrb[0].mxu0 %v2018
    %v2102 = vpop.f32.mrb[0].mxu0
    %v2103 = vadd.f32 %v2024, %v2102
    %v2104 = vpop.f32.mrb[0].mxu0
    %v2105 = vadd.f32 %v2028, %v2104
    %2106 = vdwg.mxu0
    %2107 = vmatprep.subr.mxu0 0.0
    %2108 = vmatpush1.msra.mxu0 %v1970
    %2109 = vmatprep.subr.mxu0 0.0
    %2110 = vmatpush1.msra.mxu0 %v1973
    %2111 = vmatprep.subr.mxu0 0.0
    %2112 = vmatpush1.msra.mxu0 %v1976
    %2113 = vmatprep.subr.mxu0 0.0
    %2114 = vmatpush1.msra.mxu0 %v1979
    %2115 = vmatprep.subr.mxu0 0.0
    %2116 = vmatpush1.msra.mxu0 %v1982
    %2117 = vmatprep.subr.mxu0 0.0
    %2118 = vmatpush1.msra.mxu0 %v1985
    %2119 = vmatprep.subr.mxu0 0.0
    %2120 = vmatpush1.msra.mxu0 %v1988
    %2121 = vmatprep.subr.mxu0 0.0
    %2122 = vmatpush1.msra.mxu0 %v1991
    %2123 = vmatprep.subr.mxu0 0.0
    %2124 = vmatpush1.msra.mxu0 %v1994
    %2125 = vmatprep.subr.mxu0 0.0
    %2126 = vmatpush1.msra.mxu0 %v1997
    %2127 = vmatprep.subr.mxu0 0.0
    %2128 = vmatpush1.msra.mxu0 %v2000
    %2129 = vmatprep.subr.mxu0 0.0
    %2130 = vmatpush1.msra.mxu0 %v2003
    %2131 = vmatprep.subr.mxu0 0.0
    %2132 = vmatpush1.msra.mxu0 %v2006
    %2133 = vmatprep.subr.mxu0 0.0
    %2134 = vmatpush1.msra.mxu0 %v2009
    %2135 = vmatprep.subr.mxu0 0.0
    %2136 = vmatpush1.msra.mxu0 %v2012
    %2137 = vmatprep.subr.mxu0 0.0
    %2138 = vmatpush1.msra.mxu0 %v2015
    %2139 = vmatprep.subr.mxu0 0.0
    %2140 = vmatpush1.msra.mxu0 0.0
    %2141 = vmatprep.subr.mxu0 0.0
    %2142 = vmatpush1.msra.mxu0 0.0
    %2143 = vmatprep.subr.mxu0 0.0
    %2144 = vmatpush1.msra.mxu0 0.0
    %2145 = vmatprep.subr.mxu0 0.0
    %2146 = vmatpush1.msra.mxu0 0.0
    %2147 = vmatprep.subr.mxu0 0.0
    %2148 = vmatpush1.msra.mxu0 0.0
    %2149 = vmatprep.subr.mxu0 0.0
    %2150 = vmatpush1.msra.mxu0 0.0
    %2151 = vmatprep.subr.mxu0 0.0
    %2152 = vmatpush1.msra.mxu0 0.0
    %2153 = vmatprep.subr.mxu0 0.0
    %2154 = vmatpush1.msra.mxu0 0.0
    %2155 = vmatprep.subr.mxu0 0.0
    %2156 = vmatpush1.msra.mxu0 0.0
    %2157 = vmatprep.subr.mxu0 0.0
    %2158 = vmatpush1.msra.mxu0 0.0
    %2159 = vmatprep.subr.mxu0 0.0
    %2160 = vmatpush1.msra.mxu0 0.0
    %2161 = vmatprep.subr.mxu0 0.0
    %2162 = vmatpush1.msra.mxu0 0.0
    %2163 = vmatprep.subr.mxu0 0.0
    %2164 = vmatpush1.msra.mxu0 0.0
    %2165 = vmatprep.subr.mxu0 0.0
    %2166 = vmatpush1.msra.mxu0 0.0
    %2167 = vmatprep.subr.mxu0 0.0
    %2168 = vmatpush1.msra.mxu0 0.0
    %2169 = vmatprep.subr.mxu0 0.0
    %2170 = vmatpush1.msra.mxu0 0.0
    %2171 = vmatprep.mubr.f32.mxu0 0.0
    %2172 = vmatmul.mubr.f32.gmra.mrb[0].mxu0 %v2018
    %v2173 = vpop.f32.mrb[0].mxu0
    %v2174 = vadd.f32 %v2032, %v2173
    %v2175 = vpop.f32.mrb[0].mxu0
    %2176 = vdwg.mxu0
    %v2177 = vadd.f32 %v1894, %v2103
    %v2178 = vxor.u32 %v2177, 2147483648
    %v2179 = vmul.f32 %v2178, 1.442695
    %v2180 = vpow.pop %v2179
    %v2181 = vadd.f32 %v2180, 1.0
    %v2182 = vrcp.pop %v2181
    %v2183 = vmul.f32 1.0, %v2182
    %v2184 = vadd.f32 %v1896, %v2105
    %v2185 = vxor.u32 %v2184, 2147483648
    %v2186 = vmul.f32 %v2185, 1.442695
    %v2187 = vpow.pop %v2186
    %v2188 = vadd.f32 %v2187, 1.0
    %v2189 = vrcp.pop %v2188
    %v2190 = vmul.f32 1.0, %v2189
    %v2191 = vmul.f32 %v2183, %v2174
    %v2192 = vadd.f32 %v1965, %v2191
    %v2193 = vtanh.pop %v2192
    %v2194 = vsub.f32 1.0, %v2190
    %v2195 = vmul.f32 %v2194, %v2193
    %v2196 = vmul.f32 %v2190, %v2018
    %v2197 = vadd.f32 %v2195, %v2196
    %2198 = vmatprep.subr.mxu0 %v1969
    %2199 = vmatpush1.msra.mxu0 %v1968
    %2200 = vmatprep.subr.mxu0 %v1972
    %2201 = vmatpush1.msra.mxu0 %v1971
    %2202 = vmatprep.subr.mxu0 %v1975
    %2203 = vmatpush1.msra.mxu0 %v1974
    %2204 = vmatprep.subr.mxu0 %v1978
    %2205 = vmatpush1.msra.mxu0 %v1977
    %2206 = vmatprep.subr.mxu0 %v1981
    %2207 = vmatpush1.msra.mxu0 %v1980
    %2208 = vmatprep.subr.mxu0 %v1984
    %2209 = vmatpush1.msra.mxu0 %v1983
    %2210 = vmatprep.subr.mxu0 %v1987
    %2211 = vmatpush1.msra.mxu0 %v1986
    %2212 = vmatprep.subr.mxu0 %v1990
    %2213 = vmatpush1.msra.mxu0 %v1989
    %2214 = vmatprep.subr.mxu0 %v1993
    %2215 = vmatpush1.msra.mxu0 %v1992
    %2216 = vmatprep.subr.mxu0 %v1996
    %2217 = vmatpush1.msra.mxu0 %v1995
    %2218 = vmatprep.subr.mxu0 %v1999
    %2219 = vmatpush1.msra.mxu0 %v1998
    %2220 = vmatprep.subr.mxu0 %v2002
    %2221 = vmatpush1.msra.mxu0 %v2001
    %2222 = vmatprep.subr.mxu0 %v2005
    %2223 = vmatpush1.msra.mxu0 %v2004
    %2224 = vmatprep.subr.mxu0 %v2008
    %2225 = vmatpush1.msra.mxu0 %v2007
    %2226 = vmatprep.subr.mxu0 %v2011
    %2227 = vmatpush1.msra.mxu0 %v2010
    %2228 = vmatprep.subr.mxu0 %v2014
    %2229 = vmatpush1.msra.mxu0 %v2013
    %2230 = vmatprep.subr.mxu0 0.0
    %2231 = vmatpush1.msra.mxu0 0.0
    %2232 = vmatprep.subr.mxu0 0.0
    %2233 = vmatpush1.msra.mxu0 0.0
    %2234 = vmatprep.subr.mxu0 0.0
    %2235 = vmatpush1.msra.mxu0 0.0
    %2236 = vmatprep.subr.mxu0 0.0
    %2237 = vmatpush1.msra.mxu0 0.0
    %2238 = vmatprep.subr.mxu0 0.0
    %2239 = vmatpush1.msra.mxu0 0.0
    %2240 = vmatprep.subr.mxu0 0.0
    %2241 = vmatpush1.msra.mxu0 0.0
    %2242 = vmatprep.subr.mxu0 0.0
    %2243 = vmatpush1.msra.mxu0 0.0
    %2244 = vmatprep.subr.mxu0 0.0
    %2245 = vmatpush1.msra.mxu0 0.0
    %2246 = vmatprep.subr.mxu0 0.0
    %2247 = vmatpush1.msra.mxu0 0.0
    %2248 = vmatprep.subr.mxu0 0.0
    %2249 = vmatpush1.msra.mxu0 0.0
    %2250 = vmatprep.subr.mxu0 0.0
    %2251 = vmatpush1.msra.mxu0 0.0
    %2252 = vmatprep.subr.mxu0 0.0
    %2253 = vmatpush1.msra.mxu0 0.0
    %2254 = vmatprep.subr.mxu0 0.0
    %2255 = vmatpush1.msra.mxu0 0.0
    %2256 = vmatprep.subr.mxu0 0.0
    %2257 = vmatpush1.msra.mxu0 0.0
    %2258 = vmatprep.subr.mxu0 0.0
    %2259 = vmatpush1.msra.mxu0 0.0
    %2260 = vmatprep.subr.mxu0 0.0
    %2261 = vmatpush1.msra.mxu0 0.0
    %2262 = vmatprep.mubr.f32.mxu0 0.0
    %2263 = vmatmul.mubr.f32.gmra.mrb[0].mxu0 %v2197
    %v2264 = vpop.f32.mrb[0].mxu0
    %v2265 = vadd.f32 %v2024, %v2264
    %v2266 = vpop.f32.mrb[0].mxu0
    %v2267 = vadd.f32 %v2028, %v2266
    %2268 = vdwg.mxu0
    %2269 = vmatprep.subr.mxu0 0.0
    %2270 = vmatpush1.msra.mxu0 %v1970
    %2271 = vmatprep.subr.mxu0 0.0
    %2272 = vmatpush1.msra.mxu0 %v1973
    %2273 = vmatprep.subr.mxu0 0.0
    %2274 = vmatpush1.msra.mxu0 %v1976
    %2275 = vmatprep.subr.mxu0 0.0
    %2276 = vmatpush1.msra.mxu0 %v1979
    %2277 = vmatprep.subr.mxu0 0.0
    %2278 = vmatpush1.msra.mxu0 %v1982
    %2279 = vmatprep.subr.mxu0 0.0
    %2280 = vmatpush1.msra.mxu0 %v1985
    %2281 = vmatprep.subr.mxu0 0.0
    %2282 = vmatpush1.msra.mxu0 %v1988
    %2283 = vmatprep.subr.mxu0 0.0
    %2284 = vmatpush1.msra.mxu0 %v1991
    %2285 = vmatprep.subr.mxu0 0.0
    %2286 = vmatpush1.msra.mxu0 %v1994
    %2287 = vmatprep.subr.mxu0 0.0
    %2288 = vmatpush1.msra.mxu0 %v1997
    %2289 = vmatprep.subr.mxu0 0.0
    %2290 = vmatpush1.msra.mxu0 %v2000
    %2291 = vmatprep.subr.mxu0 0.0
    %2292 = vmatpush1.msra.mxu0 %v2003
    %2293 = vmatprep.subr.mxu0 0.0
    %2294 = vmatpush1.msra.mxu0 %v2006
    %2295 = vmatprep.subr.mxu0 0.0
    %2296 = vmatpush1.msra.mxu0 %v2009
    %2297 = vmatprep.subr.mxu0 0.0
    %2298 = vmatpush1.msra.mxu0 %v2012
    %2299 = vmatprep.subr.mxu0 0.0
    %2300 = vmatpush1.msra.mxu0 %v2015
    %2301 = vmatprep.subr.mxu0 0.0
    %2302 = vmatpush1.msra.mxu0 0.0
    %2303 = vmatprep.subr.mxu0 0.0
    %2304 = vmatpush1.msra.mxu0 0.0
    %2305 = vmatprep.subr.mxu0 0.0
    %2306 = vmatpush1.msra.mxu0 0.0
    %2307 = vmatprep.subr.mxu0 0.0
    %2308 = vmatpush1.msra.mxu0 0.0
    %2309 = vmatprep.subr.mxu0 0.0
    %2310 = vmatpush1.msra.mxu0 0.0
    %2311 = vmatprep.subr.mxu0 0.0
    %2312 = vmatpush1.msra.mxu0 0.0
    %2313 = vmatprep.subr.mxu0 0.0
    %2314 = vmatpush1.msra.mxu0 0.0
    %2315 = vmatprep.subr.mxu0 0.0
    %2316 = vmatpush1.msra.mxu0 0.0
    %2317 = vmatprep.subr.mxu0 0.0
    %2318 = vmatpush1.msra.mxu0 0.0
    %2319 = vmatprep.subr.mxu0 0.0
    %2320 = vmatpush1.msra.mxu0 0.0
    %2321 = vmatprep.subr.mxu0 0.0
    %2322 = vmatpush1.msra.mxu0 0.0
    %2323 = vmatprep.subr.mxu0 0.0
    %2324 = vmatpush1.msra.mxu0 0.0
    %2325 = vmatprep.subr.mxu0 0.0
    %2326 = vmatpush1.msra.mxu0 0.0
    %2327 = vmatprep.subr.mxu0 0.0
    %2328 = vmatpush1.msra.mxu0 0.0
    %2329 = vmatprep.subr.mxu0 0.0
    %2330 = vmatpush1.msra.mxu0 0.0
    %2331 = vmatprep.subr.mxu0 0.0
    %2332 = vmatpush1.msra.mxu0 0.0
    %2333 = vmatprep.mubr.f32.mxu0 0.0
    %2334 = vmatmul.mubr.f32.gmra.mrb[0].mxu0 %v2197
    %v2335 = vpop.f32.mrb[0].mxu0
    %v2336 = vadd.f32 %v2032, %v2335
    %v2337 = vpop.f32.mrb[0].mxu0
    %2338 = vdwg.mxu0
    %v2339 = vadd.f32 %v1894, %v2265
    %v2340 = vxor.u32 %v2339, 2147483648
    %v2341 = vmul.f32 %v2340, 1.442695
    %v2342 = vpow.pop %v2341
    %v2343 = vadd.f32 %v2342, 1.0
    %v2344 = vrcp.pop %v2343
    %v2345 = vmul.f32 1.0, %v2344
    %v2346 = vadd.f32 %v1896, %v2267
    %v2347 = vxor.u32 %v2346, 2147483648
    %v2348 = vmul.f32 %v2347, 1.442695
    %v2349 = vpow.pop %v2348
    %v2350 = vadd.f32 %v2349, 1.0
    %v2351 = vrcp.pop %v2350
    %v2352 = vmul.f32 1.0, %v2351
    %v2353 = vmul.f32 %v2345, %v2336
    %v2354 = vadd.f32 %v1965, %v2353
    %v2355 = vtanh.pop %v2354
    %v2356 = vsub.f32 1.0, %v2352
    %v2357 = vmul.f32 %v2356, %v2355
    %v2358 = vmul.f32 %v2352, %v2197
    %v2359 = vadd.f32 %v2357, %v2358
    %2360 = vmatprep.subr.mxu0 %v1969
    %2361 = vmatpush1.msra.mxu0 %v1968
    %2362 = vmatprep.subr.mxu0 %v1972
    %2363 = vmatpush1.msra.mxu0 %v1971
    %2364 = vmatprep.subr.mxu0 %v1975
    %2365 = vmatpush1.msra.mxu0 %v1974
    %2366 = vmatprep.subr.mxu0 %v1978
    %2367 = vmatpush1.msra.mxu0 %v1977
    %2368 = vmatprep.subr.mxu0 %v1981
    %2369 = vmatpush1.msra.mxu0 %v1980
    %2370 = vmatprep.subr.mxu0 %v1984
    %2371 = vmatpush1.msra.mxu0 %v1983
    %2372 = vmatprep.subr.mxu0 %v1987
    %2373 = vmatpush1.msra.mxu0 %v1986
    %2374 = vmatprep.subr.mxu0 %v1990
    %2375 = vmatpush1.msra.mxu0 %v1989
    %2376 = vmatprep.subr.mxu0 %v1993
    %2377 = vmatpush1.msra.mxu0 %v1992
    %2378 = vmatprep.subr.mxu0 %v1996
    %2379 = vmatpush1.msra.mxu0 %v1995
    %2380 = vmatprep.subr.mxu0 %v1999
    %2381 = vmatpush1.msra.mxu0 %v1998
    %2382 = vmatprep.subr.mxu0 %v2002
    %2383 = vmatpush1.msra.mxu0 %v2001
    %2384 = vmatprep.subr.mxu0 %v2005
    %2385 = vmatpush1.msra.mxu0 %v2004
    %2386 = vmatprep.subr.mxu0 %v2008
    %2387 = vmatpush1.msra.mxu0 %v2007
    %2388 = vmatprep.subr.mxu0 %v2011
    %2389 = vmatpush1.msra.mxu0 %v2010
    %2390 = vmatprep.subr.mxu0 %v2014
    %2391 = vmatpush1.msra.mxu0 %v2013
    %2392 = vmatprep.subr.mxu0 0.0
    %2393 = vmatpush1.msra.mxu0 0.0
    %2394 = vmatprep.subr.mxu0 0.0
    %2395 = vmatpush1.msra.mxu0 0.0
    %2396 = vmatprep.subr.mxu0 0.0
    %2397 = vmatpush1.msra.mxu0 0.0
    %2398 = vmatprep.subr.mxu0 0.0
    %2399 = vmatpush1.msra.mxu0 0.0
    %2400 = vmatprep.subr.mxu0 0.0
    %2401 = vmatpush1.msra.mxu0 0.0
    %2402 = vmatprep.subr.mxu0 0.0
    %2403 = vmatpush1.msra.mxu0 0.0
    %2404 = vmatprep.subr.mxu0 0.0
    %2405 = vmatpush1.msra.mxu0 0.0
    %2406 = vmatprep.subr.mxu0 0.0
    %2407 = vmatpush1.msra.mxu0 0.0
    %2408 = vmatprep.subr.mxu0 0.0
    %2409 = vmatpush1.msra.mxu0 0.0
    %2410 = vmatprep.subr.mxu0 0.0
    %2411 = vmatpush1.msra.mxu0 0.0
    %2412 = vmatprep.subr.mxu0 0.0
    %2413 = vmatpush1.msra.mxu0 0.0
    %2414 = vmatprep.subr.mxu0 0.0
    %2415 = vmatpush1.msra.mxu0 0.0
    %2416 = vmatprep.subr.mxu0 0.0
    %2417 = vmatpush1.msra.mxu0 0.0
    %2418 = vmatprep.subr.mxu0 0.0
    %2419 = vmatpush1.msra.mxu0 0.0
    %2420 = vmatprep.subr.mxu0 0.0
    %2421 = vmatpush1.msra.mxu0 0.0
    %2422 = vmatprep.subr.mxu0 0.0
    %2423 = vmatpush1.msra.mxu0 0.0
    %2424 = vmatprep.mubr.f32.mxu0 0.0
    %2425 = vmatmul.mubr.f32.gmra.mrb[0].mxu0 %v2359
    %v2426 = vpop.f32.mrb[0].mxu0
    %v2427 = vadd.f32 %v2024, %v2426
    %v2428 = vpop.f32.mrb[0].mxu0
    %v2429 = vadd.f32 %v2028, %v2428
    %2430 = vdwg.mxu0
    %2431 = vmatprep.subr.mxu0 0.0
    %2432 = vmatpush1.msra.mxu0 %v1970
    %2433 = vmatprep.subr.mxu0 0.0
    %2434 = vmatpush1.msra.mxu0 %v1973
    %2435 = vmatprep.subr.mxu0 0.0
    %2436 = vmatpush1.msra.mxu0 %v1976
    %2437 = vmatprep.subr.mxu0 0.0
    %2438 = vmatpush1.msra.mxu0 %v1979
    %2439 = vmatprep.subr.mxu0 0.0
    %2440 = vmatpush1.msra.mxu0 %v1982
    %2441 = vmatprep.subr.mxu0 0.0
    %2442 = vmatpush1.msra.mxu0 %v1985
    %2443 = vmatprep.subr.mxu0 0.0
    %2444 = vmatpush1.msra.mxu0 %v1988
    %2445 = vmatprep.subr.mxu0 0.0
    %2446 = vmatpush1.msra.mxu0 %v1991
    %2447 = vmatprep.subr.mxu0 0.0
    %2448 = vmatpush1.msra.mxu0 %v1994
    %2449 = vmatprep.subr.mxu0 0.0
    %2450 = vmatpush1.msra.mxu0 %v1997
    %2451 = vmatprep.subr.mxu0 0.0
    %2452 = vmatpush1.msra.mxu0 %v2000
    %2453 = vmatprep.subr.mxu0 0.0
    %2454 = vmatpush1.msra.mxu0 %v2003
    %2455 = vmatprep.subr.mxu0 0.0
    %2456 = vmatpush1.msra.mxu0 %v2006
    %2457 = vmatprep.subr.mxu0 0.0
    %2458 = vmatpush1.msra.mxu0 %v2009
    %2459 = vmatprep.subr.mxu0 0.0
    %2460 = vmatpush1.msra.mxu0 %v2012
    %2461 = vmatprep.subr.mxu0 0.0
    %2462 = vmatpush1.msra.mxu0 %v2015
    %2463 = vmatprep.subr.mxu0 0.0
    %2464 = vmatpush1.msra.mxu0 0.0
    %2465 = vmatprep.subr.mxu0 0.0
    %2466 = vmatpush1.msra.mxu0 0.0
    %2467 = vmatprep.subr.mxu0 0.0
    %2468 = vmatpush1.msra.mxu0 0.0
    %2469 = vmatprep.subr.mxu0 0.0
    %2470 = vmatpush1.msra.mxu0 0.0
    %2471 = vmatprep.subr.mxu0 0.0
    %2472 = vmatpush1.msra.mxu0 0.0
    %2473 = vmatprep.subr.mxu0 0.0
    %2474 = vmatpush1.msra.mxu0 0.0
    %2475 = vmatprep.subr.mxu0 0.0
    %2476 = vmatpush1.msra.mxu0 0.0
    %2477 = vmatprep.subr.mxu0 0.0
    %2478 = vmatpush1.msra.mxu0 0.0
    %2479 = vmatprep.subr.mxu0 0.0
    %2480 = vmatpush1.msra.mxu0 0.0
    %2481 = vmatprep.subr.mxu0 0.0
    %2482 = vmatpush1.msra.mxu0 0.0
    %2483 = vmatprep.subr.mxu0 0.0
    %2484 = vmatpush1.msra.mxu0 0.0
    %2485 = vmatprep.subr.mxu0 0.0
    %2486 = vmatpush1.msra.mxu0 0.0
    %2487 = vmatprep.subr.mxu0 0.0
    %2488 = vmatpush1.msra.mxu0 0.0
    %2489 = vmatprep.subr.mxu0 0.0
    %2490 = vmatpush1.msra.mxu0 0.0
    %2491 = vmatprep.subr.mxu0 0.0
    %2492 = vmatpush1.msra.mxu0 0.0
    %2493 = vmatprep.subr.mxu0 0.0
    %2494 = vmatpush1.msra.mxu0 0.0
    %2495 = vmatprep.mubr.f32.mxu0 0.0
    %2496 = vmatmul.mubr.f32.gmra.mrb[0].mxu0 %v2359
    %v2497 = vpop.f32.mrb[0].mxu0
    %v2498 = vadd.f32 %v2032, %v2497
    %v2499 = vpop.f32.mrb[0].mxu0
    %2500 = vdwg.mxu0
    %v2501 = vadd.f32 %v1894, %v2427
    %v2502 = vxor.u32 %v2501, 2147483648
    %v2503 = vmul.f32 %v2502, 1.442695
    %v2504 = vpow.pop %v2503
    %v2505 = vadd.f32 %v2504, 1.0
    %v2506 = vrcp.pop %v2505
    %v2507 = vmul.f32 1.0, %v2506
    %v2508 = vadd.f32 %v1896, %v2429
    %v2509 = vxor.u32 %v2508, 2147483648
    %v2510 = vmul.f32 %v2509, 1.442695
    %v2511 = vpow.pop %v2510
    %v2512 = vadd.f32 %v2511, 1.0
    %v2513 = vrcp.pop %v2512
    %v2514 = vmul.f32 1.0, %v2513
    %v2515 = vmul.f32 %v2507, %v2498
    %v2516 = vadd.f32 %v1965, %v2515
    %v2517 = vtanh.pop %v2516
    %v2518 = vsub.f32 1.0, %v2514
    %v2519 = vmul.f32 %v2518, %v2517
    %v2520 = vmul.f32 %v2514, %v2359
    %v2521 = vadd.f32 %v2519, %v2520
    %2522 = vmatprep.subr.mxu0 %v1969
    %2523 = vmatpush1.msra.mxu0 %v1968
    %2524 = vmatprep.subr.mxu0 %v1972
    %2525 = vmatpush1.msra.mxu0 %v1971
    %2526 = vmatprep.subr.mxu0 %v1975
    %2527 = vmatpush1.msra.mxu0 %v1974
    %2528 = vmatprep.subr.mxu0 %v1978
    %2529 = vmatpush1.msra.mxu0 %v1977
    %2530 = vmatprep.subr.mxu0 %v1981
    %2531 = vmatpush1.msra.mxu0 %v1980
    %2532 = vmatprep.subr.mxu0 %v1984
    %2533 = vmatpush1.msra.mxu0 %v1983
    %2534 = vmatprep.subr.mxu0 %v1987
    %2535 = vmatpush1.msra.mxu0 %v1986
    %2536 = vmatprep.subr.mxu0 %v1990
    %2537 = vmatpush1.msra.mxu0 %v1989
    %2538 = vmatprep.subr.mxu0 %v1993
    %2539 = vmatpush1.msra.mxu0 %v1992
    %2540 = vmatprep.subr.mxu0 %v1996
    %2541 = vmatpush1.msra.mxu0 %v1995
    %2542 = vmatprep.subr.mxu0 %v1999
    %2543 = vmatpush1.msra.mxu0 %v1998
    %2544 = vmatprep.subr.mxu0 %v2002
    %2545 = vmatpush1.msra.mxu0 %v2001
    %2546 = vmatprep.subr.mxu0 %v2005
    %2547 = vmatpush1.msra.mxu0 %v2004
    %2548 = vmatprep.subr.mxu0 %v2008
    %2549 = vmatpush1.msra.mxu0 %v2007
    %2550 = vmatprep.subr.mxu0 %v2011
    %2551 = vmatpush1.msra.mxu0 %v2010
    %2552 = vmatprep.subr.mxu0 %v2014
    %2553 = vmatpush1.msra.mxu0 %v2013
    %2554 = vmatprep.subr.mxu0 0.0
    %2555 = vmatpush1.msra.mxu0 0.0
    %2556 = vmatprep.subr.mxu0 0.0
    %2557 = vmatpush1.msra.mxu0 0.0
    %2558 = vmatprep.subr.mxu0 0.0
    %2559 = vmatpush1.msra.mxu0 0.0
    %2560 = vmatprep.subr.mxu0 0.0
    %2561 = vmatpush1.msra.mxu0 0.0
    %2562 = vmatprep.subr.mxu0 0.0
    %2563 = vmatpush1.msra.mxu0 0.0
    %2564 = vmatprep.subr.mxu0 0.0
    %2565 = vmatpush1.msra.mxu0 0.0
    %2566 = vmatprep.subr.mxu0 0.0
    %2567 = vmatpush1.msra.mxu0 0.0
    %2568 = vmatprep.subr.mxu0 0.0
    %2569 = vmatpush1.msra.mxu0 0.0
    %2570 = vmatprep.subr.mxu0 0.0
    %2571 = vmatpush1.msra.mxu0 0.0
    %2572 = vmatprep.subr.mxu0 0.0
    %2573 = vmatpush1.msra.mxu0 0.0
    %2574 = vmatprep.subr.mxu0 0.0
    %2575 = vmatpush1.msra.mxu0 0.0
    %2576 = vmatprep.subr.mxu0 0.0
    %2577 = vmatpush1.msra.mxu0 0.0
    %2578 = vmatprep.subr.mxu0 0.0
    %2579 = vmatpush1.msra.mxu0 0.0
    %2580 = vmatprep.subr.mxu0 0.0
    %2581 = vmatpush1.msra.mxu0 0.0
    %2582 = vmatprep.subr.mxu0 0.0
    %2583 = vmatpush1.msra.mxu0 0.0
    %2584 = vmatprep.subr.mxu0 0.0
    %2585 = vmatpush1.msra.mxu0 0.0
    %2586 = vmatprep.mubr.f32.mxu0 0.0
    %2587 = vmatmul.mubr.f32.gmra.mrb[0].mxu0 %v2521
    %v2588 = vpop.f32.mrb[0].mxu0
    %v2589 = vadd.f32 %v2024, %v2588
    %v2590 = vpop.f32.mrb[0].mxu0
    %v2591 = vadd.f32 %v2028, %v2590
    %2592 = vdwg.mxu0
    %2593 = vmatprep.subr.mxu0 0.0
    %2594 = vmatpush1.msra.mxu0 %v1970
    %2595 = vmatprep.subr.mxu0 0.0
    %2596 = vmatpush1.msra.mxu0 %v1973
    %2597 = vmatprep.subr.mxu0 0.0
    %2598 = vmatpush1.msra.mxu0 %v1976
    %2599 = vmatprep.subr.mxu0 0.0
    %2600 = vmatpush1.msra.mxu0 %v1979
    %2601 = vmatprep.subr.mxu0 0.0
    %2602 = vmatpush1.msra.mxu0 %v1982
    %2603 = vmatprep.subr.mxu0 0.0
    %2604 = vmatpush1.msra.mxu0 %v1985
    %2605 = vmatprep.subr.mxu0 0.0
    %2606 = vmatpush1.msra.mxu0 %v1988
    %2607 = vmatprep.subr.mxu0 0.0
    %2608 = vmatpush1.msra.mxu0 %v1991
    %2609 = vmatprep.subr.mxu0 0.0
    %2610 = vmatpush1.msra.mxu0 %v1994
    %2611 = vmatprep.subr.mxu0 0.0
    %2612 = vmatpush1.msra.mxu0 %v1997
    %2613 = vmatprep.subr.mxu0 0.0
    %2614 = vmatpush1.msra.mxu0 %v2000
    %2615 = vmatprep.subr.mxu0 0.0
    %2616 = vmatpush1.msra.mxu0 %v2003
    %2617 = vmatprep.subr.mxu0 0.0
    %2618 = vmatpush1.msra.mxu0 %v2006
    %2619 = vmatprep.subr.mxu0 0.0
    %2620 = vmatpush1.msra.mxu0 %v2009
    %2621 = vmatprep.subr.mxu0 0.0
    %2622 = vmatpush1.msra.mxu0 %v2012
    %2623 = vmatprep.subr.mxu0 0.0
    %2624 = vmatpush1.msra.mxu0 %v2015
    %2625 = vmatprep.subr.mxu0 0.0
    %2626 = vmatpush1.msra.mxu0 0.0
    %2627 = vmatprep.subr.mxu0 0.0
    %2628 = vmatpush1.msra.mxu0 0.0
    %2629 = vmatprep.subr.mxu0 0.0
    %2630 = vmatpush1.msra.mxu0 0.0
    %2631 = vmatprep.subr.mxu0 0.0
    %2632 = vmatpush1.msra.mxu0 0.0
    %2633 = vmatprep.subr.mxu0 0.0
    %2634 = vmatpush1.msra.mxu0 0.0
    %2635 = vmatprep.subr.mxu0 0.0
    %2636 = vmatpush1.msra.mxu0 0.0
    %2637 = vmatprep.subr.mxu0 0.0
    %2638 = vmatpush1.msra.mxu0 0.0
    %2639 = vmatprep.subr.mxu0 0.0
    %2640 = vmatpush1.msra.mxu0 0.0
    %2641 = vmatprep.subr.mxu0 0.0
    %2642 = vmatpush1.msra.mxu0 0.0
    %2643 = vmatprep.subr.mxu0 0.0
    %2644 = vmatpush1.msra.mxu0 0.0
    %2645 = vmatprep.subr.mxu0 0.0
    %2646 = vmatpush1.msra.mxu0 0.0
    %2647 = vmatprep.subr.mxu0 0.0
    %2648 = vmatpush1.msra.mxu0 0.0
    %2649 = vmatprep.subr.mxu0 0.0
    %2650 = vmatpush1.msra.mxu0 0.0
    %2651 = vmatprep.subr.mxu0 0.0
    %2652 = vmatpush1.msra.mxu0 0.0
    %2653 = vmatprep.subr.mxu0 0.0
    %2654 = vmatpush1.msra.mxu0 0.0
    %2655 = vmatprep.subr.mxu0 0.0
    %2656 = vmatpush1.msra.mxu0 0.0
    %2657 = vmatprep.mubr.f32.mxu0 0.0
    %2658 = vmatmul.mubr.f32.gmra.mrb[0].mxu0 %v2521
    %v2659 = vpop.f32.mrb[0].mxu0
    %v2660 = vadd.f32 %v2032, %v2659
    %v2661 = vpop.f32.mrb[0].mxu0
    %2662 = vdwg.mxu0
    %v2663 = vadd.f32 %v1894, %v2589
    %v2664 = vxor.u32 %v2663, 2147483648
    %v2665 = vmul.f32 %v2664, 1.442695
    %v2666 = vpow.pop %v2665
    %v2667 = vadd.f32 %v2666, 1.0
    %v2668 = vrcp.pop %v2667
    %v2669 = vmul.f32 1.0, %v2668
    %v2670 = vadd.f32 %v1896, %v2591
    %v2671 = vxor.u32 %v2670, 2147483648
    %v2672 = vmul.f32 %v2671, 1.442695
    %v2673 = vpow.pop %v2672
    %v2674 = vadd.f32 %v2673, 1.0
    %v2675 = vrcp.pop %v2674
    %v2676 = vmul.f32 1.0, %v2675
    %v2677 = vmul.f32 %v2669, %v2660
    %v2678 = vadd.f32 %v1965, %v2677
    %v2679 = vtanh.pop %v2678
    %v2680 = vsub.f32 1.0, %v2676
    %v2681 = vmul.f32 %v2680, %v2679
    %v2682 = vmul.f32 %v2676, %v2521
    %v2683 = vadd.f32 %v2681, %v2682
    %2684 = vmatprep.subr.mxu0 %v1969
    %2685 = vmatpush1.msra.mxu0 %v1968
    %2686 = vmatprep.subr.mxu0 %v1972
    %2687 = vmatpush1.msra.mxu0 %v1971
    %2688 = vmatprep.subr.mxu0 %v1975
    %2689 = vmatpush1.msra.mxu0 %v1974
    %2690 = vmatprep.subr.mxu0 %v1978
    %2691 = vmatpush1.msra.mxu0 %v1977
    %2692 = vmatprep.subr.mxu0 %v1981
    %2693 = vmatpush1.msra.mxu0 %v1980
    %2694 = vmatprep.subr.mxu0 %v1984
    %2695 = vmatpush1.msra.mxu0 %v1983
    %2696 = vmatprep.subr.mxu0 %v1987
    %2697 = vmatpush1.msra.mxu0 %v1986
    %2698 = vmatprep.subr.mxu0 %v1990
    %2699 = vmatpush1.msra.mxu0 %v1989
    %2700 = vmatprep.subr.mxu0 %v1993
    %2701 = vmatpush1.msra.mxu0 %v1992
    %2702 = vmatprep.subr.mxu0 %v1996
    %2703 = vmatpush1.msra.mxu0 %v1995
    %2704 = vmatprep.subr.mxu0 %v1999
    %2705 = vmatpush1.msra.mxu0 %v1998
    %2706 = vmatprep.subr.mxu0 %v2002
    %2707 = vmatpush1.msra.mxu0 %v2001
    %2708 = vmatprep.subr.mxu0 %v2005
    %2709 = vmatpush1.msra.mxu0 %v2004
    %2710 = vmatprep.subr.mxu0 %v2008
    %2711 = vmatpush1.msra.mxu0 %v2007
    %2712 = vmatprep.subr.mxu0 %v2011
    %2713 = vmatpush1.msra.mxu0 %v2010
    %2714 = vmatprep.subr.mxu0 %v2014
    %2715 = vmatpush1.msra.mxu0 %v2013
    %2716 = vmatprep.subr.mxu0 0.0
    %2717 = vmatpush1.msra.mxu0 0.0
    %2718 = vmatprep.subr.mxu0 0.0
    %2719 = vmatpush1.msra.mxu0 0.0
    %2720 = vmatprep.subr.mxu0 0.0
    %2721 = vmatpush1.msra.mxu0 0.0
    %2722 = vmatprep.subr.mxu0 0.0
    %2723 = vmatpush1.msra.mxu0 0.0
    %2724 = vmatprep.subr.mxu0 0.0
    %2725 = vmatpush1.msra.mxu0 0.0
    %2726 = vmatprep.subr.mxu0 0.0
    %2727 = vmatpush1.msra.mxu0 0.0
    %2728 = vmatprep.subr.mxu0 0.0
    %2729 = vmatpush1.msra.mxu0 0.0
    %2730 = vmatprep.subr.mxu0 0.0
    %2731 = vmatpush1.msra.mxu0 0.0
    %2732 = vmatprep.subr.mxu0 0.0
    %2733 = vmatpush1.msra.mxu0 0.0
    %2734 = vmatprep.subr.mxu0 0.0
    %2735 = vmatpush1.msra.mxu0 0.0
    %2736 = vmatprep.subr.mxu0 0.0
    %2737 = vmatpush1.msra.mxu0 0.0
    %2738 = vmatprep.subr.mxu0 0.0
    %2739 = vmatpush1.msra.mxu0 0.0
    %2740 = vmatprep.subr.mxu0 0.0
    %2741 = vmatpush1.msra.mxu0 0.0
    %2742 = vmatprep.subr.mxu0 0.0
    %2743 = vmatpush1.msra.mxu0 0.0
    %2744 = vmatprep.subr.mxu0 0.0
    %2745 = vmatpush1.msra.mxu0 0.0
    %2746 = vmatprep.subr.mxu0 0.0
    %2747 = vmatpush1.msra.mxu0 0.0
    %2748 = vmatprep.mubr.f32.mxu0 0.0
    %2749 = vmatmul.mubr.f32.gmra.mrb[0].mxu0 %v2683
    %v2750 = vpop.f32.mrb[0].mxu0
    %v2751 = vadd.f32 %v2024, %v2750
    %v2752 = vpop.f32.mrb[0].mxu0
    %v2753 = vadd.f32 %v2028, %v2752
    %2754 = vdwg.mxu0
    %2755 = vmatprep.subr.mxu0 0.0
    %2756 = vmatpush1.msra.mxu0 %v1970
    %2757 = vmatprep.subr.mxu0 0.0
    %2758 = vmatpush1.msra.mxu0 %v1973
    %2759 = vmatprep.subr.mxu0 0.0
    %2760 = vmatpush1.msra.mxu0 %v1976
    %2761 = vmatprep.subr.mxu0 0.0
    %2762 = vmatpush1.msra.mxu0 %v1979
    %2763 = vmatprep.subr.mxu0 0.0
    %2764 = vmatpush1.msra.mxu0 %v1982
    %2765 = vmatprep.subr.mxu0 0.0
    %2766 = vmatpush1.msra.mxu0 %v1985
    %2767 = vmatprep.subr.mxu0 0.0
    %2768 = vmatpush1.msra.mxu0 %v1988
    %2769 = vmatprep.subr.mxu0 0.0
    %2770 = vmatpush1.msra.mxu0 %v1991
    %2771 = vmatprep.subr.mxu0 0.0
    %2772 = vmatpush1.msra.mxu0 %v1994
    %2773 = vmatprep.subr.mxu0 0.0
    %2774 = vmatpush1.msra.mxu0 %v1997
    %2775 = vmatprep.subr.mxu0 0.0
    %2776 = vmatpush1.msra.mxu0 %v2000
    %2777 = vmatprep.subr.mxu0 0.0
    %2778 = vmatpush1.msra.mxu0 %v2003
    %2779 = vmatprep.subr.mxu0 0.0
    %2780 = vmatpush1.msra.mxu0 %v2006
    %2781 = vmatprep.subr.mxu0 0.0
    %2782 = vmatpush1.msra.mxu0 %v2009
    %2783 = vmatprep.subr.mxu0 0.0
    %2784 = vmatpush1.msra.mxu0 %v2012
    %2785 = vmatprep.subr.mxu0 0.0
    %2786 = vmatpush1.msra.mxu0 %v2015
    %2787 = vmatprep.subr.mxu0 0.0
    %2788 = vmatpush1.msra.mxu0 0.0
    %2789 = vmatprep.subr.mxu0 0.0
    %2790 = vmatpush1.msra.mxu0 0.0
    %2791 = vmatprep.subr.mxu0 0.0
    %2792 = vmatpush1.msra.mxu0 0.0
    %2793 = vmatprep.subr.mxu0 0.0
    %2794 = vmatpush1.msra.mxu0 0.0
    %2795 = vmatprep.subr.mxu0 0.0
    %2796 = vmatpush1.msra.mxu0 0.0
    %2797 = vmatprep.subr.mxu0 0.0
    %2798 = vmatpush1.msra.mxu0 0.0
    %2799 = vmatprep.subr.mxu0 0.0
    %2800 = vmatpush1.msra.mxu0 0.0
    %2801 = vmatprep.subr.mxu0 0.0
    %2802 = vmatpush1.msra.mxu0 0.0
    %2803 = vmatprep.subr.mxu0 0.0
    %2804 = vmatpush1.msra.mxu0 0.0
    %2805 = vmatprep.subr.mxu0 0.0
    %2806 = vmatpush1.msra.mxu0 0.0
    %2807 = vmatprep.subr.mxu0 0.0
    %2808 = vmatpush1.msra.mxu0 0.0
    %2809 = vmatprep.subr.mxu0 0.0
    %2810 = vmatpush1.msra.mxu0 0.0
    %2811 = vmatprep.subr.mxu0 0.0
    %2812 = vmatpush1.msra.mxu0 0.0
    %2813 = vmatprep.subr.mxu0 0.0
    %2814 = vmatpush1.msra.mxu0 0.0
    %2815 = vmatprep.subr.mxu0 0.0
    %2816 = vmatpush1.msra.mxu0 0.0
    %2817 = vmatprep.subr.mxu0 0.0
    %2818 = vmatpush1.msra.mxu0 0.0
    %2819 = vmatprep.mubr.f32.mxu0 0.0
    %2820 = vmatmul.mubr.f32.gmra.mrb[0].mxu0 %v2683
    %v2821 = vpop.f32.mrb[0].mxu0
    %v2822 = vadd.f32 %v2032, %v2821
    %v2823 = vpop.f32.mrb[0].mxu0
    %2824 = vdwg.mxu0
    %v2825 = vadd.f32 %v1894, %v2751
    %v2826 = vxor.u32 %v2825, 2147483648
    %v2827 = vmul.f32 %v2826, 1.442695
    %v2828 = vpow.pop %v2827
    %v2829 = vadd.f32 %v2828, 1.0
    %v2830 = vrcp.pop %v2829
    %v2831 = vmul.f32 1.0, %v2830
    %v2832 = vadd.f32 %v1896, %v2753
    %v2833 = vxor.u32 %v2832, 2147483648
    %v2834 = vmul.f32 %v2833, 1.442695
    %v2835 = vpow.pop %v2834
    %v2836 = vadd.f32 %v2835, 1.0
    %v2837 = vrcp.pop %v2836
    %v2838 = vmul.f32 1.0, %v2837
    %v2839 = vmul.f32 %v2831, %v2822
    %v2840 = vadd.f32 %v1965, %v2839
    %v2841 = vtanh.pop %v2840
    %v2842 = vsub.f32 1.0, %v2838
    %v2843 = vmul.f32 %v2842, %v2841
    %v2844 = vmul.f32 %v2838, %v2683
    %v2845 = vadd.f32 %v2843, %v2844
    %2846 = vmatprep.subr.mxu0 %v1969
    %2847 = vmatpush1.msra.mxu0 %v1968
    %2848 = vmatprep.subr.mxu0 %v1972
    %2849 = vmatpush1.msra.mxu0 %v1971
    %2850 = vmatprep.subr.mxu0 %v1975
    %2851 = vmatpush1.msra.mxu0 %v1974
    %2852 = vmatprep.subr.mxu0 %v1978
    %2853 = vmatpush1.msra.mxu0 %v1977
    %2854 = vmatprep.subr.mxu0 %v1981
    %2855 = vmatpush1.msra.mxu0 %v1980
    %2856 = vmatprep.subr.mxu0 %v1984
    %2857 = vmatpush1.msra.mxu0 %v1983
    %2858 = vmatprep.subr.mxu0 %v1987
    %2859 = vmatpush1.msra.mxu0 %v1986
    %2860 = vmatprep.subr.mxu0 %v1990
    %2861 = vmatpush1.msra.mxu0 %v1989
    %2862 = vmatprep.subr.mxu0 %v1993
    %2863 = vmatpush1.msra.mxu0 %v1992
    %2864 = vmatprep.subr.mxu0 %v1996
    %2865 = vmatpush1.msra.mxu0 %v1995
    %2866 = vmatprep.subr.mxu0 %v1999
    %2867 = vmatpush1.msra.mxu0 %v1998
    %2868 = vmatprep.subr.mxu0 %v2002
    %2869 = vmatpush1.msra.mxu0 %v2001
    %2870 = vmatprep.subr.mxu0 %v2005
    %2871 = vmatpush1.msra.mxu0 %v2004
    %2872 = vmatprep.subr.mxu0 %v2008
    %2873 = vmatpush1.msra.mxu0 %v2007
    %2874 = vmatprep.subr.mxu0 %v2011
    %2875 = vmatpush1.msra.mxu0 %v2010
    %2876 = vmatprep.subr.mxu0 %v2014
    %2877 = vmatpush1.msra.mxu0 %v2013
    %2878 = vmatprep.subr.mxu0 0.0
    %2879 = vmatpush1.msra.mxu0 0.0
    %2880 = vmatprep.subr.mxu0 0.0
    %2881 = vmatpush1.msra.mxu0 0.0
    %2882 = vmatprep.subr.mxu0 0.0
    %2883 = vmatpush1.msra.mxu0 0.0
    %2884 = vmatprep.subr.mxu0 0.0
    %2885 = vmatpush1.msra.mxu0 0.0
    %2886 = vmatprep.subr.mxu0 0.0
    %2887 = vmatpush1.msra.mxu0 0.0
    %2888 = vmatprep.subr.mxu0 0.0
    %2889 = vmatpush1.msra.mxu0 0.0
    %2890 = vmatprep.subr.mxu0 0.0
    %2891 = vmatpush1.msra.mxu0 0.0
    %2892 = vmatprep.subr.mxu0 0.0
    %2893 = vmatpush1.msra.mxu0 0.0
    %2894 = vmatprep.subr.mxu0 0.0
    %2895 = vmatpush1.msra.mxu0 0.0
    %2896 = vmatprep.subr.mxu0 0.0
    %2897 = vmatpush1.msra.mxu0 0.0
    %2898 = vmatprep.subr.mxu0 0.0
    %2899 = vmatpush1.msra.mxu0 0.0
    %2900 = vmatprep.subr.mxu0 0.0
    %2901 = vmatpush1.msra.mxu0 0.0
    %2902 = vmatprep.subr.mxu0 0.0
    %2903 = vmatpush1.msra.mxu0 0.0
    %2904 = vmatprep.subr.mxu0 0.0
    %2905 = vmatpush1.msra.mxu0 0.0
    %2906 = vmatprep.subr.mxu0 0.0
    %2907 = vmatpush1.msra.mxu0 0.0
    %2908 = vmatprep.subr.mxu0 0.0
    %2909 = vmatpush1.msra.mxu0 0.0
    %2910 = vmatprep.mubr.f32.mxu0 0.0
    %2911 = vmatmul.mubr.f32.gmra.mrb[0].mxu0 %v2845
    %v2912 = vpop.f32.mrb[0].mxu0
    %v2913 = vadd.f32 %v2024, %v2912
    %v2914 = vpop.f32.mrb[0].mxu0
    %v2915 = vadd.f32 %v2028, %v2914
    %2916 = vdwg.mxu0
    %2917 = vmatprep.subr.mxu0 0.0
    %2918 = vmatpush1.msra.mxu0 %v1970
    %2919 = vmatprep.subr.mxu0 0.0
    %2920 = vmatpush1.msra.mxu0 %v1973
    %2921 = vmatprep.subr.mxu0 0.0
    %2922 = vmatpush1.msra.mxu0 %v1976
    %2923 = vmatprep.subr.mxu0 0.0
    %2924 = vmatpush1.msra.mxu0 %v1979
    %2925 = vmatprep.subr.mxu0 0.0
    %2926 = vmatpush1.msra.mxu0 %v1982
    %2927 = vmatprep.subr.mxu0 0.0
    %2928 = vmatpush1.msra.mxu0 %v1985
    %2929 = vmatprep.subr.mxu0 0.0
    %2930 = vmatpush1.msra.mxu0 %v1988
    %2931 = vmatprep.subr.mxu0 0.0
    %2932 = vmatpush1.msra.mxu0 %v1991
    %2933 = vmatprep.subr.mxu0 0.0
    %2934 = vmatpush1.msra.mxu0 %v1994
    %2935 = vmatprep.subr.mxu0 0.0
    %2936 = vmatpush1.msra.mxu0 %v1997
    %2937 = vmatprep.subr.mxu0 0.0
    %2938 = vmatpush1.msra.mxu0 %v2000
    %2939 = vmatprep.subr.mxu0 0.0
    %2940 = vmatpush1.msra.mxu0 %v2003
    %2941 = vmatprep.subr.mxu0 0.0
    %2942 = vmatpush1.msra.mxu0 %v2006
    %2943 = vmatprep.subr.mxu0 0.0
    %2944 = vmatpush1.msra.mxu0 %v2009
    %2945 = vmatprep.subr.mxu0 0.0
    %2946 = vmatpush1.msra.mxu0 %v2012
    %2947 = vmatprep.subr.mxu0 0.0
    %2948 = vmatpush1.msra.mxu0 %v2015
    %2949 = vmatprep.subr.mxu0 0.0
    %2950 = vmatpush1.msra.mxu0 0.0
    %2951 = vmatprep.subr.mxu0 0.0
    %2952 = vmatpush1.msra.mxu0 0.0
    %2953 = vmatprep.subr.mxu0 0.0
    %2954 = vmatpush1.msra.mxu0 0.0
    %2955 = vmatprep.subr.mxu0 0.0
    %2956 = vmatpush1.msra.mxu0 0.0
    %2957 = vmatprep.subr.mxu0 0.0
    %2958 = vmatpush1.msra.mxu0 0.0
    %2959 = vmatprep.subr.mxu0 0.0
    %2960 = vmatpush1.msra.mxu0 0.0
    %2961 = vmatprep.subr.mxu0 0.0
    %2962 = vmatpush1.msra.mxu0 0.0
    %2963 = vmatprep.subr.mxu0 0.0
    %2964 = vmatpush1.msra.mxu0 0.0
    %2965 = vmatprep.subr.mxu0 0.0
    %2966 = vmatpush1.msra.mxu0 0.0
    %2967 = vmatprep.subr.mxu0 0.0
    %2968 = vmatpush1.msra.mxu0 0.0
    %2969 = vmatprep.subr.mxu0 0.0
    %2970 = vmatpush1.msra.mxu0 0.0
    %2971 = vmatprep.subr.mxu0 0.0
    %2972 = vmatpush1.msra.mxu0 0.0
    %2973 = vmatprep.subr.mxu0 0.0
    %2974 = vmatpush1.msra.mxu0 0.0
    %2975 = vmatprep.subr.mxu0 0.0
    %2976 = vmatpush1.msra.mxu0 0.0
    %2977 = vmatprep.subr.mxu0 0.0
    %2978 = vmatpush1.msra.mxu0 0.0
    %2979 = vmatprep.subr.mxu0 0.0
    %2980 = vmatpush1.msra.mxu0 0.0
    %2981 = vmatprep.mubr.f32.mxu0 0.0
    %2982 = vmatmul.mubr.f32.gmra.mrb[0].mxu0 %v2845
    %v2983 = vpop.f32.mrb[0].mxu0
    %v2984 = vadd.f32 %v2032, %v2983
    %v2985 = vpop.f32.mrb[0].mxu0
    %2986 = vdwg.mxu0
    %v2987 = vadd.f32 %v1894, %v2913
    %v2988 = vxor.u32 %v2987, 2147483648
    %v2989 = vmul.f32 %v2988, 1.442695
    %v2990 = vpow.pop %v2989
    %v2991 = vadd.f32 %v2990, 1.0
    %v2992 = vrcp.pop %v2991
    %v2993 = vmul.f32 1.0, %v2992
    %v2994 = vadd.f32 %v1896, %v2915
    %v2995 = vxor.u32 %v2994, 2147483648
    %v2996 = vmul.f32 %v2995, 1.442695
    %v2997 = vpow.pop %v2996
    %v2998 = vadd.f32 %v2997, 1.0
    %v2999 = vrcp.pop %v2998
    %v3000 = vmul.f32 1.0, %v2999
    %v3001 = vmul.f32 %v2993, %v2984
    %v3002 = vadd.f32 %v1965, %v3001
    %v3003 = vtanh.pop %v3002
    %v3004 = vsub.f32 1.0, %v3000
    %v3005 = vmul.f32 %v3004, %v3003
    %v3006 = vmul.f32 %v3000, %v2845
    %v3007 = vadd.f32 %v3005, %v3006
    %v3009 = vrot.slane %v2359, 7
    %v3012 = vrot.slane %v2521, 6
    %v3015 = vrot.slane %v2683, 5
    %v3018 = vrot.slane %v2845, 4
    %v3021 = vrot.slane %v3007, 3
    %v3023 = vsel %vm148, %v2197, %v3009
    %v3024 = vsel %vm150, %v3023, %v3012
    %v3025 = vsel %vm152, %v3024, %v3015
    %v3026 = vsel %vm154, %v3025, %v3018
    %v3027 = vsel %vm156, %v3026, %v3021
    %vm3028 = vcmask 259072
    %3029 = vst.msk [vmem:[#allocation11] sm:$0x3f] %vm3028, %v3027
    %v3030 = vld [vmem:[%s11] sm:$0xff]
    %v3031 = vld [vmem:[%s11 + $0x8] sm:$0xff]
    %v3032 = vld [vmem:[%s11 + $0x10] sm:$0xff]
    %v3033 = vld [vmem:[%s11 + $0x18] sm:$0xff]
    %v3034 = vld [vmem:[%s11 + $0x20] sm:$0xff]
    %v3035 = vld [vmem:[%s11 + $0x28] sm:$0xff]
    %v3036 = vld [vmem:[%s11 + $0x30] sm:$0xff]
    %v3037 = vld [vmem:[%s11 + $0x38] sm:$0xff]
    %v3038 = vld [vmem:[%s11 + $0x40] sm:$0xff]
    %v3039 = vld [vmem:[%s11 + $0x48] sm:$0xff]
    %v3040 = vld [vmem:[%s11 + $0x50] sm:$0xff]
    %v3041 = vld [vmem:[%s11 + $0x58] sm:$0xff]
    %v3042 = vld [vmem:[%s11 + $0x60] sm:$0xff]
    %v3043 = vld [vmem:[%s11 + $0x68] sm:$0xff]
    %v3044 = vld [vmem:[%s11 + $0x70] sm:$0xff]
    %v3045 = vld [vmem:[%s11 + $0x78] sm:$0xff]
    %v3046 = vld [vmem:[%s12] sm:$0x1]
    %v3048 = vlaneseq
    %v3049 = vshrl.u32 %v3048, 7
    %v3050 = vsub.s32 0, %v3049
    %v3051 = vrot.slane %v3046, %v3050
    %3053 = vmatprep.subr.mxu0 0.0
    %3054 = vmatpush1.msra.mxu0 %v3030
    %3055 = vmatprep.subr.mxu0 0.0
    %3056 = vmatpush1.msra.mxu0 %v3031
    %3057 = vmatprep.subr.mxu0 0.0
    %3058 = vmatpush1.msra.mxu0 %v3032
    %3059 = vmatprep.subr.mxu0 0.0
    %3060 = vmatpush1.msra.mxu0 %v3033
    %3061 = vmatprep.subr.mxu0 0.0
    %3062 = vmatpush1.msra.mxu0 %v3034
    %3063 = vmatprep.subr.mxu0 0.0
    %3064 = vmatpush1.msra.mxu0 %v3035
    %3065 = vmatprep.subr.mxu0 0.0
    %3066 = vmatpush1.msra.mxu0 %v3036
    %3067 = vmatprep.subr.mxu0 0.0
    %3068 = vmatpush1.msra.mxu0 %v3037
    %3069 = vmatprep.subr.mxu0 0.0
    %3070 = vmatpush1.msra.mxu0 %v3038
    %3071 = vmatprep.subr.mxu0 0.0
    %3072 = vmatpush1.msra.mxu0 %v3039
    %3073 = vmatprep.subr.mxu0 0.0
    %3074 = vmatpush1.msra.mxu0 %v3040
    %3075 = vmatprep.subr.mxu0 0.0
    %3076 = vmatpush1.msra.mxu0 %v3041
    %3077 = vmatprep.subr.mxu0 0.0
    %3078 = vmatpush1.msra.mxu0 %v3042
    %3079 = vmatprep.subr.mxu0 0.0
    %3080 = vmatpush1.msra.mxu0 %v3043
    %3081 = vmatprep.subr.mxu0 0.0
    %3082 = vmatpush1.msra.mxu0 %v3044
    %3083 = vmatprep.subr.mxu0 0.0
    %3084 = vmatpush1.msra.mxu0 %v3045
    %3085 = vmatprep.subr.mxu0 0.0
    %3086 = vmatpush1.msra.mxu0 0.0
    %3087 = vmatprep.subr.mxu0 0.0
    %3088 = vmatpush1.msra.mxu0 0.0
    %3089 = vmatprep.subr.mxu0 0.0
    %3090 = vmatpush1.msra.mxu0 0.0
    %3091 = vmatprep.subr.mxu0 0.0
    %3092 = vmatpush1.msra.mxu0 0.0
    %3093 = vmatprep.subr.mxu0 0.0
    %3094 = vmatpush1.msra.mxu0 0.0
    %3095 = vmatprep.subr.mxu0 0.0
    %3096 = vmatpush1.msra.mxu0 0.0
    %3097 = vmatprep.subr.mxu0 0.0
    %3098 = vmatpush1.msra.mxu0 0.0
    %3099 = vmatprep.subr.mxu0 0.0
    %3100 = vmatpush1.msra.mxu0 0.0
    %3101 = vmatprep.subr.mxu0 0.0
    %3102 = vmatpush1.msra.mxu0 0.0
    %3103 = vmatprep.subr.mxu0 0.0
    %3104 = vmatpush1.msra.mxu0 0.0
    %3105 = vmatprep.subr.mxu0 0.0
    %3106 = vmatpush1.msra.mxu0 0.0
    %3107 = vmatprep.subr.mxu0 0.0
    %3108 = vmatpush1.msra.mxu0 0.0
    %3109 = vmatprep.subr.mxu0 0.0
    %3110 = vmatpush1.msra.mxu0 0.0
    %3111 = vmatprep.subr.mxu0 0.0
    %3112 = vmatpush1.msra.mxu0 0.0
    %3113 = vmatprep.subr.mxu0 0.0
    %3114 = vmatpush1.msra.mxu0 0.0
    %3115 = vmatprep.subr.mxu0 0.0
    %3116 = vmatpush1.msra.mxu0 0.0
    %3117 = vmatprep.mubr.f32.mxu0 0.0
    %3118 = vmatmul.mubr.f32.gmra.mrb[0].mxu0 %v3027
    %v3119 = vpop.f32.mrb[0].mxu0
    %v3120 = vadd.f32 %v3051, %v3119
    %v3121 = vpop.f32.mrb[0].mxu0
    %3122 = vdwg.mxu0
    %vm3123 = vcmask 128000
    %v3124 = vsel %vm3123, %v3120, -inf
    %3125 = vmax.xlane.f32.xlu0 %v3124
    %v3126 = vpop.xlane.xlu0 %3125
    %v3127 = vsub.f32 %v3120, %v3126
    %v3128 = vmul.f32 %v3127, 1.442695
    %v3129 = vpow.pop %v3128
    %v3130 = vsel %vm3123, %v3129, 0.0
    %3131 = vadd.xlane.f32.xlu0 %v3130
    %v3132 = vpop.xlane.xlu0 %3131
    %v3133 = vlog2.pop %v3132
    %v3134 = vmul.f32 %v3133, 0.6931472
    %v3135 = vsub.f32 %v3127, %v3134
    %3136 = vst.msk [vmem:[#allocation10] sm:$0x3f] %vm3123, %v3135
    %v3137 = vsel %vm3123, %v3135, -inf
    %3138 = vmax.xlane.f32.xlu0 %v3137
    %v3139 = vpop.xlane.xlu0 %3138
    %v3140 = vlaneseq
    %v3141 = vand.u32 %v3140, 127
    %vm3142 = vcmp.ge.f32.partialorder %v3135, %v3139
    %v3143 = vsel %vm3142, %v3141, 1073741824
    %v3144 = vsel %vm3123, %v3143, 2147483647
    %v3145 = vand.u32 %v3144, 65535
    %v3146 = vshra.s32 %v3144, 16
    %v3147 = vcvt.s32.f32 %v3145
    %v3148 = vcvt.s32.f32 %v3146
    %3149 = vmin.xlane.f32.xlu0 %v3148
    %v3150 = vpop.xlane.xlu0 %3149
    %vm3151 = vcmp.eq.f32.partialorder %v3148, %v3150
    %v3152 = vsel %vm3151, %v3147, inf
    %3153 = vmin.xlane.f32.xlu0 %v3152
    %v3154 = vpop.xlane.xlu0 %3153
    %v3155 = vcvt.f32.s32 %v3154
    %v3156 = vcvt.f32.s32 %v3150
    %v3157 = vshll.u32 %v3156, 16
    %v3158 = vadd.s32 %v3157, %v3155
    %vm3159 = vcmask 5120
    %3160 = vst.msk [vmem:[%s14] sm:$0x3f] %vm3159, %v3158
    // Predicated region
    $region70: #{run_topic_seq2seq.1} parent=1 // pred_check
      _
    $region71: #{run_topic_seq2seq.1} parent=1 // pred_check_branch
      %3162 = sbr.rel (0) target = $region73
    $region72: #{run_topic_seq2seq.1} parent=1 // pred_region
      %s3164 = ssub.s32 128, 128
      %3165 = vsyncadd [#allocation4], %s3164
      %s3167 = sshll.u32 [#allocation10], 4
      %s3168 = int_to_ptr.vmem [resolvable:$true] %s3167
      %3170 = dma.vmem_to_hbm [thread:$0]  %s3168, 128, %s13, [#allocation4]
    $region73: #{run_topic_seq2seq.1} parent=1 // pred_fallthru
      _
    // Predicated region
    $region74: #{run_topic_seq2seq.1} parent=1 // pred_check
      _
    $region75: #{run_topic_seq2seq.1} parent=1 // pred_check_branch
      %3172 = sbr.rel (0) target = $region77
    $region76: #{run_topic_seq2seq.1} parent=1 // pred_region
      _
    $region77: #{run_topic_seq2seq.1} parent=1 // pred_fallthru
      _
    // Predicated region
    $region78: #{run_topic_seq2seq.1} parent=1 // pred_check
      _
    $region79: #{run_topic_seq2seq.1} parent=1 // pred_check_branch
      %3174 = sbr.rel (0) target = $region81
    $region80: #{run_topic_seq2seq.1} parent=1 // pred_region
      %s3176 = ssub.s32 128, 128
      %3177 = vsyncadd [#allocation12], %s3176
      %s3179 = sshll.u32 [#allocation11], 4
      %s3180 = int_to_ptr.vmem [resolvable:$true] %s3179
      %3182 = dma.vmem_to_hbm [thread:$0]  %s3180, 128, %s15, [#allocation12]
    $region81: #{run_topic_seq2seq.1} parent=1 // pred_fallthru
      _
    // Predicated region
    $region82: #{run_topic_seq2seq.1} parent=1 // pred_check
      _
    $region83: #{run_topic_seq2seq.1} parent=1 // pred_check_branch
      %3184 = sbr.rel (0) target = $region85
    $region84: #{run_topic_seq2seq.1} parent=1 // pred_region
      %3185 = dma.done [#allocation4], 128
    $region85: #{run_topic_seq2seq.1} parent=1 // pred_fallthru
      _
    // Predicated region
    $region86: #{run_topic_seq2seq.1} parent=1 // pred_check
      _
    $region87: #{run_topic_seq2seq.1} parent=1 // pred_check_branch
      %3187 = sbr.rel (0) target = $region89
    $region88: #{run_topic_seq2seq.1} parent=1 // pred_region
      _
    $region89: #{run_topic_seq2seq.1} parent=1 // pred_fallthru
      _
    // Predicated region
    $region90: #{run_topic_seq2seq.1} parent=1 // pred_check
      _
    $region91: #{run_topic_seq2seq.1} parent=1 // pred_check_branch
      %3189 = sbr.rel (0) target = $region93
    $region92: #{run_topic_seq2seq.1} parent=1 // pred_region
      %3190 = dma.done [#allocation12], 128
    $region93: #{run_topic_seq2seq.1} parent=1 // pred_fallthru
      _
    %3191 = vsyncpa [#allocation3], 1
    %3192 = vsyncpa [#allocation8], 1
    %3193 = vsyncpa [#allocation4], 1
    %3194 = vsyncpa [#allocation12], 1
    %3195 = vsyncpa [#allocation5], 1

</llo_original>
